<compile_context>
chip_gen: v5e
topology: v5e:2x2
jax: 0.10.0
libtpu: 0.0.40
codegen_flags: <defaults>
</compile_context>

<pallas_src>
import functools

import jax
import jax.numpy as jnp
from jax.experimental import pallas as pl
from jax.experimental.pallas import tpu as pltpu

EMBEDDING_SIZE = 64      # H
IN_FEATURES = 608        # F
NUM_CLASSES = 41         # Reddit dataset num_classes
CLASS_PAD = 128          # lane-dense padded class dim
NEG_INF = -1e30          # bias value for padded class lanes


def _vmem_limit_bytes():
    """80% of physical VMEM, capped at 100 MiB (safe on v5e/v6e/v7x)."""
    try:
        cap = int(pltpu.get_tpu_info().vmem_capacity_bytes)
    except Exception:
        cap = 64 * 1024 * 1024
    return min(int(cap * 0.8), 100 * 1024 * 1024)


# --------------------------------------------------------------------------
# Kernels
# --------------------------------------------------------------------------
def _proj1_kernel(x_ref, wl1_ref, wr1_ref, p1a_ref, p1r_ref):
    """P1_agg = x @ Wl1 (bf16), P1_res = x @ Wr1 (f32), per row tile."""
    x = x_ref[...]
    p1a_ref[...] = jnp.dot(x, wl1_ref[...],
                           preferred_element_type=jnp.float32).astype(p1a_ref.dtype)
    p1r_ref[...] = jnp.dot(x, wr1_ref[...],
                           preferred_element_type=jnp.float32)


def _agg1_proj2_kernel(adj_ref, p1a_ref, p1r_ref, b1_ref, wl2_ref, wr2_ref,
                       p2a_ref, p2r_ref):
    """h1 = relu(A_tile @ P1_agg + P1_res_tile + b1); project with layer-2 weights."""
    a = adj_ref[...].astype(jnp.bfloat16)            # int8 (0/1) -> bf16, exact
    agg = jnp.dot(a, p1a_ref[...], preferred_element_type=jnp.float32)
    h1 = jnp.maximum(agg + p1r_ref[...] + b1_ref[...], 0.0)     # f32 epilogue
    # TODO(synk): F.dropout(training=True) (random masking) not implemented;
    #             eval-mode identity semantics are used.
    h1b = h1.astype(jnp.bfloat16)
    p2a_ref[...] = jnp.dot(h1b, wl2_ref[...],
                           preferred_element_type=jnp.float32).astype(p2a_ref.dtype)
    p2r_ref[...] = jnp.dot(h1b, wr2_ref[...],
                           preferred_element_type=jnp.float32)


def _agg2_lsm_kernel(adj_ref, p2a_ref, p2r_ref, b2_ref, o_ref):
    """logits = A_tile @ P2_agg + P2_res_tile + b2; out = log_softmax(logits)."""
    a = adj_ref[...].astype(jnp.bfloat16)            # int8 (0/1) -> bf16, exact
    logits = (jnp.dot(a, p2a_ref[...], preferred_element_type=jnp.float32)
              + p2r_ref[...] + b2_ref[...])          # padded lanes get -1e30 bias
    m = jnp.max(logits, axis=-1, keepdims=True)
    s = logits - m
    lse = jnp.log(jnp.sum(jnp.exp(s), axis=-1, keepdims=True))
    o_ref[...] = (s - lse).astype(o_ref.dtype)       # lane-dense (128) store


# --------------------------------------------------------------------------
# Wrapper
# --------------------------------------------------------------------------
def net000_forward(x, adj, params, *, tile_n=256):
    """Net000 forward.  x: [N, F] f32, adj: [N, N] f32 0/1 (dense adj_t)."""
    n, f = x.shape
    h = EMBEDDING_SIZE
    c = NUM_CLASSES
    cpad = CLASS_PAD

    n_tiles = pl.cdiv(n, tile_n)
    npad = n_tiles * tile_n

    # One-time prep: pad N up to a row-tile multiple; x -> bf16 MXU operand;
    # adjacency -> int8 HBM copy (halves the dominant N^2 stream vs bf16).
    xb = jnp.pad(x, ((0, npad - n), (0, 0))).astype(jnp.bfloat16)
    a8 = jnp.pad(adj, ((0, npad - n), (0, npad - n))).astype(jnp.int8)

    wl1 = params["w_l1"].astype(jnp.bfloat16)                               # [F,H]
    wr1 = params["w_r1"].astype(jnp.bfloat16)                               # [F,H]
    wl2 = jnp.pad(params["w_l2"], ((0, 0), (0, cpad - c))).astype(jnp.bfloat16)  # [H,Cp]
    wr2 = jnp.pad(params["w_r2"], ((0, 0), (0, cpad - c))).astype(jnp.bfloat16)  # [H,Cp]
    b1 = params["b1"].reshape(1, h).astype(jnp.float32)
    b2 = jnp.pad(params["b2"], (0, cpad - c),
                 constant_values=NEG_INF).reshape(1, cpad).astype(jnp.float32)

    cparams = pltpu.CompilerParams(
        dimension_semantics=("parallel",),          # megacore-shardable row axis
        vmem_limit_bytes=_vmem_limit_bytes(),
    )

    # ---- Stage A: layer-1 per-node projections -----------------------------
    p1a, p1r = pl.pallas_call(
        _proj1_kernel,
        out_shape=(jax.ShapeDtypeStruct((npad, h), jnp.bfloat16),
                   jax.ShapeDtypeStruct((npad, h), jnp.float32)),
        grid=(n_tiles,),
        in_specs=[
            pl.BlockSpec((tile_n, f), lambda i: (i, 0)),     # x row tile
            pl.BlockSpec((f, h), lambda i: (0, 0)),          # Wl1 resident
            pl.BlockSpec((f, h), lambda i: (0, 0)),          # Wr1 resident
        ],
        out_specs=[
            pl.BlockSpec((tile_n, h), lambda i: (i, 0)),
            pl.BlockSpec((tile_n, h), lambda i: (i, 0)),
        ],
        compiler_params=cparams,
    )(xb, wl1, wr1)

    # ---- Stage B: layer-1 aggregate + relu + layer-2 projections -----------
    p2a, p2r = pl.pallas_call(
        _agg1_proj2_kernel,
        out_shape=(jax.ShapeDtypeStruct((npad, cpad), jnp.bfloat16),
                   jax.ShapeDtypeStruct((npad, cpad), jnp.float32)),
        grid=(n_tiles,),
        in_specs=[
            pl.BlockSpec((tile_n, npad), lambda i: (i, 0)),  # adj row slab (int8)
            pl.BlockSpec((npad, h), lambda i: (0, 0)),       # P1_agg, VMEM-resident
            pl.BlockSpec((tile_n, h), lambda i: (i, 0)),     # P1_res row tile (f32)
            pl.BlockSpec((1, h), lambda i: (0, 0)),          # b1
            pl.BlockSpec((h, cpad), lambda i: (0, 0)),       # Wl2 resident
            pl.BlockSpec((h, cpad), lambda i: (0, 0)),       # Wr2 resident
        ],
        out_specs=[
            pl.BlockSpec((tile_n, cpad), lambda i: (i, 0)),
            pl.BlockSpec((tile_n, cpad), lambda i: (i, 0)),
        ],
        compiler_params=cparams,
    )(a8, p1a, p1r, b1, wl2, wr2)

    # ---- Stage C: layer-2 aggregate + log_softmax ---------------------------
    out_pad = pl.pallas_call(
        _agg2_lsm_kernel,
        out_shape=jax.ShapeDtypeStruct((npad, cpad), jnp.float32),
        grid=(n_tiles,),
        in_specs=[
            pl.BlockSpec((tile_n, npad), lambda i: (i, 0)),  # adj row slab (int8)
            pl.BlockSpec((npad, cpad), lambda i: (0, 0)),    # P2_agg, VMEM-resident
            pl.BlockSpec((tile_n, cpad), lambda i: (i, 0)),  # P2_res row tile (f32)
            pl.BlockSpec((1, cpad), lambda i: (0, 0)),       # b2 (padded lanes -1e30)
        ],
        out_specs=pl.BlockSpec((tile_n, cpad), lambda i: (i, 0)),
        compiler_params=cparams,
    )(a8, p2a, p2r, b2)

    return out_pad[:n, :c]


# --------------------------------------------------------------------------
# Params / references / test
# --------------------------------------------------------------------------
def init_params(key):
    ks = jax.random.split(key, 6)

    def lin_weight(k, fan_in, fan_out):
        # Stored as [in, out] so the kernel computes x @ W directly.
        bound = 1.0 / jnp.sqrt(fan_in)
        return jax.random.uniform(k, (fan_in, fan_out), jnp.float32, -bound, bound)

    return {
        "w_l1": lin_weight(ks[0], IN_FEATURES, EMBEDDING_SIZE),
        "w_r1": lin_weight(ks[1], IN_FEATURES, EMBEDDING_SIZE),
        "b1": jax.random.uniform(ks[2], (EMBEDDING_SIZE,), jnp.float32,
                                 -1.0 / jnp.sqrt(IN_FEATURES),
                                 1.0 / jnp.sqrt(IN_FEATURES)),
        "w_l2": lin_weight(ks[3], EMBEDDING_SIZE, NUM_CLASSES),
        "w_r2": lin_weight(ks[4], EMBEDDING_SIZE, NUM_CLASSES),
        "b2": jax.random.uniform(ks[5], (NUM_CLASSES,), jnp.float32,
                                 -1.0 / jnp.sqrt(EMBEDDING_SIZE),
                                 1.0 / jnp.sqrt(EMBEDDING_SIZE)),
    }


def reference_forward_f32(x, adj, params):
    """Original (un-reassociated) module formula in f32."""
    h1 = jnp.maximum(
        (adj @ x) @ params["w_l1"] + params["b1"] + x @ params["w_r1"], 0.0)
    logits = (adj @ h1) @ params["w_l2"] + params["b2"] + h1 @ params["w_r2"]
    return jax.nn.log_softmax(logits, axis=1)


def reference_forward_mirrored(x, adj, params):
    """Same arithmetic as the kernels (bf16 MXU operands, f32 accum/residuals)."""
    bf = jnp.bfloat16
    xb = x.astype(bf)
    ab = adj.astype(jnp.int8).astype(bf)
    p1a = jnp.dot(xb, params["w_l1"].astype(bf),
                  preferred_element_type=jnp.float32).astype(bf)
    p1r = jnp.dot(xb, params["w_r1"].astype(bf),
                  preferred_element_type=jnp.float32)
    h1 = jnp.maximum(
        jnp.dot(ab, p1a, preferred_element_type=jnp.float32) + p1r + params["b1"], 0.0)
    h1b = h1.astype(bf)
    p2a = jnp.dot(h1b, params["w_l2"].astype(bf),
                  preferred_element_type=jnp.float32).astype(bf)
    p2r = jnp.dot(h1b, params["w_r2"].astype(bf),
                  preferred_element_type=jnp.float32)
    logits = (jnp.dot(ab, p2a, preferred_element_type=jnp.float32)
              + p2r + params["b2"])
    return jax.nn.log_softmax(logits, axis=1)


if __name__ == "__main__":
    key = jax.random.PRNGKey(0)
    k_x, k_adj, k_p = jax.random.split(key, 3)

    # Small synthetic graph: exercises N padding (300 -> 512) and 2 row tiles.
    N = 300
    x = jax.random.normal(k_x, (N, IN_FEATURES), jnp.float32)
    adj = (jax.random.uniform(k_adj, (N, N)) < 0.05).astype(jnp.float32)
    params = init_params(k_p)

    fwd = jax.jit(functools.partial(net000_forward, tile_n=256))
    out = jax.block_until_ready(fwd(x, adj, params))

    assert out.shape == (N, NUM_CLASSES)
    assert bool(jnp.all(jnp.isfinite(out)))
    # log_softmax rows should exponentiate-sum to 1 (f32 epilogue).
    row_sums = jnp.sum(jnp.exp(out), axis=1)
    assert bool(jnp.all(jnp.abs(row_sums - 1.0) < 1e-3))
    # Tight check against a reference using identical arithmetic.
    ref_bf16 = reference_forward_mirrored(x, adj, params)
    assert bool(jnp.max(jnp.abs(out - ref_bf16)) < 0.1)
    # Loose check against the original f32 formula (bf16 MXU rounding only).
    ref_f32 = reference_forward_f32(x, adj, params)
    assert bool(jnp.max(jnp.abs(out - ref_f32)) < 0.5)

    print("KERNEL_OK")
</pallas_src>

<mosaic_0001>
module attributes {stable_mosaic.version = 11 : i64} {
  func.func @_proj1_kernel(%arg0: i32, %arg1: memref<256x608xbf16, #tpu.memory_space<vmem>>, %arg2: memref<608x64xbf16, #tpu.memory_space<vmem>>, %arg3: memref<608x64xbf16, #tpu.memory_space<vmem>>, %arg4: memref<256x64xbf16, #tpu.memory_space<vmem>>, %arg5: memref<256x64xf32, #tpu.memory_space<vmem>>) attributes {dimension_semantics = [#tpu.dimension_semantics<parallel>], iteration_bounds = array<i64: 2>, scalar_prefetch = 0 : i64, scratch_operands = 0 : i64, tpu.core_type = #tpu.core_type<tc>, window_params = [{transform_indices = @transform_0, window_bounds = array<i64: 256, 608>}, {pipeline_mode = #tpu.pipeline_mode<synchronous>, transform_indices = @transform_1, window_bounds = array<i64: 608, 64>}, {pipeline_mode = #tpu.pipeline_mode<synchronous>, transform_indices = @transform_2, window_bounds = array<i64: 608, 64>}, {transform_indices = @transform_3, window_bounds = array<i64: 256, 64>}, {transform_indices = @transform_4, window_bounds = array<i64: 256, 64>}]} {
    %c0 = arith.constant 0 : index
    %c0_0 = arith.constant 0 : index
    %0 = vector.load %arg1[%c0, %c0_0] : memref<256x608xbf16, #tpu.memory_space<vmem>>, vector<256x608xbf16>
    %c0_1 = arith.constant 0 : index
    %c0_2 = arith.constant 0 : index
    %1 = vector.load %arg2[%c0_1, %c0_2] : memref<608x64xbf16, #tpu.memory_space<vmem>>, vector<608x64xbf16>
    %cst = arith.constant dense<0.000000e+00> : vector<256x64xf32>
    %2 = tpu.matmul %0, %1, %cst {dimension_numbers = #tpu.dot_dimension_numbers<[1], [0], [0], [1], [0, 0, 1, 1], [], []>} : vector<256x608xbf16>, vector<608x64xbf16>, vector<256x64xf32> -> vector<256x64xf32>
    %3 = arith.truncf %2 : vector<256x64xf32> to vector<256x64xbf16>
    %c0_3 = arith.constant 0 : index
    %c0_4 = arith.constant 0 : index
    %4 = vector.load %arg4[%c0_3, %c0_4] : memref<256x64xbf16, #tpu.memory_space<vmem>>, vector<256x64xbf16>
    tpu.vector_store %arg4[%c0_3, %c0_4], %3 {strides = array<i32>} : memref<256x64xbf16, #tpu.memory_space<vmem>>, vector<256x64xbf16>,
    %c0_5 = arith.constant 0 : index
    %c0_6 = arith.constant 0 : index
    %5 = vector.load %arg3[%c0_5, %c0_6] : memref<608x64xbf16, #tpu.memory_space<vmem>>, vector<608x64xbf16>
    %cst_7 = arith.constant dense<0.000000e+00> : vector<256x64xf32>
    %6 = tpu.matmul %0, %5, %cst_7 {dimension_numbers = #tpu.dot_dimension_numbers<[1], [0], [0], [1], [0, 0, 1, 1], [], []>} : vector<256x608xbf16>, vector<608x64xbf16>, vector<256x64xf32> -> vector<256x64xf32>
    %c0_8 = arith.constant 0 : index
    %c0_9 = arith.constant 0 : index
    %7 = vector.load %arg5[%c0_8, %c0_9] : memref<256x64xf32, #tpu.memory_space<vmem>>, vector<256x64xf32>
    tpu.vector_store %arg5[%c0_8, %c0_9], %6 {strides = array<i32>} : memref<256x64xf32, #tpu.memory_space<vmem>>, vector<256x64xf32>,
    return
  }
  func.func @transform_0(%arg0: i32) -> (i32, i32) {
    %c0_i32 = arith.constant 0 : i32
    %c0_i32_0 = arith.constant 0 : i32
    return %arg0, %c0_i32 : i32, i32
  }
  func.func @transform_1(%arg0: i32) -> (i32, i32) {
    %c0_i32 = arith.constant 0 : i32
    %c0_i32_0 = arith.constant 0 : i32
    %c0_i32_1 = arith.constant 0 : i32
    return %c0_i32, %c0_i32_0 : i32, i32
  }
  func.func @transform_2(%arg0: i32) -> (i32, i32) {
    %c0_i32 = arith.constant 0 : i32
    %c0_i32_0 = arith.constant 0 : i32
    %c0_i32_1 = arith.constant 0 : i32
    return %c0_i32, %c0_i32_0 : i32, i32
  }
  func.func @transform_3(%arg0: i32) -> (i32, i32) {
    %c0_i32 = arith.constant 0 : i32
    %c0_i32_0 = arith.constant 0 : i32
    return %arg0, %c0_i32 : i32, i32
  }
  func.func @transform_4(%arg0: i32) -> (i32, i32) {
    %c0_i32 = arith.constant 0 : i32
    %c0_i32_0 = arith.constant 0 : i32
    return %arg0, %c0_i32 : i32, i32
  }
}

module attributes {stable_mosaic.version = 11 : i64} {
  func.func @_agg1_proj2_kernel(%arg0: i32, %arg1: memref<256x512xi8, #tpu.memory_space<vmem>>, %arg2: memref<512x64xbf16, #tpu.memory_space<vmem>>, %arg3: memref<256x64xf32, #tpu.memory_space<vmem>>, %arg4: memref<1x64xf32, #tpu.memory_space<vmem>>, %arg5: memref<64x128xbf16, #tpu.memory_space<vmem>>, %arg6: memref<64x128xbf16, #tpu.memory_space<vmem>>, %arg7: memref<256x128xbf16, #tpu.memory_space<vmem>>, %arg8: memref<256x128xf32, #tpu.memory_space<vmem>>) attributes {dimension_semantics = [#tpu.dimension_semantics<parallel>], iteration_bounds = array<i64: 2>, scalar_prefetch = 0 : i64, scratch_operands = 0 : i64, tpu.core_type = #tpu.core_type<tc>, window_params = [{transform_indices = @transform_0, window_bounds = array<i64: 256, 512>}, {pipeline_mode = #tpu.pipeline_mode<synchronous>, transform_indices = @transform_1, window_bounds = array<i64: 512, 64>}, {transform_indices = @transform_2, window_bounds = array<i64: 256, 64>}, {pipeline_mode = #tpu.pipeline_mode<synchronous>, transform_indices = @transform_3, window_bounds = array<i64: 1, 64>}, {pipeline_mode = #tpu.pipeline_mode<synchronous>, transform_indices = @transform_4, window_bounds = array<i64: 64, 128>}, {pipeline_mode = #tpu.pipeline_mode<synchronous>, transform_indices = @transform_5, window_bounds = array<i64: 64, 128>}, {transform_indices = @transform_6, window_bounds = array<i64: 256, 128>}, {transform_indices = @transform_7, window_bounds = array<i64: 256, 128>}]} {
    %c0 = arith.constant 0 : index
    %c0_0 = arith.constant 0 : index
    %0 = vector.load %arg1[%c0, %c0_0] : memref<256x512xi8, #tpu.memory_space<vmem>>, vector<256x512xi8>
    %1 = arith.sitofp %0 : vector<256x512xi8> to vector<256x512xbf16>
    %c0_1 = arith.constant 0 : index
    %c0_2 = arith.constant 0 : index
    %2 = vector.load %arg2[%c0_1, %c0_2] : memref<512x64xbf16, #tpu.memory_space<vmem>>, vector<512x64xbf16>
    %cst = arith.constant dense<0.000000e+00> : vector<256x64xf32>
    %3 = tpu.matmul %1, %2, %cst {dimension_numbers = #tpu.dot_dimension_numbers<[1], [0], [0], [1], [0, 0, 1, 1], [], []>} : vector<256x512xbf16>, vector<512x64xbf16>, vector<256x64xf32> -> vector<256x64xf32>
    %c0_3 = arith.constant 0 : index
    %c0_4 = arith.constant 0 : index
    %4 = vector.load %arg3[%c0_3, %c0_4] : memref<256x64xf32, #tpu.memory_space<vmem>>, vector<256x64xf32>
    %5 = arith.addf %3, %4 : vector<256x64xf32>
    %c0_5 = arith.constant 0 : index
    %c0_6 = arith.constant 0 : index
    %6 = vector.load %arg4[%c0_5, %c0_6] : memref<1x64xf32, #tpu.memory_space<vmem>>, vector<1x64xf32>
    %7 = vector.broadcast %6 : vector<1x64xf32> to vector<256x64xf32>
    %8 = arith.addf %5, %7 : vector<256x64xf32>
    %cst_7 = arith.constant 0.000000e+00 : f32
    %9 = vector.broadcast %cst_7 : f32 to vector<256x64xf32>
    %10 = arith.maximumf %8, %9 : vector<256x64xf32>
    %11 = arith.truncf %10 : vector<256x64xf32> to vector<256x64xbf16>
    %c0_8 = arith.constant 0 : index
    %c0_9 = arith.constant 0 : index
    %12 = vector.load %arg5[%c0_8, %c0_9] : memref<64x128xbf16, #tpu.memory_space<vmem>>, vector<64x128xbf16>
    %cst_10 = arith.constant dense<0.000000e+00> : vector<256x128xf32>
    %13 = tpu.matmul %11, %12, %cst_10 {dimension_numbers = #tpu.dot_dimension_numbers<[1], [0], [0], [1], [0, 0, 1, 1], [], []>} : vector<256x64xbf16>, vector<64x128xbf16>, vector<256x128xf32> -> vector<256x128xf32>
    %14 = arith.truncf %13 : vector<256x128xf32> to vector<256x128xbf16>
    %c0_11 = arith.constant 0 : index
    %c0_12 = arith.constant 0 : index
    %15 = vector.load %arg7[%c0_11, %c0_12] : memref<256x128xbf16, #tpu.memory_space<vmem>>, vector<256x128xbf16>
    tpu.vector_store %arg7[%c0_11, %c0_12], %14 {strides = array<i32>} : memref<256x128xbf16, #tpu.memory_space<vmem>>, vector<256x128xbf16>,
    %c0_13 = arith.constant 0 : index
    %c0_14 = arith.constant 0 : index
    %16 = vector.load %arg6[%c0_13, %c0_14] : memref<64x128xbf16, #tpu.memory_space<vmem>>, vector<64x128xbf16>
    %cst_15 = arith.constant dense<0.000000e+00> : vector<256x128xf32>
    %17 = tpu.matmul %11, %16, %cst_15 {dimension_numbers = #tpu.dot_dimension_numbers<[1], [0], [0], [1], [0, 0, 1, 1], [], []>} : vector<256x64xbf16>, vector<64x128xbf16>, vector<256x128xf32> -> vector<256x128xf32>
    %c0_16 = arith.constant 0 : index
    %c0_17 = arith.constant 0 : index
    %18 = vector.load %arg8[%c0_16, %c0_17] : memref<256x128xf32, #tpu.memory_space<vmem>>, vector<256x128xf32>
    tpu.vector_store %arg8[%c0_16, %c0_17], %17 {strides = array<i32>} : memref<256x128xf32, #tpu.memory_space<vmem>>, vector<256x128xf32>,
    return
  }
  func.func @transform_0(%arg0: i32) -> (i32, i32) {
    %c0_i32 = arith.constant 0 : i32
    %c0_i32_0 = arith.constant 0 : i32
    return %arg0, %c0_i32 : i32, i32
  }
  func.func @transform_1(%arg0: i32) -> (i32, i32) {
    %c0_i32 = arith.constant 0 : i32
    %c0_i32_0 = arith.constant 0 : i32
    %c0_i32_1 = arith.constant 0 : i32
    return %c0_i32, %c0_i32_0 : i32, i32
  }
  func.func @transform_2(%arg0: i32) -> (i32, i32) {
    %c0_i32 = arith.constant 0 : i32
    %c0_i32_0 = arith.constant 0 : i32
    return %arg0, %c0_i32 : i32, i32
  }
  func.func @transform_3(%arg0: i32) -> (i32, i32) {
    %c0_i32 = arith.constant 0 : i32
    %c0_i32_0 = arith.constant 0 : i32
    %c0_i32_1 = arith.constant 0 : i32
    return %c0_i32, %c0_i32_0 : i32, i32
  }
  func.func @transform_4(%arg0: i32) -> (i32, i32) {
    %c0_i32 = arith.constant 0 : i32
    %c0_i32_0 = arith.constant 0 : i32
    %c0_i32_1 = arith.constant 0 : i32
    return %c0_i32, %c0_i32_0 : i32, i32
  }
  func.func @transform_5(%arg0: i32) -> (i32, i32) {
    %c0_i32 = arith.constant 0 : i32
    %c0_i32_0 = arith.constant 0 : i32
    %c0_i32_1 = arith.constant 0 : i32
    return %c0_i32, %c0_i32_0 : i32, i32
  }
  func.func @transform_6(%arg0: i32) -> (i32, i32) {
    %c0_i32 = arith.constant 0 : i32
    %c0_i32_0 = arith.constant 0 : i32
    return %arg0, %c0_i32 : i32, i32
  }
  func.func @transform_7(%arg0: i32) -> (i32, i32) {
    %c0_i32 = arith.constant 0 : i32
    %c0_i32_0 = arith.constant 0 : i32
    return %arg0, %c0_i32 : i32, i32
  }
}

module attributes {stable_mosaic.version = 11 : i64} {
  func.func @_agg2_lsm_kernel(%arg0: i32, %arg1: memref<256x512xi8, #tpu.memory_space<vmem>>, %arg2: memref<512x128xbf16, #tpu.memory_space<vmem>>, %arg3: memref<256x128xf32, #tpu.memory_space<vmem>>, %arg4: memref<1x128xf32, #tpu.memory_space<vmem>>, %arg5: memref<256x128xf32, #tpu.memory_space<vmem>>) attributes {dimension_semantics = [#tpu.dimension_semantics<parallel>], iteration_bounds = array<i64: 2>, scalar_prefetch = 0 : i64, scratch_operands = 0 : i64, tpu.core_type = #tpu.core_type<tc>, window_params = [{transform_indices = @transform_0, window_bounds = array<i64: 256, 512>}, {pipeline_mode = #tpu.pipeline_mode<synchronous>, transform_indices = @transform_1, window_bounds = array<i64: 512, 128>}, {transform_indices = @transform_2, window_bounds = array<i64: 256, 128>}, {pipeline_mode = #tpu.pipeline_mode<synchronous>, transform_indices = @transform_3, window_bounds = array<i64: 1, 128>}, {transform_indices = @transform_4, window_bounds = array<i64: 256, 128>}]} {
    %c0 = arith.constant 0 : index
    %c0_0 = arith.constant 0 : index
    %0 = vector.load %arg1[%c0, %c0_0] : memref<256x512xi8, #tpu.memory_space<vmem>>, vector<256x512xi8>
    %1 = arith.sitofp %0 : vector<256x512xi8> to vector<256x512xbf16>
    %c0_1 = arith.constant 0 : index
    %c0_2 = arith.constant 0 : index
    %2 = vector.load %arg2[%c0_1, %c0_2] : memref<512x128xbf16, #tpu.memory_space<vmem>>, vector<512x128xbf16>
    %cst = arith.constant dense<0.000000e+00> : vector<256x128xf32>
    %3 = tpu.matmul %1, %2, %cst {dimension_numbers = #tpu.dot_dimension_numbers<[1], [0], [0], [1], [0, 0, 1, 1], [], []>} : vector<256x512xbf16>, vector<512x128xbf16>, vector<256x128xf32> -> vector<256x128xf32>
    %c0_3 = arith.constant 0 : index
    %c0_4 = arith.constant 0 : index
    %4 = vector.load %arg3[%c0_3, %c0_4] : memref<256x128xf32, #tpu.memory_space<vmem>>, vector<256x128xf32>
    %5 = arith.addf %3, %4 : vector<256x128xf32>
    %c0_5 = arith.constant 0 : index
    %c0_6 = arith.constant 0 : index
    %6 = vector.load %arg4[%c0_5, %c0_6] : memref<1x128xf32, #tpu.memory_space<vmem>>, vector<1x128xf32>
    %7 = vector.broadcast %6 : vector<1x128xf32> to vector<256x128xf32>
    %8 = arith.addf %5, %7 : vector<256x128xf32>
    %cst_7 = arith.constant dense<0xFF800000> : vector<256xf32>
    %9 = vector.multi_reduction <maximumf>, %8, %cst_7 [1] : vector<256x128xf32> to vector<256xf32>
    %10 = vector.shape_cast %9 : vector<256xf32> to vector<256x1xf32>
    %11 = vector.broadcast %10 : vector<256x1xf32> to vector<256x128xf32>
    %12 = arith.subf %8, %11 : vector<256x128xf32>
    %13 = math.exp %12 : vector<256x128xf32>
    %cst_8 = arith.constant dense<0.000000e+00> : vector<256xf32>
    %14 = vector.multi_reduction <add>, %13, %cst_8 [1] : vector<256x128xf32> to vector<256xf32>
    %15 = vector.shape_cast %14 : vector<256xf32> to vector<256x1xf32>
    %16 = math.log %15 : vector<256x1xf32>
    %17 = vector.broadcast %16 : vector<256x1xf32> to vector<256x128xf32>
    %18 = arith.subf %12, %17 : vector<256x128xf32>
    %c0_9 = arith.constant 0 : index
    %c0_10 = arith.constant 0 : index
    %19 = vector.load %arg5[%c0_9, %c0_10] : memref<256x128xf32, #tpu.memory_space<vmem>>, vector<256x128xf32>
    tpu.vector_store %arg5[%c0_9, %c0_10], %18 {strides = array<i32>} : memref<256x128xf32, #tpu.memory_space<vmem>>, vector<256x128xf32>,
    return
  }
  func.func @transform_0(%arg0: i32) -> (i32, i32) {
    %c0_i32 = arith.constant 0 : i32
    %c0_i32_0 = arith.constant 0 : i32
    return %arg0, %c0_i32 : i32, i32
  }
  func.func @transform_1(%arg0: i32) -> (i32, i32) {
    %c0_i32 = arith.constant 0 : i32
    %c0_i32_0 = arith.constant 0 : i32
    %c0_i32_1 = arith.constant 0 : i32
    return %c0_i32, %c0_i32_0 : i32, i32
  }
  func.func @transform_2(%arg0: i32) -> (i32, i32) {
    %c0_i32 = arith.constant 0 : i32
    %c0_i32_0 = arith.constant 0 : i32
    return %arg0, %c0_i32 : i32, i32
  }
  func.func @transform_3(%arg0: i32) -> (i32, i32) {
    %c0_i32 = arith.constant 0 : i32
    %c0_i32_0 = arith.constant 0 : i32
    %c0_i32_1 = arith.constant 0 : i32
    return %c0_i32, %c0_i32_0 : i32, i32
  }
  func.func @transform_4(%arg0: i32) -> (i32, i32) {
    %c0_i32 = arith.constant 0 : i32
    %c0_i32_0 = arith.constant 0 : i32
    return %arg0, %c0_i32 : i32, i32
  }
}

</mosaic_0001>

<llo_original>
// kernel: net000_forward.5
$region0: #{net000_forward.5}
  #allocation0 [shape = 'u32[]', space=smem, size = 0x4, offset = 0x4, fixed_abs, tag = 'smem constant byte address 0x4 - core index']
  #allocation1 [shape = 'u32[72,128]{1,0:T(1,128)}', space=vmem, size = 0x9000, scoped, tag = 'internal scratch']
  %s0 = inlined_call_operand.vmem [shape: s8[512,512], index: 0, kind: input, shape index: {}]
  %s1 = inlined_call_operand.vmem [shape: bf16[512,128], index: 1, kind: input, shape index: {}]
  %s2 = inlined_call_operand.vmem [shape: f32[512,128], index: 2, kind: input, shape index: {}]
  %s3 = inlined_call_operand.vmem [shape: f32[1,128], index: 3, kind: input, shape index: {}]
  %s4 = inlined_call_operand.vmem [shape: f32[512,128], index: 4, kind: output, shape index: {}]
  %s5 = sld [smem:[#allocation0]]
  $region49: #{net000_forward.5} parent=0
    _
  %s7 = ssub.s32 1, %s5
  %s8 = scalar_select 0, %s7, %s5
  loop: start=0, step=1, limit=4
  $region2: #{net000_forward.5} parent=0 // loop_pre_header
    _
  $region3: #{net000_forward.5} parent=0 // loop_header
    %s10 = sphi 0, %s14
    %p11 = scmp.ge.s32.totalorder %s10, 4
    %s20 = sphi 0, %s22
    %s23 = sphi 0, %s20
    %s24 = sphi 0, %s23
    %s40 = sphi 0, %s24
    %s44 = sphi 0, %s44
    %s46 = sphi 0, %s44
    %s47 = sphi 0, %s46
    %s61 = sphi 0, %s47
    %s67 = sphi 0, %s69
    %s70 = sphi 0, %s67
    %s71 = sphi 0, %s70
    %s87 = sphi 0, %s71
    %s91 = sphi 0, %s91
    %s93 = sphi 0, %s91
    %s94 = sphi 0, %s93
    %s108 = sphi 0, %s94
    %s114 = sphi 0, %s116
    %s117 = sphi 0, %s114
    %s118 = sphi 0, %s117
    %s134 = sphi 0, %s118
  $region4: #{net000_forward.5} parent=0 // loop_header_branch
    %13 = sbr.rel (%p11) target = $region8
  $region5: #{net000_forward.5} parent=0 // loop_body
    %s15 = ssub.s32 %s10, 1
    %s16 = ssub.s32 %s10, 2
    %s17 = sadd.s32 %s10, 1
    %s18 = ssub.s32 %s10, %s17
    %p19 = scmp.eq.s32.totalorder %s18, 0
    %s21 = sadd.s32 %s20, 1
    %s22 = scalar_select %p19, %s20, %s21
    %p25 = pneg %p19
    %p26 = scmp.eq.s32.totalorder %s10, 1
    %p27 = por %p25, %p26
    %p28 = scmp.ne.s32.totalorder %s20, %s23
    %p29 = scmp.eq.s32.totalorder %s10, 0
    %p30 = por %p28, %p29
    %p31 = scmp.ne.s32.totalorder %s20, %s23
    %p32 = scmp.eq.s32.totalorder %s15, 1
    %p33 = por %p31, %p32
    %p34 = scmp.ne.s32.totalorder %s23, %s24
    %p35 = scmp.eq.s32.totalorder %s15, 0
    %p36 = por %p34, %p35
    %p37 = scmp.ne.s32.totalorder %s23, %s24
    %p38 = scmp.eq.s32.totalorder %s16, 1
    %p39 = por %p37, %p38
    %p41 = scmp.ne.s32.totalorder %s24, %s40
    %p42 = scmp.eq.s32.totalorder %s16, 0
    %p43 = por %p41, %p42
    %s45 = sadd.s32 %s44, 1
    %p48 = scmp.eq.s32.totalorder %s10, 1
    %p49 = scmp.ne.s32.totalorder %s44, %s46
    %p50 = scmp.eq.s32.totalorder %s10, 0
    %p51 = por %p49, %p50
    %p52 = scmp.ne.s32.totalorder %s44, %s46
    %p53 = scmp.eq.s32.totalorder %s15, 1
    %p54 = por %p52, %p53
    %p55 = scmp.ne.s32.totalorder %s46, %s47
    %p56 = scmp.eq.s32.totalorder %s15, 0
    %p57 = por %p55, %p56
    %p58 = scmp.ne.s32.totalorder %s46, %s47
    %p59 = scmp.eq.s32.totalorder %s16, 1
    %p60 = por %p58, %p59
    %p62 = scmp.ne.s32.totalorder %s47, %s61
    %p63 = scmp.eq.s32.totalorder %s16, 0
    %p64 = por %p62, %p63
    %s65 = ssub.s32 %s10, %s17
    %p66 = scmp.eq.s32.totalorder %s65, 0
    %s68 = sadd.s32 %s67, 1
    %s69 = scalar_select %p66, %s67, %s68
    %p72 = pneg %p66
    %p73 = scmp.eq.s32.totalorder %s10, 1
    %p74 = por %p72, %p73
    %p75 = scmp.ne.s32.totalorder %s67, %s70
    %p76 = scmp.eq.s32.totalorder %s10, 0
    %p77 = por %p75, %p76
    %p78 = scmp.ne.s32.totalorder %s67, %s70
    %p79 = scmp.eq.s32.totalorder %s15, 1
    %p80 = por %p78, %p79
    %p81 = scmp.ne.s32.totalorder %s70, %s71
    %p82 = scmp.eq.s32.totalorder %s15, 0
    %p83 = por %p81, %p82
    %p84 = scmp.ne.s32.totalorder %s70, %s71
    %p85 = scmp.eq.s32.totalorder %s16, 1
    %p86 = por %p84, %p85
    %p88 = scmp.ne.s32.totalorder %s71, %s87
    %p89 = scmp.eq.s32.totalorder %s16, 0
    %p90 = por %p88, %p89
    %s92 = sadd.s32 %s91, 1
    %p95 = scmp.eq.s32.totalorder %s10, 1
    %p96 = scmp.ne.s32.totalorder %s91, %s93
    %p97 = scmp.eq.s32.totalorder %s10, 0
    %p98 = por %p96, %p97
    %p99 = scmp.ne.s32.totalorder %s91, %s93
    %p100 = scmp.eq.s32.totalorder %s15, 1
    %p101 = por %p99, %p100
    %p102 = scmp.ne.s32.totalorder %s93, %s94
    %p103 = scmp.eq.s32.totalorder %s15, 0
    %p104 = por %p102, %p103
    %p105 = scmp.ne.s32.totalorder %s93, %s94
    %p106 = scmp.eq.s32.totalorder %s16, 1
    %p107 = por %p105, %p106
    %p109 = scmp.ne.s32.totalorder %s94, %s108
    %p110 = scmp.eq.s32.totalorder %s16, 0
    %p111 = por %p109, %p110
    %s112 = ssub.s32 %s10, %s17
    %p113 = scmp.eq.s32.totalorder %s112, 0
    %s115 = sadd.s32 %s114, 1
    %s116 = scalar_select %p113, %s114, %s115
    %p119 = pneg %p113
    %p120 = scmp.eq.s32.totalorder %s10, 1
    %p121 = por %p119, %p120
    %p122 = scmp.ne.s32.totalorder %s114, %s117
    %p123 = scmp.eq.s32.totalorder %s10, 0
    %p124 = por %p122, %p123
    %p125 = scmp.ne.s32.totalorder %s114, %s117
    %p126 = scmp.eq.s32.totalorder %s15, 1
    %p127 = por %p125, %p126
    %p128 = scmp.ne.s32.totalorder %s117, %s118
    %p129 = scmp.eq.s32.totalorder %s15, 0
    %p130 = por %p128, %p129
    %p131 = scmp.ne.s32.totalorder %s117, %s118
    %p132 = scmp.eq.s32.totalorder %s16, 1
    %p133 = por %p131, %p132
    %p135 = scmp.ne.s32.totalorder %s118, %s134
    %p136 = scmp.eq.s32.totalorder %s16, 0
    %p137 = por %p135, %p136
    %p138 = scmp.le.s32.totalorder 1, %s10
    %p139 = scmp.lt.s32.totalorder %s10, 3
    %p140 = pnand %p138, %p139
    %p141 = pneg %p140
    // Predicated region
    $region9: #{net000_forward.5} parent=5 // pred_check
      _
    $region10: #{net000_forward.5} parent=5 // pred_check_branch
      %143 = sbr.rel (%p140) target = $region12
    $region11: #{net000_forward.5} parent=5 // pred_region
      %s144 = ssub.s32 %s10, 1
      // Predicated region
      $region13: #{net000_forward.5} parent=11 // pred_check
        %p145 = pneg %p57
      $region14: #{net000_forward.5} parent=11 // pred_check_branch
        %147 = sbr.rel (%p145) target = $region16
      $region15: #{net000_forward.5} parent=11 // pred_region
        _
      $region16: #{net000_forward.5} parent=11 // pred_fallthru
        _
      // Predicated region
      $region17: #{net000_forward.5} parent=11 // pred_check
        %p148 = pneg %p104
      $region18: #{net000_forward.5} parent=11 // pred_check_branch
        %150 = sbr.rel (%p148) target = $region20
      $region19: #{net000_forward.5} parent=11 // pred_region
        _
      $region20: #{net000_forward.5} parent=11 // pred_fallthru
        _
    $region12: #{net000_forward.5} parent=5 // pred_fallthru
      _
    %p151 = scmp.lt.s32.totalorder %s10, 2
    // Predicated region
    $region21: #{net000_forward.5} parent=5 // pred_check
      %p152 = pneg %p151
    $region22: #{net000_forward.5} parent=5 // pred_check_branch
      %154 = sbr.rel (%p152) target = $region24
    $region23: #{net000_forward.5} parent=5 // pred_region
      // Predicated region
      $region25: #{net000_forward.5} parent=23 // pred_check
        %p155 = pneg %p30
      $region26: #{net000_forward.5} parent=23 // pred_check_branch
        %157 = sbr.rel (%p155) target = $region28
      $region27: #{net000_forward.5} parent=23 // pred_region
        %s158 = smul.u32 8, %s10
        %p159 = scmp.lt.s32.totalorder %s158, 15
        %s160 = scalar_select %p159, %s158, 15
        %s161 = smul.addr %s160, 4
        %s162 = smul.addr %s161, 8
        %s163 = scalar_lea.vmem %s0, %s162
        %s164 = smul.u32 8, %s10
      $region28: #{net000_forward.5} parent=23 // pred_fallthru
        _
      // Predicated region
      $region29: #{net000_forward.5} parent=23 // pred_check
        %p165 = pneg %p77
      $region30: #{net000_forward.5} parent=23 // pred_check_branch
        %167 = sbr.rel (%p165) target = $region32
      $region31: #{net000_forward.5} parent=23 // pred_region
        %s168 = smul.u32 32, %s10
        %p169 = scmp.lt.s32.totalorder %s168, 63
        %s170 = scalar_select %p169, %s168, 63
        %s171 = smul.addr %s170, 8
        %s172 = scalar_lea.vmem %s2, %s171
        %s173 = smul.u32 32, %s10
      $region32: #{net000_forward.5} parent=23 // pred_fallthru
        _
    $region24: #{net000_forward.5} parent=5 // pred_fallthru
      _
    %p174 = scmp.le.s32.totalorder 1, %s10
    %p175 = scmp.lt.s32.totalorder %s10, 3
    %p176 = pnand %p174, %p175
    %p177 = pneg %p176
    // Predicated region
    $region33: #{net000_forward.5} parent=5 // pred_check
      _
    $region34: #{net000_forward.5} parent=5 // pred_check_branch
      %179 = sbr.rel (%p176) target = $region36
    $region35: #{net000_forward.5} parent=5 // pred_region
      %s180 = ssub.s32 %s10, 1
      %s181 = smul.u32 8, %s15
      %p182 = scmp.lt.s32.totalorder %s181, 15
      %s183 = scalar_select %p182, %s181, 15
      %s184 = smul.addr %s183, 4
      %s185 = smul.addr %s184, 8
      %s186 = scalar_lea.vmem %s0, %s185
      %p187 = pneg %p36
      %p188 = pneg %p33
      %p189 = pneg %p57
      %p190 = pneg %p54
      %s191 = smul.u32 32, %s15
      %p192 = scmp.lt.s32.totalorder %s191, 63
      %s193 = scalar_select %p192, %s191, 63
      %s194 = smul.addr %s193, 8
      %s195 = scalar_lea.vmem %s2, %s194
      %p196 = pneg %p83
      %p197 = pneg %p80
      %p198 = pneg %p104
      %p199 = pneg %p101
      %p200 = pneg %p130
      %p201 = pneg %p127
      %s202 = smul.u32 32, %s15
      %p203 = scmp.lt.s32.totalorder %s202, 63
      %s204 = scalar_select %p203, %s202, 63
      %s205 = smul.addr %s204, 8
      %s206 = scalar_lea.vmem %s4, %s205
      %s207 = smul.u32 8, %s15
      %p208 = scmp.lt.s32.totalorder %s207, 15
      %s209 = scalar_select %p208, %s207, 15
      %s210 = smul.addr %s209, 4
      %s211 = smul.addr %s210, 8
      %s212 = scalar_lea.vmem %s0, %s211
      %s213 = smul.u32 8, %s15
      %s214 = smul.u32 32, %s15
      %p215 = scmp.lt.s32.totalorder %s214, 63
      %s216 = scalar_select %p215, %s214, 63
      %s217 = smul.addr %s216, 8
      %s218 = scalar_lea.vmem %s2, %s217
      %s219 = smul.u32 32, %s15
      %s220 = smul.u32 32, %s15
      %p221 = scmp.lt.s32.totalorder %s220, 63
      %s222 = scalar_select %p221, %s220, 63
      %s223 = smul.addr %s222, 8
      %s224 = scalar_lea.vmem %s4, %s223
      %s225 = smul.u32 32, %s15
      %v226 = vld [vmem:[%s212] sm:$0xff]
      %v227 = vld [vmem:[%s212 + $0x8] sm:$0xff]
      %v228 = vld [vmem:[%s212 + $0x10] sm:$0xff]
      %v229 = vld [vmem:[%s212 + $0x18] sm:$0xff]
      %v230 = vld [vmem:[%s212 + $0x20] sm:$0xff]
      %v231 = vld [vmem:[%s212 + $0x28] sm:$0xff]
      %v232 = vld [vmem:[%s212 + $0x30] sm:$0xff]
      %v233 = vld [vmem:[%s212 + $0x38] sm:$0xff]
      %v234 = vld [vmem:[%s212 + $0x40] sm:$0xff]
      %v235 = vld [vmem:[%s212 + $0x48] sm:$0xff]
      %v236 = vld [vmem:[%s212 + $0x50] sm:$0xff]
      %v237 = vld [vmem:[%s212 + $0x58] sm:$0xff]
      %v238 = vld [vmem:[%s212 + $0x60] sm:$0xff]
      %v239 = vld [vmem:[%s212 + $0x68] sm:$0xff]
      %v240 = vld [vmem:[%s212 + $0x70] sm:$0xff]
      %v241 = vld [vmem:[%s212 + $0x78] sm:$0xff]
      %v242 = vld [vmem:[%s212 + $0x80] sm:$0xff]
      %v243 = vld [vmem:[%s212 + $0x88] sm:$0xff]
      %v244 = vld [vmem:[%s212 + $0x90] sm:$0xff]
      %v245 = vld [vmem:[%s212 + $0x98] sm:$0xff]
      %v246 = vld [vmem:[%s212 + $0xa0] sm:$0xff]
      %v247 = vld [vmem:[%s212 + $0xa8] sm:$0xff]
      %v248 = vld [vmem:[%s212 + $0xb0] sm:$0xff]
      %v249 = vld [vmem:[%s212 + $0xb8] sm:$0xff]
      %v250 = vld [vmem:[%s212 + $0xc0] sm:$0xff]
      %v251 = vld [vmem:[%s212 + $0xc8] sm:$0xff]
      %v252 = vld [vmem:[%s212 + $0xd0] sm:$0xff]
      %v253 = vld [vmem:[%s212 + $0xd8] sm:$0xff]
      %v254 = vld [vmem:[%s212 + $0xe0] sm:$0xff]
      %v255 = vld [vmem:[%s212 + $0xe8] sm:$0xff]
      %v256 = vld [vmem:[%s212 + $0xf0] sm:$0xff]
      %v257 = vld [vmem:[%s212 + $0xf8] sm:$0xff]
      %v258 = vunpack.c.0.s8 %v226
      %v259 = vunpack.c.0.s8 %v227
      %v260 = vunpack.c.0.s8 %v228
      %v261 = vunpack.c.0.s8 %v229
      %v262 = vunpack.c.1.s8 %v226
      %v263 = vunpack.c.1.s8 %v227
      %v264 = vunpack.c.1.s8 %v228
      %v265 = vunpack.c.1.s8 %v229
      %v266 = vunpack.c.2.s8 %v226
      %v267 = vunpack.c.2.s8 %v227
      %v268 = vunpack.c.2.s8 %v228
      %v269 = vunpack.c.2.s8 %v229
      %v270 = vunpack.c.3.s8 %v226
      %v271 = vunpack.c.3.s8 %v227
      %v272 = vunpack.c.3.s8 %v228
      %v273 = vunpack.c.3.s8 %v229
      %v274 = vunpack.c.0.s8 %v230
      %v275 = vunpack.c.0.s8 %v231
      %v276 = vunpack.c.0.s8 %v232
      %v277 = vunpack.c.0.s8 %v233
      %v278 = vunpack.c.1.s8 %v230
      %v279 = vunpack.c.1.s8 %v231
      %v280 = vunpack.c.1.s8 %v232
      %v281 = vunpack.c.1.s8 %v233
      %v282 = vunpack.c.2.s8 %v230
      %v283 = vunpack.c.2.s8 %v231
      %v284 = vunpack.c.2.s8 %v232
      %v285 = vunpack.c.2.s8 %v233
      %v286 = vunpack.c.3.s8 %v230
      %v287 = vunpack.c.3.s8 %v231
      %v288 = vunpack.c.3.s8 %v232
      %v289 = vunpack.c.3.s8 %v233
      %v290 = vunpack.c.0.s8 %v234
      %v291 = vunpack.c.0.s8 %v235
      %v292 = vunpack.c.0.s8 %v236
      %v293 = vunpack.c.0.s8 %v237
      %v294 = vunpack.c.1.s8 %v234
      %v295 = vunpack.c.1.s8 %v235
      %v296 = vunpack.c.1.s8 %v236
      %v297 = vunpack.c.1.s8 %v237
      %v298 = vunpack.c.2.s8 %v234
      %v299 = vunpack.c.2.s8 %v235
      %v300 = vunpack.c.2.s8 %v236
      %v301 = vunpack.c.2.s8 %v237
      %v302 = vunpack.c.3.s8 %v234
      %v303 = vunpack.c.3.s8 %v235
      %v304 = vunpack.c.3.s8 %v236
      %v305 = vunpack.c.3.s8 %v237
      %v306 = vunpack.c.0.s8 %v238
      %v307 = vunpack.c.0.s8 %v239
      %v308 = vunpack.c.0.s8 %v240
      %v309 = vunpack.c.0.s8 %v241
      %v310 = vunpack.c.1.s8 %v238
      %v311 = vunpack.c.1.s8 %v239
      %v312 = vunpack.c.1.s8 %v240
      %v313 = vunpack.c.1.s8 %v241
      %v314 = vunpack.c.2.s8 %v238
      %v315 = vunpack.c.2.s8 %v239
      %v316 = vunpack.c.2.s8 %v240
      %v317 = vunpack.c.2.s8 %v241
      %v318 = vunpack.c.3.s8 %v238
      %v319 = vunpack.c.3.s8 %v239
      %v320 = vunpack.c.3.s8 %v240
      %v321 = vunpack.c.3.s8 %v241
      %v322 = vunpack.c.0.s8 %v242
      %v323 = vunpack.c.0.s8 %v243
      %v324 = vunpack.c.0.s8 %v244
      %v325 = vunpack.c.0.s8 %v245
      %v326 = vunpack.c.1.s8 %v242
      %v327 = vunpack.c.1.s8 %v243
      %v328 = vunpack.c.1.s8 %v244
      %v329 = vunpack.c.1.s8 %v245
      %v330 = vunpack.c.2.s8 %v242
      %v331 = vunpack.c.2.s8 %v243
      %v332 = vunpack.c.2.s8 %v244
      %v333 = vunpack.c.2.s8 %v245
      %v334 = vunpack.c.3.s8 %v242
      %v335 = vunpack.c.3.s8 %v243
      %v336 = vunpack.c.3.s8 %v244
      %v337 = vunpack.c.3.s8 %v245
      %v338 = vunpack.c.0.s8 %v246
      %v339 = vunpack.c.0.s8 %v247
      %v340 = vunpack.c.0.s8 %v248
      %v341 = vunpack.c.0.s8 %v249
      %v342 = vunpack.c.1.s8 %v246
      %v343 = vunpack.c.1.s8 %v247
      %v344 = vunpack.c.1.s8 %v248
      %v345 = vunpack.c.1.s8 %v249
      %v346 = vunpack.c.2.s8 %v246
      %v347 = vunpack.c.2.s8 %v247
      %v348 = vunpack.c.2.s8 %v248
      %v349 = vunpack.c.2.s8 %v249
      %v350 = vunpack.c.3.s8 %v246
      %v351 = vunpack.c.3.s8 %v247
      %v352 = vunpack.c.3.s8 %v248
      %v353 = vunpack.c.3.s8 %v249
      %v354 = vunpack.c.0.s8 %v250
      %v355 = vunpack.c.0.s8 %v251
      %v356 = vunpack.c.0.s8 %v252
      %v357 = vunpack.c.0.s8 %v253
      %v358 = vunpack.c.1.s8 %v250
      %v359 = vunpack.c.1.s8 %v251
      %v360 = vunpack.c.1.s8 %v252
      %v361 = vunpack.c.1.s8 %v253
      %v362 = vunpack.c.2.s8 %v250
      %v363 = vunpack.c.2.s8 %v251
      %v364 = vunpack.c.2.s8 %v252
      %v365 = vunpack.c.2.s8 %v253
      %v366 = vunpack.c.3.s8 %v250
      %v367 = vunpack.c.3.s8 %v251
      %v368 = vunpack.c.3.s8 %v252
      %v369 = vunpack.c.3.s8 %v253
      %v370 = vunpack.c.0.s8 %v254
      %v371 = vunpack.c.0.s8 %v255
      %v372 = vunpack.c.0.s8 %v256
      %v373 = vunpack.c.0.s8 %v257
      %v374 = vunpack.c.1.s8 %v254
      %v375 = vunpack.c.1.s8 %v255
      %v376 = vunpack.c.1.s8 %v256
      %v377 = vunpack.c.1.s8 %v257
      %v378 = vunpack.c.2.s8 %v254
      %v379 = vunpack.c.2.s8 %v255
      %v380 = vunpack.c.2.s8 %v256
      %v381 = vunpack.c.2.s8 %v257
      %v382 = vunpack.c.3.s8 %v254
      %v383 = vunpack.c.3.s8 %v255
      %v384 = vunpack.c.3.s8 %v256
      %v385 = vunpack.c.3.s8 %v257
      %v386 = vcvt.s32.f32 %v258
      %v387 = vcvt.s32.f32 %v259
      %v388 = vcvt.s32.f32 %v260
      %v389 = vcvt.s32.f32 %v261
      %v390 = vcvt.s32.f32 %v262
      %v391 = vcvt.s32.f32 %v263
      %v392 = vcvt.s32.f32 %v264
      %v393 = vcvt.s32.f32 %v265
      %v394 = vcvt.s32.f32 %v266
      %v395 = vcvt.s32.f32 %v267
      %v396 = vcvt.s32.f32 %v268
      %v397 = vcvt.s32.f32 %v269
      %v398 = vcvt.s32.f32 %v270
      %v399 = vcvt.s32.f32 %v271
      %v400 = vcvt.s32.f32 %v272
      %v401 = vcvt.s32.f32 %v273
      %v402 = vcvt.s32.f32 %v274
      %v403 = vcvt.s32.f32 %v275
      %v404 = vcvt.s32.f32 %v276
      %v405 = vcvt.s32.f32 %v277
      %v406 = vcvt.s32.f32 %v278
      %v407 = vcvt.s32.f32 %v279
      %v408 = vcvt.s32.f32 %v280
      %v409 = vcvt.s32.f32 %v281
      %v410 = vcvt.s32.f32 %v282
      %v411 = vcvt.s32.f32 %v283
      %v412 = vcvt.s32.f32 %v284
      %v413 = vcvt.s32.f32 %v285
      %v414 = vcvt.s32.f32 %v286
      %v415 = vcvt.s32.f32 %v287
      %v416 = vcvt.s32.f32 %v288
      %v417 = vcvt.s32.f32 %v289
      %v418 = vcvt.s32.f32 %v290
      %v419 = vcvt.s32.f32 %v291
      %v420 = vcvt.s32.f32 %v292
      %v421 = vcvt.s32.f32 %v293
      %v422 = vcvt.s32.f32 %v294
      %v423 = vcvt.s32.f32 %v295
      %v424 = vcvt.s32.f32 %v296
      %v425 = vcvt.s32.f32 %v297
      %v426 = vcvt.s32.f32 %v298
      %v427 = vcvt.s32.f32 %v299
      %v428 = vcvt.s32.f32 %v300
      %v429 = vcvt.s32.f32 %v301
      %v430 = vcvt.s32.f32 %v302
      %v431 = vcvt.s32.f32 %v303
      %v432 = vcvt.s32.f32 %v304
      %v433 = vcvt.s32.f32 %v305
      %v434 = vcvt.s32.f32 %v306
      %v435 = vcvt.s32.f32 %v307
      %v436 = vcvt.s32.f32 %v308
      %v437 = vcvt.s32.f32 %v309
      %v438 = vcvt.s32.f32 %v310
      %v439 = vcvt.s32.f32 %v311
      %v440 = vcvt.s32.f32 %v312
      %v441 = vcvt.s32.f32 %v313
      %v442 = vcvt.s32.f32 %v314
      %v443 = vcvt.s32.f32 %v315
      %v444 = vcvt.s32.f32 %v316
      %v445 = vcvt.s32.f32 %v317
      %v446 = vcvt.s32.f32 %v318
      %v447 = vcvt.s32.f32 %v319
      %v448 = vcvt.s32.f32 %v320
      %v449 = vcvt.s32.f32 %v321
      %v450 = vcvt.s32.f32 %v322
      %v451 = vcvt.s32.f32 %v323
      %v452 = vcvt.s32.f32 %v324
      %v453 = vcvt.s32.f32 %v325
      %v454 = vcvt.s32.f32 %v326
      %v455 = vcvt.s32.f32 %v327
      %v456 = vcvt.s32.f32 %v328
      %v457 = vcvt.s32.f32 %v329
      %v458 = vcvt.s32.f32 %v330
      %v459 = vcvt.s32.f32 %v331
      %v460 = vcvt.s32.f32 %v332
      %v461 = vcvt.s32.f32 %v333
      %v462 = vcvt.s32.f32 %v334
      %v463 = vcvt.s32.f32 %v335
      %v464 = vcvt.s32.f32 %v336
      %v465 = vcvt.s32.f32 %v337
      %v466 = vcvt.s32.f32 %v338
      %v467 = vcvt.s32.f32 %v339
      %v468 = vcvt.s32.f32 %v340
      %v469 = vcvt.s32.f32 %v341
      %v470 = vcvt.s32.f32 %v342
      %v471 = vcvt.s32.f32 %v343
      %v472 = vcvt.s32.f32 %v344
      %v473 = vcvt.s32.f32 %v345
      %v474 = vcvt.s32.f32 %v346
      %v475 = vcvt.s32.f32 %v347
      %v476 = vcvt.s32.f32 %v348
      %v477 = vcvt.s32.f32 %v349
      %v478 = vcvt.s32.f32 %v350
      %v479 = vcvt.s32.f32 %v351
      %v480 = vcvt.s32.f32 %v352
      %v481 = vcvt.s32.f32 %v353
      %v482 = vcvt.s32.f32 %v354
      %v483 = vcvt.s32.f32 %v355
      %v484 = vcvt.s32.f32 %v356
      %v485 = vcvt.s32.f32 %v357
      %v486 = vcvt.s32.f32 %v358
      %v487 = vcvt.s32.f32 %v359
      %v488 = vcvt.s32.f32 %v360
      %v489 = vcvt.s32.f32 %v361
      %v490 = vcvt.s32.f32 %v362
      %v491 = vcvt.s32.f32 %v363
      %v492 = vcvt.s32.f32 %v364
      %v493 = vcvt.s32.f32 %v365
      %v494 = vcvt.s32.f32 %v366
      %v495 = vcvt.s32.f32 %v367
      %v496 = vcvt.s32.f32 %v368
      %v497 = vcvt.s32.f32 %v369
      %v498 = vcvt.s32.f32 %v370
      %v499 = vcvt.s32.f32 %v371
      %v500 = vcvt.s32.f32 %v372
      %v501 = vcvt.s32.f32 %v373
      %v502 = vcvt.s32.f32 %v374
      %v503 = vcvt.s32.f32 %v375
      %v504 = vcvt.s32.f32 %v376
      %v505 = vcvt.s32.f32 %v377
      %v506 = vcvt.s32.f32 %v378
      %v507 = vcvt.s32.f32 %v379
      %v508 = vcvt.s32.f32 %v380
      %v509 = vcvt.s32.f32 %v381
      %v510 = vcvt.s32.f32 %v382
      %v511 = vcvt.s32.f32 %v383
      %v512 = vcvt.s32.f32 %v384
      %v513 = vcvt.s32.f32 %v385
      %v514 = vpack.c.bf16 %v390, %v386
      %v515 = vpack.c.bf16 %v391, %v387
      %v516 = vpack.c.bf16 %v392, %v388
      %v517 = vpack.c.bf16 %v393, %v389
      %v518 = vpack.c.bf16 %v398, %v394
      %v519 = vpack.c.bf16 %v399, %v395
      %v520 = vpack.c.bf16 %v400, %v396
      %v521 = vpack.c.bf16 %v401, %v397
      %v522 = vpack.c.bf16 %v406, %v402
      %v523 = vpack.c.bf16 %v407, %v403
      %v524 = vpack.c.bf16 %v408, %v404
      %v525 = vpack.c.bf16 %v409, %v405
      %v526 = vpack.c.bf16 %v414, %v410
      %v527 = vpack.c.bf16 %v415, %v411
      %v528 = vpack.c.bf16 %v416, %v412
      %v529 = vpack.c.bf16 %v417, %v413
      %v530 = vpack.c.bf16 %v422, %v418
      %v531 = vpack.c.bf16 %v423, %v419
      %v532 = vpack.c.bf16 %v424, %v420
      %v533 = vpack.c.bf16 %v425, %v421
      %v534 = vpack.c.bf16 %v430, %v426
      %v535 = vpack.c.bf16 %v431, %v427
      %v536 = vpack.c.bf16 %v432, %v428
      %v537 = vpack.c.bf16 %v433, %v429
      %v538 = vpack.c.bf16 %v438, %v434
      %v539 = vpack.c.bf16 %v439, %v435
      %v540 = vpack.c.bf16 %v440, %v436
      %v541 = vpack.c.bf16 %v441, %v437
      %v542 = vpack.c.bf16 %v446, %v442
      %v543 = vpack.c.bf16 %v447, %v443
      %v544 = vpack.c.bf16 %v448, %v444
      %v545 = vpack.c.bf16 %v449, %v445
      %v546 = vpack.c.bf16 %v454, %v450
      %v547 = vpack.c.bf16 %v455, %v451
      %v548 = vpack.c.bf16 %v456, %v452
      %v549 = vpack.c.bf16 %v457, %v453
      %v550 = vpack.c.bf16 %v462, %v458
      %v551 = vpack.c.bf16 %v463, %v459
      %v552 = vpack.c.bf16 %v464, %v460
      %v553 = vpack.c.bf16 %v465, %v461
      %v554 = vpack.c.bf16 %v470, %v466
      %v555 = vpack.c.bf16 %v471, %v467
      %v556 = vpack.c.bf16 %v472, %v468
      %v557 = vpack.c.bf16 %v473, %v469
      %v558 = vpack.c.bf16 %v478, %v474
      %v559 = vpack.c.bf16 %v479, %v475
      %v560 = vpack.c.bf16 %v480, %v476
      %v561 = vpack.c.bf16 %v481, %v477
      %v562 = vpack.c.bf16 %v486, %v482
      %v563 = vpack.c.bf16 %v487, %v483
      %v564 = vpack.c.bf16 %v488, %v484
      %v565 = vpack.c.bf16 %v489, %v485
      %v566 = vpack.c.bf16 %v494, %v490
      %v567 = vpack.c.bf16 %v495, %v491
      %v568 = vpack.c.bf16 %v496, %v492
      %v569 = vpack.c.bf16 %v497, %v493
      %v570 = vpack.c.bf16 %v502, %v498
      %v571 = vpack.c.bf16 %v503, %v499
      %v572 = vpack.c.bf16 %v504, %v500
      %v573 = vpack.c.bf16 %v505, %v501
      %v574 = vpack.c.bf16 %v510, %v506
      %v575 = vpack.c.bf16 %v511, %v507
      %v576 = vpack.c.bf16 %v512, %v508
      %v577 = vpack.c.bf16 %v513, %v509
      %v578 = vld [vmem:[%s1] sm:$0xf]
      %v579 = vld [vmem:[%s1 + $0x4] sm:$0xf]
      %v580 = vld [vmem:[%s1 + $0x8] sm:$0xf]
      %v581 = vld [vmem:[%s1 + $0xc] sm:$0xf]
      %v582 = vld [vmem:[%s1 + $0x10] sm:$0xf]
      %v583 = vld [vmem:[%s1 + $0x14] sm:$0xf]
      %v584 = vld [vmem:[%s1 + $0x18] sm:$0xf]
      %v585 = vld [vmem:[%s1 + $0x1c] sm:$0xf]
      %v586 = vld [vmem:[%s1 + $0x20] sm:$0xf]
      %v587 = vld [vmem:[%s1 + $0x24] sm:$0xf]
      %v588 = vld [vmem:[%s1 + $0x28] sm:$0xf]
      %v589 = vld [vmem:[%s1 + $0x2c] sm:$0xf]
      %v590 = vld [vmem:[%s1 + $0x30] sm:$0xf]
      %v591 = vld [vmem:[%s1 + $0x34] sm:$0xf]
      %v592 = vld [vmem:[%s1 + $0x38] sm:$0xf]
      %v593 = vld [vmem:[%s1 + $0x3c] sm:$0xf]
      %v594 = vld [vmem:[%s1 + $0x40] sm:$0xf]
      %v595 = vld [vmem:[%s1 + $0x44] sm:$0xf]
      %v596 = vld [vmem:[%s1 + $0x48] sm:$0xf]
      %v597 = vld [vmem:[%s1 + $0x4c] sm:$0xf]
      %v598 = vld [vmem:[%s1 + $0x50] sm:$0xf]
      %v599 = vld [vmem:[%s1 + $0x54] sm:$0xf]
      %v600 = vld [vmem:[%s1 + $0x58] sm:$0xf]
      %v601 = vld [vmem:[%s1 + $0x5c] sm:$0xf]
      %v602 = vld [vmem:[%s1 + $0x60] sm:$0xf]
      %v603 = vld [vmem:[%s1 + $0x64] sm:$0xf]
      %v604 = vld [vmem:[%s1 + $0x68] sm:$0xf]
      %v605 = vld [vmem:[%s1 + $0x6c] sm:$0xf]
      %v606 = vld [vmem:[%s1 + $0x70] sm:$0xf]
      %v607 = vld [vmem:[%s1 + $0x74] sm:$0xf]
      %v608 = vld [vmem:[%s1 + $0x78] sm:$0xf]
      %v609 = vld [vmem:[%s1 + $0x7c] sm:$0xf]
      %v610 = vld [vmem:[%s1 + $0x80] sm:$0xf]
      %v611 = vld [vmem:[%s1 + $0x84] sm:$0xf]
      %v612 = vld [vmem:[%s1 + $0x88] sm:$0xf]
      %v613 = vld [vmem:[%s1 + $0x8c] sm:$0xf]
      %v614 = vld [vmem:[%s1 + $0x90] sm:$0xf]
      %v615 = vld [vmem:[%s1 + $0x94] sm:$0xf]
      %v616 = vld [vmem:[%s1 + $0x98] sm:$0xf]
      %v617 = vld [vmem:[%s1 + $0x9c] sm:$0xf]
      %v618 = vld [vmem:[%s1 + $0xa0] sm:$0xf]
      %v619 = vld [vmem:[%s1 + $0xa4] sm:$0xf]
      %v620 = vld [vmem:[%s1 + $0xa8] sm:$0xf]
      %v621 = vld [vmem:[%s1 + $0xac] sm:$0xf]
      %v622 = vld [vmem:[%s1 + $0xb0] sm:$0xf]
      %v623 = vld [vmem:[%s1 + $0xb4] sm:$0xf]
      %v624 = vld [vmem:[%s1 + $0xb8] sm:$0xf]
      %v625 = vld [vmem:[%s1 + $0xbc] sm:$0xf]
      %v626 = vld [vmem:[%s1 + $0xc0] sm:$0xf]
      %v627 = vld [vmem:[%s1 + $0xc4] sm:$0xf]
      %v628 = vld [vmem:[%s1 + $0xc8] sm:$0xf]
      %v629 = vld [vmem:[%s1 + $0xcc] sm:$0xf]
      %v630 = vld [vmem:[%s1 + $0xd0] sm:$0xf]
      %v631 = vld [vmem:[%s1 + $0xd4] sm:$0xf]
      %v632 = vld [vmem:[%s1 + $0xd8] sm:$0xf]
      %v633 = vld [vmem:[%s1 + $0xdc] sm:$0xf]
      %v634 = vld [vmem:[%s1 + $0xe0] sm:$0xf]
      %v635 = vld [vmem:[%s1 + $0xe4] sm:$0xf]
      %v636 = vld [vmem:[%s1 + $0xe8] sm:$0xf]
      %v637 = vld [vmem:[%s1 + $0xec] sm:$0xf]
      %v638 = vld [vmem:[%s1 + $0xf0] sm:$0xf]
      %v639 = vld [vmem:[%s1 + $0xf4] sm:$0xf]
      %v640 = vld [vmem:[%s1 + $0xf8] sm:$0xf]
      %v641 = vld [vmem:[%s1 + $0xfc] sm:$0xf]
      %v642 = vld [vmem:[%s218] sm:$0xff]
      %v643 = vld [vmem:[%s218 + $0x8] sm:$0xff]
      %v644 = vld [vmem:[%s218 + $0x10] sm:$0xff]
      %v645 = vld [vmem:[%s218 + $0x18] sm:$0xff]
      %v646 = vld [vmem:[%s218 + $0x20] sm:$0xff]
      %v647 = vld [vmem:[%s218 + $0x28] sm:$0xff]
      %v648 = vld [vmem:[%s218 + $0x30] sm:$0xff]
      %v649 = vld [vmem:[%s218 + $0x38] sm:$0xff]
      %v650 = vld [vmem:[%s218 + $0x40] sm:$0xff]
      %v651 = vld [vmem:[%s218 + $0x48] sm:$0xff]
      %v652 = vld [vmem:[%s218 + $0x50] sm:$0xff]
      %v653 = vld [vmem:[%s218 + $0x58] sm:$0xff]
      %v654 = vld [vmem:[%s218 + $0x60] sm:$0xff]
      %v655 = vld [vmem:[%s218 + $0x68] sm:$0xff]
      %v656 = vld [vmem:[%s218 + $0x70] sm:$0xff]
      %v657 = vld [vmem:[%s218 + $0x78] sm:$0xff]
      %v658 = vld [vmem:[%s218 + $0x80] sm:$0xff]
      %v659 = vld [vmem:[%s218 + $0x88] sm:$0xff]
      %v660 = vld [vmem:[%s218 + $0x90] sm:$0xff]
      %v661 = vld [vmem:[%s218 + $0x98] sm:$0xff]
      %v662 = vld [vmem:[%s218 + $0xa0] sm:$0xff]
      %v663 = vld [vmem:[%s218 + $0xa8] sm:$0xff]
      %v664 = vld [vmem:[%s218 + $0xb0] sm:$0xff]
      %v665 = vld [vmem:[%s218 + $0xb8] sm:$0xff]
      %v666 = vld [vmem:[%s218 + $0xc0] sm:$0xff]
      %v667 = vld [vmem:[%s218 + $0xc8] sm:$0xff]
      %v668 = vld [vmem:[%s218 + $0xd0] sm:$0xff]
      %v669 = vld [vmem:[%s218 + $0xd8] sm:$0xff]
      %v670 = vld [vmem:[%s218 + $0xe0] sm:$0xff]
      %v671 = vld [vmem:[%s218 + $0xe8] sm:$0xff]
      %v672 = vld [vmem:[%s218 + $0xf0] sm:$0xff]
      %v673 = vld [vmem:[%s218 + $0xf8] sm:$0xff]
      %v738 = vunpack.c.l.b16 %v578
      %v739 = vunpack.c.l.b16 %v579
      %v740 = vunpack.c.l.b16 %v580
      %v741 = vunpack.c.l.b16 %v581
      %v742 = vunpack.c.l.b16 %v582
      %v743 = vunpack.c.l.b16 %v583
      %v744 = vunpack.c.l.b16 %v584
      %v745 = vunpack.c.l.b16 %v585
      %v746 = vunpack.c.l.b16 %v586
      %v747 = vunpack.c.l.b16 %v587
      %v748 = vunpack.c.l.b16 %v588
      %v749 = vunpack.c.l.b16 %v589
      %v750 = vunpack.c.l.b16 %v590
      %v751 = vunpack.c.l.b16 %v591
      %v752 = vunpack.c.l.b16 %v592
      %v753 = vunpack.c.l.b16 %v593
      %v754 = vunpack.c.l.b16 %v594
      %v755 = vunpack.c.l.b16 %v595
      %v756 = vunpack.c.l.b16 %v596
      %v757 = vunpack.c.l.b16 %v597
      %v758 = vunpack.c.l.b16 %v598
      %v759 = vunpack.c.l.b16 %v599
      %v760 = vunpack.c.l.b16 %v600
      %v761 = vunpack.c.l.b16 %v601
      %v762 = vunpack.c.l.b16 %v602
      %v763 = vunpack.c.l.b16 %v603
      %v764 = vunpack.c.l.b16 %v604
      %v765 = vunpack.c.l.b16 %v605
      %v766 = vunpack.c.l.b16 %v606
      %v767 = vunpack.c.l.b16 %v607
      %v768 = vunpack.c.l.b16 %v608
      %v769 = vunpack.c.l.b16 %v609
      %v770 = vunpack.c.l.b16 %v610
      %v771 = vunpack.c.l.b16 %v611
      %v772 = vunpack.c.l.b16 %v612
      %v773 = vunpack.c.l.b16 %v613
      %v774 = vunpack.c.l.b16 %v614
      %v775 = vunpack.c.l.b16 %v615
      %v776 = vunpack.c.l.b16 %v616
      %v777 = vunpack.c.l.b16 %v617
      %v778 = vunpack.c.l.b16 %v618
      %v779 = vunpack.c.l.b16 %v619
      %v780 = vunpack.c.l.b16 %v620
      %v781 = vunpack.c.l.b16 %v621
      %v782 = vunpack.c.l.b16 %v622
      %v783 = vunpack.c.l.b16 %v623
      %v784 = vunpack.c.l.b16 %v624
      %v785 = vunpack.c.l.b16 %v625
      %v786 = vunpack.c.l.b16 %v626
      %v787 = vunpack.c.l.b16 %v627
      %v788 = vunpack.c.l.b16 %v628
      %v789 = vunpack.c.l.b16 %v629
      %v790 = vunpack.c.l.b16 %v630
      %v791 = vunpack.c.l.b16 %v631
      %v792 = vunpack.c.l.b16 %v632
      %v793 = vunpack.c.l.b16 %v633
      %v794 = vunpack.c.l.b16 %v634
      %v795 = vunpack.c.l.b16 %v635
      %v796 = vunpack.c.l.b16 %v636
      %v797 = vunpack.c.l.b16 %v637
      %v798 = vunpack.c.l.b16 %v638
      %v799 = vunpack.c.l.b16 %v639
      %v800 = vunpack.c.l.b16 %v640
      %v801 = vunpack.c.l.b16 %v641
      %v802 = vpack.c.b16 %v739, %v738
      %v803 = vpack.c.b16 %v741, %v740
      %v804 = vpack.c.b16 %v743, %v742
      %v805 = vpack.c.b16 %v745, %v744
      %v806 = vpack.c.b16 %v747, %v746
      %v807 = vpack.c.b16 %v749, %v748
      %v808 = vpack.c.b16 %v751, %v750
      %v809 = vpack.c.b16 %v753, %v752
      %v810 = vpack.c.b16 %v755, %v754
      %v811 = vpack.c.b16 %v757, %v756
      %v812 = vpack.c.b16 %v759, %v758
      %v813 = vpack.c.b16 %v761, %v760
      %v814 = vpack.c.b16 %v763, %v762
      %v815 = vpack.c.b16 %v765, %v764
      %v816 = vpack.c.b16 %v767, %v766
      %v817 = vpack.c.b16 %v769, %v768
      %v818 = vpack.c.b16 %v771, %v770
      %v819 = vpack.c.b16 %v773, %v772
      %v820 = vpack.c.b16 %v775, %v774
      %v821 = vpack.c.b16 %v777, %v776
      %v822 = vpack.c.b16 %v779, %v778
      %v823 = vpack.c.b16 %v781, %v780
      %v824 = vpack.c.b16 %v783, %v782
      %v825 = vpack.c.b16 %v785, %v784
      %v826 = vpack.c.b16 %v787, %v786
      %v827 = vpack.c.b16 %v789, %v788
      %v828 = vpack.c.b16 %v791, %v790
      %v829 = vpack.c.b16 %v793, %v792
      %v830 = vpack.c.b16 %v795, %v794
      %v831 = vpack.c.b16 %v797, %v796
      %v832 = vpack.c.b16 %v799, %v798
      %v833 = vpack.c.b16 %v801, %v800
      %866 = vmatpush.bf16.msra.mxu0 %v809
      %867 = vmatpush.bf16.msra.mxu0 %v808
      %868 = vmatpush.bf16.msra.mxu0 %v807
      %869 = vmatpush.bf16.msra.mxu0 %v806
      %870 = vmatpush.bf16.msra.mxu0 %v805
      %871 = vmatpush.bf16.msra.mxu0 %v804
      %872 = vmatpush.bf16.msra.mxu0 %v803
      %873 = vmatpush.bf16.msra.mxu0 %v802
      %874 = vmatmul.bf16.gmra.mxu0 %v514
      %v875 = vpop.f32.mrf.mxu0
      %v876 = vadd.f32 %v642, %v875
      %v877 = vpop.f32.mrf.mxu0
      %v878 = vadd.f32 %v643, %v877
      %879 = vmatmul.bf16.gmra.mxu0 %v518
      %v880 = vpop.f32.mrf.mxu0
      %v881 = vadd.f32 %v644, %v880
      %v882 = vpop.f32.mrf.mxu0
      %v883 = vadd.f32 %v645, %v882
      %884 = vmatmul.bf16.gmra.mxu0 %v522
      %v885 = vpop.f32.mrf.mxu0
      %v886 = vadd.f32 %v646, %v885
      %v887 = vpop.f32.mrf.mxu0
      %v888 = vadd.f32 %v647, %v887
      %889 = vmatmul.bf16.gmra.mxu0 %v526
      %v890 = vpop.f32.mrf.mxu0
      %v891 = vadd.f32 %v648, %v890
      %v892 = vpop.f32.mrf.mxu0
      %v893 = vadd.f32 %v649, %v892
      %894 = vmatmul.bf16.gmra.mxu0 %v530
      %v895 = vpop.f32.mrf.mxu0
      %v896 = vadd.f32 %v650, %v895
      %v897 = vpop.f32.mrf.mxu0
      %v898 = vadd.f32 %v651, %v897
      %899 = vmatmul.bf16.gmra.mxu0 %v534
      %v900 = vpop.f32.mrf.mxu0
      %v901 = vadd.f32 %v652, %v900
      %v902 = vpop.f32.mrf.mxu0
      %v903 = vadd.f32 %v653, %v902
      %904 = vmatmul.bf16.gmra.mxu0 %v538
      %v905 = vpop.f32.mrf.mxu0
      %v906 = vadd.f32 %v654, %v905
      %v907 = vpop.f32.mrf.mxu0
      %v908 = vadd.f32 %v655, %v907
      %909 = vmatmul.bf16.gmra.mxu0 %v542
      %v910 = vpop.f32.mrf.mxu0
      %v911 = vadd.f32 %v656, %v910
      %v912 = vpop.f32.mrf.mxu0
      %v913 = vadd.f32 %v657, %v912
      %914 = vmatmul.bf16.gmra.mxu0 %v546
      %v915 = vpop.f32.mrf.mxu0
      %v916 = vadd.f32 %v658, %v915
      %v917 = vpop.f32.mrf.mxu0
      %v918 = vadd.f32 %v659, %v917
      %919 = vmatmul.bf16.gmra.mxu0 %v550
      %v920 = vpop.f32.mrf.mxu0
      %v921 = vadd.f32 %v660, %v920
      %v922 = vpop.f32.mrf.mxu0
      %v923 = vadd.f32 %v661, %v922
      %924 = vmatmul.bf16.gmra.mxu0 %v554
      %v925 = vpop.f32.mrf.mxu0
      %v926 = vadd.f32 %v662, %v925
      %v927 = vpop.f32.mrf.mxu0
      %v928 = vadd.f32 %v663, %v927
      %929 = vmatmul.bf16.gmra.mxu0 %v558
      %v930 = vpop.f32.mrf.mxu0
      %v931 = vadd.f32 %v664, %v930
      %v932 = vpop.f32.mrf.mxu0
      %v933 = vadd.f32 %v665, %v932
      %934 = vmatmul.bf16.gmra.mxu0 %v562
      %v935 = vpop.f32.mrf.mxu0
      %v936 = vadd.f32 %v666, %v935
      %v937 = vpop.f32.mrf.mxu0
      %v938 = vadd.f32 %v667, %v937
      %939 = vmatmul.bf16.gmra.mxu0 %v566
      %v940 = vpop.f32.mrf.mxu0
      %v941 = vadd.f32 %v668, %v940
      %v942 = vpop.f32.mrf.mxu0
      %v943 = vadd.f32 %v669, %v942
      %944 = vmatmul.bf16.gmra.mxu0 %v570
      %v945 = vpop.f32.mrf.mxu0
      %v946 = vadd.f32 %v670, %v945
      %v947 = vpop.f32.mrf.mxu0
      %v948 = vadd.f32 %v671, %v947
      %949 = vmatmul.bf16.gmra.mxu0 %v574
      %v950 = vpop.f32.mrf.mxu0
      %v951 = vadd.f32 %v672, %v950
      %v952 = vpop.f32.mrf.mxu0
      %v953 = vadd.f32 %v673, %v952
      %954 = vdwg.mxu0
      %955 = vmatpush.bf16.msra.mxu0 %v817
      %956 = vmatpush.bf16.msra.mxu0 %v816
      %957 = vmatpush.bf16.msra.mxu0 %v815
      %958 = vmatpush.bf16.msra.mxu0 %v814
      %959 = vmatpush.bf16.msra.mxu0 %v813
      %960 = vmatpush.bf16.msra.mxu0 %v812
      %961 = vmatpush.bf16.msra.mxu0 %v811
      %962 = vmatpush.bf16.msra.mxu0 %v810
      %963 = vmatmul.bf16.gmra.mxu0 %v515
      %v964 = vpop.f32.mrf.mxu0
      %v965 = vadd.f32 %v876, %v964
      %v966 = vpop.f32.mrf.mxu0
      %v967 = vadd.f32 %v878, %v966
      %968 = vmatmul.bf16.gmra.mxu0 %v519
      %v969 = vpop.f32.mrf.mxu0
      %v970 = vadd.f32 %v881, %v969
      %v971 = vpop.f32.mrf.mxu0
      %v972 = vadd.f32 %v883, %v971
      %973 = vmatmul.bf16.gmra.mxu0 %v523
      %v974 = vpop.f32.mrf.mxu0
      %v975 = vadd.f32 %v886, %v974
      %v976 = vpop.f32.mrf.mxu0
      %v977 = vadd.f32 %v888, %v976
      %978 = vmatmul.bf16.gmra.mxu0 %v527
      %v979 = vpop.f32.mrf.mxu0
      %v980 = vadd.f32 %v891, %v979
      %v981 = vpop.f32.mrf.mxu0
      %v982 = vadd.f32 %v893, %v981
      %983 = vmatmul.bf16.gmra.mxu0 %v531
      %v984 = vpop.f32.mrf.mxu0
      %v985 = vadd.f32 %v896, %v984
      %v986 = vpop.f32.mrf.mxu0
      %v987 = vadd.f32 %v898, %v986
      %988 = vmatmul.bf16.gmra.mxu0 %v535
      %v989 = vpop.f32.mrf.mxu0
      %v990 = vadd.f32 %v901, %v989
      %v991 = vpop.f32.mrf.mxu0
      %v992 = vadd.f32 %v903, %v991
      %993 = vmatmul.bf16.gmra.mxu0 %v539
      %v994 = vpop.f32.mrf.mxu0
      %v995 = vadd.f32 %v906, %v994
      %v996 = vpop.f32.mrf.mxu0
      %v997 = vadd.f32 %v908, %v996
      %998 = vmatmul.bf16.gmra.mxu0 %v543
      %v999 = vpop.f32.mrf.mxu0
      %v1000 = vadd.f32 %v911, %v999
      %v1001 = vpop.f32.mrf.mxu0
      %v1002 = vadd.f32 %v913, %v1001
      %1003 = vmatmul.bf16.gmra.mxu0 %v547
      %v1004 = vpop.f32.mrf.mxu0
      %v1005 = vadd.f32 %v916, %v1004
      %v1006 = vpop.f32.mrf.mxu0
      %v1007 = vadd.f32 %v918, %v1006
      %1008 = vmatmul.bf16.gmra.mxu0 %v551
      %v1009 = vpop.f32.mrf.mxu0
      %v1010 = vadd.f32 %v921, %v1009
      %v1011 = vpop.f32.mrf.mxu0
      %v1012 = vadd.f32 %v923, %v1011
      %1013 = vmatmul.bf16.gmra.mxu0 %v555
      %v1014 = vpop.f32.mrf.mxu0
      %v1015 = vadd.f32 %v926, %v1014
      %v1016 = vpop.f32.mrf.mxu0
      %v1017 = vadd.f32 %v928, %v1016
      %1018 = vmatmul.bf16.gmra.mxu0 %v559
      %v1019 = vpop.f32.mrf.mxu0
      %v1020 = vadd.f32 %v931, %v1019
      %v1021 = vpop.f32.mrf.mxu0
      %v1022 = vadd.f32 %v933, %v1021
      %1023 = vmatmul.bf16.gmra.mxu0 %v563
      %v1024 = vpop.f32.mrf.mxu0
      %v1025 = vadd.f32 %v936, %v1024
      %v1026 = vpop.f32.mrf.mxu0
      %v1027 = vadd.f32 %v938, %v1026
      %1028 = vmatmul.bf16.gmra.mxu0 %v567
      %v1029 = vpop.f32.mrf.mxu0
      %v1030 = vadd.f32 %v941, %v1029
      %v1031 = vpop.f32.mrf.mxu0
      %v1032 = vadd.f32 %v943, %v1031
      %1033 = vmatmul.bf16.gmra.mxu0 %v571
      %v1034 = vpop.f32.mrf.mxu0
      %v1035 = vadd.f32 %v946, %v1034
      %v1036 = vpop.f32.mrf.mxu0
      %v1037 = vadd.f32 %v948, %v1036
      %1038 = vmatmul.bf16.gmra.mxu0 %v575
      %v1039 = vpop.f32.mrf.mxu0
      %v1040 = vadd.f32 %v951, %v1039
      %v1041 = vpop.f32.mrf.mxu0
      %v1042 = vadd.f32 %v953, %v1041
      %1043 = vdwg.mxu0
      %1044 = vmatpush.bf16.msra.mxu0 %v825
      %1045 = vmatpush.bf16.msra.mxu0 %v824
      %1046 = vmatpush.bf16.msra.mxu0 %v823
      %1047 = vmatpush.bf16.msra.mxu0 %v822
      %1048 = vmatpush.bf16.msra.mxu0 %v821
      %1049 = vmatpush.bf16.msra.mxu0 %v820
      %1050 = vmatpush.bf16.msra.mxu0 %v819
      %1051 = vmatpush.bf16.msra.mxu0 %v818
      %1052 = vmatmul.bf16.gmra.mxu0 %v516
      %v1053 = vpop.f32.mrf.mxu0
      %v1054 = vadd.f32 %v965, %v1053
      %v1055 = vpop.f32.mrf.mxu0
      %v1056 = vadd.f32 %v967, %v1055
      %1057 = vmatmul.bf16.gmra.mxu0 %v520
      %v1058 = vpop.f32.mrf.mxu0
      %v1059 = vadd.f32 %v970, %v1058
      %v1060 = vpop.f32.mrf.mxu0
      %v1061 = vadd.f32 %v972, %v1060
      %1062 = vmatmul.bf16.gmra.mxu0 %v524
      %v1063 = vpop.f32.mrf.mxu0
      %v1064 = vadd.f32 %v975, %v1063
      %v1065 = vpop.f32.mrf.mxu0
      %v1066 = vadd.f32 %v977, %v1065
      %1067 = vmatmul.bf16.gmra.mxu0 %v528
      %v1068 = vpop.f32.mrf.mxu0
      %v1069 = vadd.f32 %v980, %v1068
      %v1070 = vpop.f32.mrf.mxu0
      %v1071 = vadd.f32 %v982, %v1070
      %1072 = vmatmul.bf16.gmra.mxu0 %v532
      %v1073 = vpop.f32.mrf.mxu0
      %v1074 = vadd.f32 %v985, %v1073
      %v1075 = vpop.f32.mrf.mxu0
      %v1076 = vadd.f32 %v987, %v1075
      %1077 = vmatmul.bf16.gmra.mxu0 %v536
      %v1078 = vpop.f32.mrf.mxu0
      %v1079 = vadd.f32 %v990, %v1078
      %v1080 = vpop.f32.mrf.mxu0
      %v1081 = vadd.f32 %v992, %v1080
      %1082 = vmatmul.bf16.gmra.mxu0 %v540
      %v1083 = vpop.f32.mrf.mxu0
      %v1084 = vadd.f32 %v995, %v1083
      %v1085 = vpop.f32.mrf.mxu0
      %v1086 = vadd.f32 %v997, %v1085
      %1087 = vmatmul.bf16.gmra.mxu0 %v544
      %v1088 = vpop.f32.mrf.mxu0
      %v1089 = vadd.f32 %v1000, %v1088
      %v1090 = vpop.f32.mrf.mxu0
      %v1091 = vadd.f32 %v1002, %v1090
      %1092 = vmatmul.bf16.gmra.mxu0 %v548
      %v1093 = vpop.f32.mrf.mxu0
      %v1094 = vadd.f32 %v1005, %v1093
      %v1095 = vpop.f32.mrf.mxu0
      %v1096 = vadd.f32 %v1007, %v1095
      %1097 = vmatmul.bf16.gmra.mxu0 %v552
      %v1098 = vpop.f32.mrf.mxu0
      %v1099 = vadd.f32 %v1010, %v1098
      %v1100 = vpop.f32.mrf.mxu0
      %v1101 = vadd.f32 %v1012, %v1100
      %1102 = vmatmul.bf16.gmra.mxu0 %v556
      %v1103 = vpop.f32.mrf.mxu0
      %v1104 = vadd.f32 %v1015, %v1103
      %v1105 = vpop.f32.mrf.mxu0
      %v1106 = vadd.f32 %v1017, %v1105
      %1107 = vmatmul.bf16.gmra.mxu0 %v560
      %v1108 = vpop.f32.mrf.mxu0
      %v1109 = vadd.f32 %v1020, %v1108
      %v1110 = vpop.f32.mrf.mxu0
      %v1111 = vadd.f32 %v1022, %v1110
      %1112 = vmatmul.bf16.gmra.mxu0 %v564
      %v1113 = vpop.f32.mrf.mxu0
      %v1114 = vadd.f32 %v1025, %v1113
      %v1115 = vpop.f32.mrf.mxu0
      %v1116 = vadd.f32 %v1027, %v1115
      %1117 = vmatmul.bf16.gmra.mxu0 %v568
      %v1118 = vpop.f32.mrf.mxu0
      %v1119 = vadd.f32 %v1030, %v1118
      %v1120 = vpop.f32.mrf.mxu0
      %v1121 = vadd.f32 %v1032, %v1120
      %1122 = vmatmul.bf16.gmra.mxu0 %v572
      %v1123 = vpop.f32.mrf.mxu0
      %v1124 = vadd.f32 %v1035, %v1123
      %v1125 = vpop.f32.mrf.mxu0
      %v1126 = vadd.f32 %v1037, %v1125
      %1127 = vmatmul.bf16.gmra.mxu0 %v576
      %v1128 = vpop.f32.mrf.mxu0
      %v1129 = vadd.f32 %v1040, %v1128
      %v1130 = vpop.f32.mrf.mxu0
      %v1131 = vadd.f32 %v1042, %v1130
      %1132 = vdwg.mxu0
      %1133 = vmatpush.bf16.msra.mxu0 %v833
      %1134 = vmatpush.bf16.msra.mxu0 %v832
      %1135 = vmatpush.bf16.msra.mxu0 %v831
      %1136 = vmatpush.bf16.msra.mxu0 %v830
      %1137 = vmatpush.bf16.msra.mxu0 %v829
      %1138 = vmatpush.bf16.msra.mxu0 %v828
      %1139 = vmatpush.bf16.msra.mxu0 %v827
      %1140 = vmatpush.bf16.msra.mxu0 %v826
      %1141 = vmatmul.bf16.gmra.mxu0 %v517
      %v1142 = vpop.f32.mrf.mxu0
      %v1143 = vadd.f32 %v1054, %v1142
      %v1144 = vpop.f32.mrf.mxu0
      %v1145 = vadd.f32 %v1056, %v1144
      %1146 = vmatmul.bf16.gmra.mxu0 %v521
      %v1147 = vpop.f32.mrf.mxu0
      %v1148 = vadd.f32 %v1059, %v1147
      %v1149 = vpop.f32.mrf.mxu0
      %v1150 = vadd.f32 %v1061, %v1149
      %1151 = vmatmul.bf16.gmra.mxu0 %v525
      %v1152 = vpop.f32.mrf.mxu0
      %v1153 = vadd.f32 %v1064, %v1152
      %v1154 = vpop.f32.mrf.mxu0
      %v1155 = vadd.f32 %v1066, %v1154
      %1156 = vmatmul.bf16.gmra.mxu0 %v529
      %v1157 = vpop.f32.mrf.mxu0
      %v1158 = vadd.f32 %v1069, %v1157
      %v1159 = vpop.f32.mrf.mxu0
      %v1160 = vadd.f32 %v1071, %v1159
      %1161 = vmatmul.bf16.gmra.mxu0 %v533
      %v1162 = vpop.f32.mrf.mxu0
      %v1163 = vadd.f32 %v1074, %v1162
      %v1164 = vpop.f32.mrf.mxu0
      %v1165 = vadd.f32 %v1076, %v1164
      %1166 = vmatmul.bf16.gmra.mxu0 %v537
      %v1167 = vpop.f32.mrf.mxu0
      %v1168 = vadd.f32 %v1079, %v1167
      %v1169 = vpop.f32.mrf.mxu0
      %v1170 = vadd.f32 %v1081, %v1169
      %1171 = vmatmul.bf16.gmra.mxu0 %v541
      %v1172 = vpop.f32.mrf.mxu0
      %v1173 = vadd.f32 %v1084, %v1172
      %v1174 = vpop.f32.mrf.mxu0
      %v1175 = vadd.f32 %v1086, %v1174
      %1176 = vmatmul.bf16.gmra.mxu0 %v545
      %v1177 = vpop.f32.mrf.mxu0
      %v1178 = vadd.f32 %v1089, %v1177
      %v1179 = vpop.f32.mrf.mxu0
      %v1180 = vadd.f32 %v1091, %v1179
      %1181 = vmatmul.bf16.gmra.mxu0 %v549
      %v1182 = vpop.f32.mrf.mxu0
      %v1183 = vadd.f32 %v1094, %v1182
      %v1184 = vpop.f32.mrf.mxu0
      %v1185 = vadd.f32 %v1096, %v1184
      %1186 = vmatmul.bf16.gmra.mxu0 %v553
      %v1187 = vpop.f32.mrf.mxu0
      %v1188 = vadd.f32 %v1099, %v1187
      %v1189 = vpop.f32.mrf.mxu0
      %v1190 = vadd.f32 %v1101, %v1189
      %1191 = vmatmul.bf16.gmra.mxu0 %v557
      %v1192 = vpop.f32.mrf.mxu0
      %v1193 = vadd.f32 %v1104, %v1192
      %v1194 = vpop.f32.mrf.mxu0
      %v1195 = vadd.f32 %v1106, %v1194
      %1196 = vmatmul.bf16.gmra.mxu0 %v561
      %v1197 = vpop.f32.mrf.mxu0
      %v1198 = vadd.f32 %v1109, %v1197
      %v1199 = vpop.f32.mrf.mxu0
      %v1200 = vadd.f32 %v1111, %v1199
      %1201 = vmatmul.bf16.gmra.mxu0 %v565
      %v1202 = vpop.f32.mrf.mxu0
      %v1203 = vadd.f32 %v1114, %v1202
      %v1204 = vpop.f32.mrf.mxu0
      %v1205 = vadd.f32 %v1116, %v1204
      %1206 = vmatmul.bf16.gmra.mxu0 %v569
      %v1207 = vpop.f32.mrf.mxu0
      %v1208 = vadd.f32 %v1119, %v1207
      %v1209 = vpop.f32.mrf.mxu0
      %v1210 = vadd.f32 %v1121, %v1209
      %1211 = vmatmul.bf16.gmra.mxu0 %v573
      %v1212 = vpop.f32.mrf.mxu0
      %v1213 = vadd.f32 %v1124, %v1212
      %v1214 = vpop.f32.mrf.mxu0
      %v1215 = vadd.f32 %v1126, %v1214
      %1216 = vmatmul.bf16.gmra.mxu0 %v577
      %v1217 = vpop.f32.mrf.mxu0
      %v1218 = vadd.f32 %v1129, %v1217
      %v1219 = vpop.f32.mrf.mxu0
      %v1220 = vadd.f32 %v1131, %v1219
      %1221 = vdwg.mxu0
      %v1222 = vld [vmem:[%s3] sm:$0x1]
      %v1224 = vperm.slane %v1222, 0
      %v1226 = vadd.f32 %v1143, %v1224
      %v1227 = vadd.f32 %v1145, %v1224
      %v1228 = vadd.f32 %v1148, %v1224
      %v1229 = vadd.f32 %v1150, %v1224
      %v1230 = vadd.f32 %v1153, %v1224
      %v1231 = vadd.f32 %v1155, %v1224
      %v1232 = vadd.f32 %v1158, %v1224
      %v1233 = vadd.f32 %v1160, %v1224
      %v1234 = vadd.f32 %v1163, %v1224
      %v1235 = vadd.f32 %v1165, %v1224
      %v1236 = vadd.f32 %v1168, %v1224
      %v1237 = vadd.f32 %v1170, %v1224
      %v1238 = vadd.f32 %v1173, %v1224
      %v1239 = vadd.f32 %v1175, %v1224
      %v1240 = vadd.f32 %v1178, %v1224
      %v1241 = vadd.f32 %v1180, %v1224
      %v1242 = vadd.f32 %v1183, %v1224
      %v1243 = vadd.f32 %v1185, %v1224
      %v1244 = vadd.f32 %v1188, %v1224
      %v1245 = vadd.f32 %v1190, %v1224
      %v1246 = vadd.f32 %v1193, %v1224
      %v1247 = vadd.f32 %v1195, %v1224
      %v1248 = vadd.f32 %v1198, %v1224
      %v1249 = vadd.f32 %v1200, %v1224
      %v1250 = vadd.f32 %v1203, %v1224
      %v1251 = vadd.f32 %v1205, %v1224
      %v1252 = vadd.f32 %v1208, %v1224
      %v1253 = vadd.f32 %v1210, %v1224
      %v1254 = vadd.f32 %v1213, %v1224
      %v1255 = vadd.f32 %v1215, %v1224
      %v1256 = vadd.f32 %v1218, %v1224
      %v1257 = vadd.f32 %v1220, %v1224
      %1258 = vmax.xlane.f32.xlu0 %v1226
      %v1259 = vpop.xlane.xlu0 %1258
      %1260 = vmax.xlane.f32.xlu0 %v1227
      %v1261 = vpop.xlane.xlu0 %1260
      %1262 = vmax.xlane.f32.xlu0 %v1228
      %v1263 = vpop.xlane.xlu0 %1262
      %1264 = vmax.xlane.f32.xlu0 %v1229
      %v1265 = vpop.xlane.xlu0 %1264
      %1266 = vmax.xlane.f32.xlu0 %v1230
      %v1267 = vpop.xlane.xlu0 %1266
      %1268 = vmax.xlane.f32.xlu0 %v1231
      %v1269 = vpop.xlane.xlu0 %1268
      %1270 = vmax.xlane.f32.xlu0 %v1232
      %v1271 = vpop.xlane.xlu0 %1270
      %1272 = vmax.xlane.f32.xlu0 %v1233
      %v1273 = vpop.xlane.xlu0 %1272
      %1274 = vmax.xlane.f32.xlu0 %v1234
      %v1275 = vpop.xlane.xlu0 %1274
      %1276 = vmax.xlane.f32.xlu0 %v1235
      %v1277 = vpop.xlane.xlu0 %1276
      %1278 = vmax.xlane.f32.xlu0 %v1236
      %v1279 = vpop.xlane.xlu0 %1278
      %1280 = vmax.xlane.f32.xlu0 %v1237
      %v1281 = vpop.xlane.xlu0 %1280
      %1282 = vmax.xlane.f32.xlu0 %v1238
      %v1283 = vpop.xlane.xlu0 %1282
      %1284 = vmax.xlane.f32.xlu0 %v1239
      %v1285 = vpop.xlane.xlu0 %1284
      %1286 = vmax.xlane.f32.xlu0 %v1240
      %v1287 = vpop.xlane.xlu0 %1286
      %1288 = vmax.xlane.f32.xlu0 %v1241
      %v1289 = vpop.xlane.xlu0 %1288
      %1290 = vmax.xlane.f32.xlu0 %v1242
      %v1291 = vpop.xlane.xlu0 %1290
      %1292 = vmax.xlane.f32.xlu0 %v1243
      %v1293 = vpop.xlane.xlu0 %1292
      %1294 = vmax.xlane.f32.xlu0 %v1244
      %v1295 = vpop.xlane.xlu0 %1294
      %1296 = vmax.xlane.f32.xlu0 %v1245
      %v1297 = vpop.xlane.xlu0 %1296
      %1298 = vmax.xlane.f32.xlu0 %v1246
      %v1299 = vpop.xlane.xlu0 %1298
      %1300 = vmax.xlane.f32.xlu0 %v1247
      %v1301 = vpop.xlane.xlu0 %1300
      %1302 = vmax.xlane.f32.xlu0 %v1248
      %v1303 = vpop.xlane.xlu0 %1302
      %1304 = vmax.xlane.f32.xlu0 %v1249
      %v1305 = vpop.xlane.xlu0 %1304
      %1306 = vmax.xlane.f32.xlu0 %v1250
      %v1307 = vpop.xlane.xlu0 %1306
      %1308 = vmax.xlane.f32.xlu0 %v1251
      %v1309 = vpop.xlane.xlu0 %1308
      %1310 = vmax.xlane.f32.xlu0 %v1252
      %v1311 = vpop.xlane.xlu0 %1310
      %1312 = vmax.xlane.f32.xlu0 %v1253
      %v1313 = vpop.xlane.xlu0 %1312
      %1314 = vmax.xlane.f32.xlu0 %v1254
      %v1315 = vpop.xlane.xlu0 %1314
      %1316 = vmax.xlane.f32.xlu0 %v1255
      %v1317 = vpop.xlane.xlu0 %1316
      %1318 = vmax.xlane.f32.xlu0 %v1256
      %v1319 = vpop.xlane.xlu0 %1318
      %1320 = vmax.xlane.f32.xlu0 %v1257
      %v1321 = vpop.xlane.xlu0 %1320
      %v1322 = vsub.f32 %v1226, %v1259
      %v1323 = vsub.f32 %v1227, %v1261
      %v1324 = vsub.f32 %v1228, %v1263
      %v1325 = vsub.f32 %v1229, %v1265
      %v1326 = vsub.f32 %v1230, %v1267
      %v1327 = vsub.f32 %v1231, %v1269
      %v1328 = vsub.f32 %v1232, %v1271
      %v1329 = vsub.f32 %v1233, %v1273
      %v1330 = vsub.f32 %v1234, %v1275
      %v1331 = vsub.f32 %v1235, %v1277
      %v1332 = vsub.f32 %v1236, %v1279
      %v1333 = vsub.f32 %v1237, %v1281
      %v1334 = vsub.f32 %v1238, %v1283
      %v1335 = vsub.f32 %v1239, %v1285
      %v1336 = vsub.f32 %v1240, %v1287
      %v1337 = vsub.f32 %v1241, %v1289
      %v1338 = vsub.f32 %v1242, %v1291
      %v1339 = vsub.f32 %v1243, %v1293
      %v1340 = vsub.f32 %v1244, %v1295
      %v1341 = vsub.f32 %v1245, %v1297
      %v1342 = vsub.f32 %v1246, %v1299
      %v1343 = vsub.f32 %v1247, %v1301
      %v1344 = vsub.f32 %v1248, %v1303
      %v1345 = vsub.f32 %v1249, %v1305
      %v1346 = vsub.f32 %v1250, %v1307
      %v1347 = vsub.f32 %v1251, %v1309
      %v1348 = vsub.f32 %v1252, %v1311
      %v1349 = vsub.f32 %v1253, %v1313
      %v1350 = vsub.f32 %v1254, %v1315
      %v1351 = vsub.f32 %v1255, %v1317
      %v1352 = vsub.f32 %v1256, %v1319
      %v1353 = vsub.f32 %v1257, %v1321
      %v1354 = vmul.f32 %v1322, 1.442695
      %v1355 = vpow.pop %v1354
      %v1356 = vmul.f32 %v1323, 1.442695
      %v1357 = vpow.pop %v1356
      %v1358 = vmul.f32 %v1324, 1.442695
      %v1359 = vpow.pop %v1358
      %v1360 = vmul.f32 %v1325, 1.442695
      %v1361 = vpow.pop %v1360
      %v1362 = vmul.f32 %v1326, 1.442695
      %v1363 = vpow.pop %v1362
      %v1364 = vmul.f32 %v1327, 1.442695
      %v1365 = vpow.pop %v1364
      %v1366 = vmul.f32 %v1328, 1.442695
      %v1367 = vpow.pop %v1366
      %v1368 = vmul.f32 %v1329, 1.442695
      %v1369 = vpow.pop %v1368
      %v1370 = vmul.f32 %v1330, 1.442695
      %v1371 = vpow.pop %v1370
      %v1372 = vmul.f32 %v1331, 1.442695
      %v1373 = vpow.pop %v1372
      %v1374 = vmul.f32 %v1332, 1.442695
      %v1375 = vpow.pop %v1374
      %v1376 = vmul.f32 %v1333, 1.442695
      %v1377 = vpow.pop %v1376
      %v1378 = vmul.f32 %v1334, 1.442695
      %v1379 = vpow.pop %v1378
      %v1380 = vmul.f32 %v1335, 1.442695
      %v1381 = vpow.pop %v1380
      %v1382 = vmul.f32 %v1336, 1.442695
      %v1383 = vpow.pop %v1382
      %v1384 = vmul.f32 %v1337, 1.442695
      %v1385 = vpow.pop %v1384
      %v1386 = vmul.f32 %v1338, 1.442695
      %v1387 = vpow.pop %v1386
      %v1388 = vmul.f32 %v1339, 1.442695
      %v1389 = vpow.pop %v1388
      %v1390 = vmul.f32 %v1340, 1.442695
      %v1391 = vpow.pop %v1390
      %v1392 = vmul.f32 %v1341, 1.442695
      %v1393 = vpow.pop %v1392
      %v1394 = vmul.f32 %v1342, 1.442695
      %v1395 = vpow.pop %v1394
      %v1396 = vmul.f32 %v1343, 1.442695
      %v1397 = vpow.pop %v1396
      %v1398 = vmul.f32 %v1344, 1.442695
      %v1399 = vpow.pop %v1398
      %v1400 = vmul.f32 %v1345, 1.442695
      %v1401 = vpow.pop %v1400
      %v1402 = vmul.f32 %v1346, 1.442695
      %v1403 = vpow.pop %v1402
      %v1404 = vmul.f32 %v1347, 1.442695
      %v1405 = vpow.pop %v1404
      %v1406 = vmul.f32 %v1348, 1.442695
      %v1407 = vpow.pop %v1406
      %v1408 = vmul.f32 %v1349, 1.442695
      %v1409 = vpow.pop %v1408
      %v1410 = vmul.f32 %v1350, 1.442695
      %v1411 = vpow.pop %v1410
      %v1412 = vmul.f32 %v1351, 1.442695
      %v1413 = vpow.pop %v1412
      %v1414 = vmul.f32 %v1352, 1.442695
      %v1415 = vpow.pop %v1414
      %v1416 = vmul.f32 %v1353, 1.442695
      %v1417 = vpow.pop %v1416
      %1418 = vadd.xlane.f32.xlu0 %v1355
      %v1419 = vpop.xlane.xlu0 %1418
      %1420 = vadd.xlane.f32.xlu0 %v1357
      %v1421 = vpop.xlane.xlu0 %1420
      %1422 = vadd.xlane.f32.xlu0 %v1359
      %v1423 = vpop.xlane.xlu0 %1422
      %1424 = vadd.xlane.f32.xlu0 %v1361
      %v1425 = vpop.xlane.xlu0 %1424
      %1426 = vadd.xlane.f32.xlu0 %v1363
      %v1427 = vpop.xlane.xlu0 %1426
      %1428 = vadd.xlane.f32.xlu0 %v1365
      %v1429 = vpop.xlane.xlu0 %1428
      %1430 = vadd.xlane.f32.xlu0 %v1367
      %v1431 = vpop.xlane.xlu0 %1430
      %1432 = vadd.xlane.f32.xlu0 %v1369
      %v1433 = vpop.xlane.xlu0 %1432
      %1434 = vadd.xlane.f32.xlu0 %v1371
      %v1435 = vpop.xlane.xlu0 %1434
      %1436 = vadd.xlane.f32.xlu0 %v1373
      %v1437 = vpop.xlane.xlu0 %1436
      %1438 = vadd.xlane.f32.xlu0 %v1375
      %v1439 = vpop.xlane.xlu0 %1438
      %1440 = vadd.xlane.f32.xlu0 %v1377
      %v1441 = vpop.xlane.xlu0 %1440
      %1442 = vadd.xlane.f32.xlu0 %v1379
      %v1443 = vpop.xlane.xlu0 %1442
      %1444 = vadd.xlane.f32.xlu0 %v1381
      %v1445 = vpop.xlane.xlu0 %1444
      %1446 = vadd.xlane.f32.xlu0 %v1383
      %v1447 = vpop.xlane.xlu0 %1446
      %1448 = vadd.xlane.f32.xlu0 %v1385
      %v1449 = vpop.xlane.xlu0 %1448
      %1450 = vadd.xlane.f32.xlu0 %v1387
      %v1451 = vpop.xlane.xlu0 %1450
      %1452 = vadd.xlane.f32.xlu0 %v1389
      %v1453 = vpop.xlane.xlu0 %1452
      %1454 = vadd.xlane.f32.xlu0 %v1391
      %v1455 = vpop.xlane.xlu0 %1454
      %1456 = vadd.xlane.f32.xlu0 %v1393
      %v1457 = vpop.xlane.xlu0 %1456
      %1458 = vadd.xlane.f32.xlu0 %v1395
      %v1459 = vpop.xlane.xlu0 %1458
      %1460 = vadd.xlane.f32.xlu0 %v1397
      %v1461 = vpop.xlane.xlu0 %1460
      %1462 = vadd.xlane.f32.xlu0 %v1399
      %v1463 = vpop.xlane.xlu0 %1462
      %1464 = vadd.xlane.f32.xlu0 %v1401
      %v1465 = vpop.xlane.xlu0 %1464
      %1466 = vadd.xlane.f32.xlu0 %v1403
      %v1467 = vpop.xlane.xlu0 %1466
      %1468 = vadd.xlane.f32.xlu0 %v1405
      %v1469 = vpop.xlane.xlu0 %1468
      %1470 = vadd.xlane.f32.xlu0 %v1407
      %v1471 = vpop.xlane.xlu0 %1470
      %1472 = vadd.xlane.f32.xlu0 %v1409
      %v1473 = vpop.xlane.xlu0 %1472
      %1474 = vadd.xlane.f32.xlu0 %v1411
      %v1475 = vpop.xlane.xlu0 %1474
      %1476 = vadd.xlane.f32.xlu0 %v1413
      %v1477 = vpop.xlane.xlu0 %1476
      %1478 = vadd.xlane.f32.xlu0 %v1415
      %v1479 = vpop.xlane.xlu0 %1478
      %1480 = vadd.xlane.f32.xlu0 %v1417
      %v1481 = vpop.xlane.xlu0 %1480
      %v1482 = vlog2.pop %v1419
      %v1483 = vmul.f32 %v1482, 0.6931472
      %v1484 = vlog2.pop %v1421
      %v1485 = vmul.f32 %v1484, 0.6931472
      %v1486 = vlog2.pop %v1423
      %v1487 = vmul.f32 %v1486, 0.6931472
      %v1488 = vlog2.pop %v1425
      %v1489 = vmul.f32 %v1488, 0.6931472
      %v1490 = vlog2.pop %v1427
      %v1491 = vmul.f32 %v1490, 0.6931472
      %v1492 = vlog2.pop %v1429
      %v1493 = vmul.f32 %v1492, 0.6931472
      %v1494 = vlog2.pop %v1431
      %v1495 = vmul.f32 %v1494, 0.6931472
      %v1496 = vlog2.pop %v1433
      %v1497 = vmul.f32 %v1496, 0.6931472
      %v1498 = vlog2.pop %v1435
      %v1499 = vmul.f32 %v1498, 0.6931472
      %v1500 = vlog2.pop %v1437
      %v1501 = vmul.f32 %v1500, 0.6931472
      %v1502 = vlog2.pop %v1439
      %v1503 = vmul.f32 %v1502, 0.6931472
      %v1504 = vlog2.pop %v1441
      %v1505 = vmul.f32 %v1504, 0.6931472
      %v1506 = vlog2.pop %v1443
      %v1507 = vmul.f32 %v1506, 0.6931472
      %v1508 = vlog2.pop %v1445
      %v1509 = vmul.f32 %v1508, 0.6931472
      %v1510 = vlog2.pop %v1447
      %v1511 = vmul.f32 %v1510, 0.6931472
      %v1512 = vlog2.pop %v1449
      %v1513 = vmul.f32 %v1512, 0.6931472
      %v1514 = vlog2.pop %v1451
      %v1515 = vmul.f32 %v1514, 0.6931472
      %v1516 = vlog2.pop %v1453
      %v1517 = vmul.f32 %v1516, 0.6931472
      %v1518 = vlog2.pop %v1455
      %v1519 = vmul.f32 %v1518, 0.6931472
      %v1520 = vlog2.pop %v1457
      %v1521 = vmul.f32 %v1520, 0.6931472
      %v1522 = vlog2.pop %v1459
      %v1523 = vmul.f32 %v1522, 0.6931472
      %v1524 = vlog2.pop %v1461
      %v1525 = vmul.f32 %v1524, 0.6931472
      %v1526 = vlog2.pop %v1463
      %v1527 = vmul.f32 %v1526, 0.6931472
      %v1528 = vlog2.pop %v1465
      %v1529 = vmul.f32 %v1528, 0.6931472
      %v1530 = vlog2.pop %v1467
      %v1531 = vmul.f32 %v1530, 0.6931472
      %v1532 = vlog2.pop %v1469
      %v1533 = vmul.f32 %v1532, 0.6931472
      %v1534 = vlog2.pop %v1471
      %v1535 = vmul.f32 %v1534, 0.6931472
      %v1536 = vlog2.pop %v1473
      %v1537 = vmul.f32 %v1536, 0.6931472
      %v1538 = vlog2.pop %v1475
      %v1539 = vmul.f32 %v1538, 0.6931472
      %v1540 = vlog2.pop %v1477
      %v1541 = vmul.f32 %v1540, 0.6931472
      %v1542 = vlog2.pop %v1479
      %v1543 = vmul.f32 %v1542, 0.6931472
      %v1544 = vlog2.pop %v1481
      %v1545 = vmul.f32 %v1544, 0.6931472
      %v1546 = vsub.f32 %v1322, %v1483
      %v1547 = vsub.f32 %v1323, %v1485
      %v1548 = vsub.f32 %v1324, %v1487
      %v1549 = vsub.f32 %v1325, %v1489
      %v1550 = vsub.f32 %v1326, %v1491
      %v1551 = vsub.f32 %v1327, %v1493
      %v1552 = vsub.f32 %v1328, %v1495
      %v1553 = vsub.f32 %v1329, %v1497
      %v1554 = vsub.f32 %v1330, %v1499
      %v1555 = vsub.f32 %v1331, %v1501
      %v1556 = vsub.f32 %v1332, %v1503
      %v1557 = vsub.f32 %v1333, %v1505
      %v1558 = vsub.f32 %v1334, %v1507
      %v1559 = vsub.f32 %v1335, %v1509
      %v1560 = vsub.f32 %v1336, %v1511
      %v1561 = vsub.f32 %v1337, %v1513
      %v1562 = vsub.f32 %v1338, %v1515
      %v1563 = vsub.f32 %v1339, %v1517
      %v1564 = vsub.f32 %v1340, %v1519
      %v1565 = vsub.f32 %v1341, %v1521
      %v1566 = vsub.f32 %v1342, %v1523
      %v1567 = vsub.f32 %v1343, %v1525
      %v1568 = vsub.f32 %v1344, %v1527
      %v1569 = vsub.f32 %v1345, %v1529
      %v1570 = vsub.f32 %v1346, %v1531
      %v1571 = vsub.f32 %v1347, %v1533
      %v1572 = vsub.f32 %v1348, %v1535
      %v1573 = vsub.f32 %v1349, %v1537
      %v1574 = vsub.f32 %v1350, %v1539
      %v1575 = vsub.f32 %v1351, %v1541
      %v1576 = vsub.f32 %v1352, %v1543
      %v1577 = vsub.f32 %v1353, %v1545
      %1578 = vst [vmem:[%s224] sm:$0xff] %v1546
      %1579 = vst [vmem:[%s224 + $0x8] sm:$0xff] %v1547
      %1580 = vst [vmem:[%s224 + $0x10] sm:$0xff] %v1548
      %1581 = vst [vmem:[%s224 + $0x18] sm:$0xff] %v1549
      %1582 = vst [vmem:[%s224 + $0x20] sm:$0xff] %v1550
      %1583 = vst [vmem:[%s224 + $0x28] sm:$0xff] %v1551
      %1584 = vst [vmem:[%s224 + $0x30] sm:$0xff] %v1552
      %1585 = vst [vmem:[%s224 + $0x38] sm:$0xff] %v1553
      %1586 = vst [vmem:[%s224 + $0x40] sm:$0xff] %v1554
      %1587 = vst [vmem:[%s224 + $0x48] sm:$0xff] %v1555
      %1588 = vst [vmem:[%s224 + $0x50] sm:$0xff] %v1556
      %1589 = vst [vmem:[%s224 + $0x58] sm:$0xff] %v1557
      %1590 = vst [vmem:[%s224 + $0x60] sm:$0xff] %v1558
      %1591 = vst [vmem:[%s224 + $0x68] sm:$0xff] %v1559
      %1592 = vst [vmem:[%s224 + $0x70] sm:$0xff] %v1560
      %1593 = vst [vmem:[%s224 + $0x78] sm:$0xff] %v1561
      %1594 = vst [vmem:[%s224 + $0x80] sm:$0xff] %v1562
      %1595 = vst [vmem:[%s224 + $0x88] sm:$0xff] %v1563
      %1596 = vst [vmem:[%s224 + $0x90] sm:$0xff] %v1564
      %1597 = vst [vmem:[%s224 + $0x98] sm:$0xff] %v1565
      %1598 = vst [vmem:[%s224 + $0xa0] sm:$0xff] %v1566
      %1599 = vst [vmem:[%s224 + $0xa8] sm:$0xff] %v1567
      %1600 = vst [vmem:[%s224 + $0xb0] sm:$0xff] %v1568
      %1601 = vst [vmem:[%s224 + $0xb8] sm:$0xff] %v1569
      %1602 = vst [vmem:[%s224 + $0xc0] sm:$0xff] %v1570
      %1603 = vst [vmem:[%s224 + $0xc8] sm:$0xff] %v1571
      %1604 = vst [vmem:[%s224 + $0xd0] sm:$0xff] %v1572
      %1605 = vst [vmem:[%s224 + $0xd8] sm:$0xff] %v1573
      %1606 = vst [vmem:[%s224 + $0xe0] sm:$0xff] %v1574
      %1607 = vst [vmem:[%s224 + $0xe8] sm:$0xff] %v1575
      %1608 = vst [vmem:[%s224 + $0xf0] sm:$0xff] %v1576
      %1609 = vst [vmem:[%s224 + $0xf8] sm:$0xff] %v1577
      %s1610 = smul.u32 32, %s15
      %p1611 = scmp.lt.s32.totalorder %s1610, 63
      %s1612 = scalar_select %p1611, %s1610, 63
      %s1613 = smul.addr %s1612, 8
      %s1614 = scalar_lea.vmem %s4, %s1613
      // Predicated region
      $region37: #{net000_forward.5} parent=35 // pred_check
        %p1615 = pneg %p127
      $region38: #{net000_forward.5} parent=35 // pred_check_branch
        %1617 = sbr.rel (%p1615) target = $region40
      $region39: #{net000_forward.5} parent=35 // pred_region
        %s1618 = smul.u32 32, %s15
      $region40: #{net000_forward.5} parent=35 // pred_fallthru
        _
    $region36: #{net000_forward.5} parent=5 // pred_fallthru
      _
    %p1619 = scmp.le.s32.totalorder 2, %s10
    // Predicated region
    $region41: #{net000_forward.5} parent=5 // pred_check
      %p1620 = pneg %p1619
    $region42: #{net000_forward.5} parent=5 // pred_check_branch
      %1622 = sbr.rel (%p1620) target = $region44
    $region43: #{net000_forward.5} parent=5 // pred_region
      %s1623 = ssub.s32 %s10, 2
      // Predicated region
      $region45: #{net000_forward.5} parent=43 // pred_check
        %p1624 = pneg %p133
      $region46: #{net000_forward.5} parent=43 // pred_check_branch
        %1626 = sbr.rel (%p1624) target = $region48
      $region47: #{net000_forward.5} parent=43 // pred_region
        %s1627 = smul.u32 32, %s16
        %p1628 = scmp.lt.s32.totalorder %s1627, 63
        %s1629 = scalar_select %p1628, %s1627, 63
        %s1630 = smul.addr %s1629, 8
        %s1631 = scalar_lea.vmem %s4, %s1630
      $region48: #{net000_forward.5} parent=43 // pred_fallthru
        _
    $region44: #{net000_forward.5} parent=5 // pred_fallthru
      _
  $region6: #{net000_forward.5} parent=0 // loop_footer
    %s14 = sadd.s32 1, %s10
  $region7: #{net000_forward.5} parent=0 // loop_footer_branch
    %9 = sbr.rel target = $region3
  $region8: #{net000_forward.5} parent=0 // loop_exit
    _

// kernel: net000_forward.4
$region0: #{net000_forward.4}
  #allocation0 [shape = 'u32[]', space=smem, size = 0x4, offset = 0x4, fixed_abs, tag = 'smem constant byte address 0x4 - core index']
  #allocation1 [shape = 'u32[72,128]{1,0:T(1,128)}', space=vmem, size = 0x9000, scoped, tag = 'internal scratch']
  %s0 = inlined_call_operand.vmem [shape: s8[512,512], index: 0, kind: input, shape index: {}]
  %s1 = inlined_call_operand.vmem [shape: bf16[512,64], index: 1, kind: input, shape index: {}]
  %s2 = inlined_call_operand.vmem [shape: f32[512,64], index: 2, kind: input, shape index: {}]
  %s3 = inlined_call_operand.vmem [shape: f32[1,64], index: 3, kind: input, shape index: {}]
  %s4 = inlined_call_operand.vmem [shape: bf16[64,128], index: 4, kind: input, shape index: {}]
  %s5 = inlined_call_operand.vmem [shape: bf16[64,128], index: 5, kind: input, shape index: {}]
  %s6 = inlined_call_operand.vmem [shape: bf16[512,128], index: 6, kind: output, shape index: {0}]
  %s7 = inlined_call_operand.vmem [shape: f32[512,128], index: 7, kind: output, shape index: {1}]
  %8 = xla_tuple %s6, %s7
  %s9 = sld [smem:[#allocation0]]
  $region65: #{net000_forward.4} parent=0
    _
  %s11 = ssub.s32 1, %s9
  %s12 = scalar_select 0, %s11, %s9
  loop: start=0, step=1, limit=4
  $region2: #{net000_forward.4} parent=0 // loop_pre_header
    _
  $region3: #{net000_forward.4} parent=0 // loop_header
    %s14 = sphi 0, %s18
    %p15 = scmp.ge.s32.totalorder %s14, 4
    %s24 = sphi 0, %s26
    %s27 = sphi 0, %s24
    %s28 = sphi 0, %s27
    %s44 = sphi 0, %s28
    %s48 = sphi 0, %s48
    %s50 = sphi 0, %s48
    %s51 = sphi 0, %s50
    %s65 = sphi 0, %s51
    %s71 = sphi 0, %s73
    %s74 = sphi 0, %s71
    %s75 = sphi 0, %s74
    %s91 = sphi 0, %s75
    %s95 = sphi 0, %s95
    %s97 = sphi 0, %s95
    %s98 = sphi 0, %s97
    %s112 = sphi 0, %s98
    %s116 = sphi 0, %s116
    %s118 = sphi 0, %s116
    %s119 = sphi 0, %s118
    %s133 = sphi 0, %s119
    %s137 = sphi 0, %s137
    %s139 = sphi 0, %s137
    %s140 = sphi 0, %s139
    %s154 = sphi 0, %s140
    %s160 = sphi 0, %s162
    %s163 = sphi 0, %s160
    %s164 = sphi 0, %s163
    %s180 = sphi 0, %s164
    %s186 = sphi 0, %s188
    %s189 = sphi 0, %s186
    %s190 = sphi 0, %s189
    %s206 = sphi 0, %s190
  $region4: #{net000_forward.4} parent=0 // loop_header_branch
    %17 = sbr.rel (%p15) target = $region8
  $region5: #{net000_forward.4} parent=0 // loop_body
    %s19 = ssub.s32 %s14, 1
    %s20 = ssub.s32 %s14, 2
    %s21 = sadd.s32 %s14, 1
    %s22 = ssub.s32 %s14, %s21
    %p23 = scmp.eq.s32.totalorder %s22, 0
    %s25 = sadd.s32 %s24, 1
    %s26 = scalar_select %p23, %s24, %s25
    %p29 = pneg %p23
    %p30 = scmp.eq.s32.totalorder %s14, 1
    %p31 = por %p29, %p30
    %p32 = scmp.ne.s32.totalorder %s24, %s27
    %p33 = scmp.eq.s32.totalorder %s14, 0
    %p34 = por %p32, %p33
    %p35 = scmp.ne.s32.totalorder %s24, %s27
    %p36 = scmp.eq.s32.totalorder %s19, 1
    %p37 = por %p35, %p36
    %p38 = scmp.ne.s32.totalorder %s27, %s28
    %p39 = scmp.eq.s32.totalorder %s19, 0
    %p40 = por %p38, %p39
    %p41 = scmp.ne.s32.totalorder %s27, %s28
    %p42 = scmp.eq.s32.totalorder %s20, 1
    %p43 = por %p41, %p42
    %p45 = scmp.ne.s32.totalorder %s28, %s44
    %p46 = scmp.eq.s32.totalorder %s20, 0
    %p47 = por %p45, %p46
    %s49 = sadd.s32 %s48, 1
    %p52 = scmp.eq.s32.totalorder %s14, 1
    %p53 = scmp.ne.s32.totalorder %s48, %s50
    %p54 = scmp.eq.s32.totalorder %s14, 0
    %p55 = por %p53, %p54
    %p56 = scmp.ne.s32.totalorder %s48, %s50
    %p57 = scmp.eq.s32.totalorder %s19, 1
    %p58 = por %p56, %p57
    %p59 = scmp.ne.s32.totalorder %s50, %s51
    %p60 = scmp.eq.s32.totalorder %s19, 0
    %p61 = por %p59, %p60
    %p62 = scmp.ne.s32.totalorder %s50, %s51
    %p63 = scmp.eq.s32.totalorder %s20, 1
    %p64 = por %p62, %p63
    %p66 = scmp.ne.s32.totalorder %s51, %s65
    %p67 = scmp.eq.s32.totalorder %s20, 0
    %p68 = por %p66, %p67
    %s69 = ssub.s32 %s14, %s21
    %p70 = scmp.eq.s32.totalorder %s69, 0
    %s72 = sadd.s32 %s71, 1
    %s73 = scalar_select %p70, %s71, %s72
    %p76 = pneg %p70
    %p77 = scmp.eq.s32.totalorder %s14, 1
    %p78 = por %p76, %p77
    %p79 = scmp.ne.s32.totalorder %s71, %s74
    %p80 = scmp.eq.s32.totalorder %s14, 0
    %p81 = por %p79, %p80
    %p82 = scmp.ne.s32.totalorder %s71, %s74
    %p83 = scmp.eq.s32.totalorder %s19, 1
    %p84 = por %p82, %p83
    %p85 = scmp.ne.s32.totalorder %s74, %s75
    %p86 = scmp.eq.s32.totalorder %s19, 0
    %p87 = por %p85, %p86
    %p88 = scmp.ne.s32.totalorder %s74, %s75
    %p89 = scmp.eq.s32.totalorder %s20, 1
    %p90 = por %p88, %p89
    %p92 = scmp.ne.s32.totalorder %s75, %s91
    %p93 = scmp.eq.s32.totalorder %s20, 0
    %p94 = por %p92, %p93
    %s96 = sadd.s32 %s95, 1
    %p99 = scmp.eq.s32.totalorder %s14, 1
    %p100 = scmp.ne.s32.totalorder %s95, %s97
    %p101 = scmp.eq.s32.totalorder %s14, 0
    %p102 = por %p100, %p101
    %p103 = scmp.ne.s32.totalorder %s95, %s97
    %p104 = scmp.eq.s32.totalorder %s19, 1
    %p105 = por %p103, %p104
    %p106 = scmp.ne.s32.totalorder %s97, %s98
    %p107 = scmp.eq.s32.totalorder %s19, 0
    %p108 = por %p106, %p107
    %p109 = scmp.ne.s32.totalorder %s97, %s98
    %p110 = scmp.eq.s32.totalorder %s20, 1
    %p111 = por %p109, %p110
    %p113 = scmp.ne.s32.totalorder %s98, %s112
    %p114 = scmp.eq.s32.totalorder %s20, 0
    %p115 = por %p113, %p114
    %s117 = sadd.s32 %s116, 1
    %p120 = scmp.eq.s32.totalorder %s14, 1
    %p121 = scmp.ne.s32.totalorder %s116, %s118
    %p122 = scmp.eq.s32.totalorder %s14, 0
    %p123 = por %p121, %p122
    %p124 = scmp.ne.s32.totalorder %s116, %s118
    %p125 = scmp.eq.s32.totalorder %s19, 1
    %p126 = por %p124, %p125
    %p127 = scmp.ne.s32.totalorder %s118, %s119
    %p128 = scmp.eq.s32.totalorder %s19, 0
    %p129 = por %p127, %p128
    %p130 = scmp.ne.s32.totalorder %s118, %s119
    %p131 = scmp.eq.s32.totalorder %s20, 1
    %p132 = por %p130, %p131
    %p134 = scmp.ne.s32.totalorder %s119, %s133
    %p135 = scmp.eq.s32.totalorder %s20, 0
    %p136 = por %p134, %p135
    %s138 = sadd.s32 %s137, 1
    %p141 = scmp.eq.s32.totalorder %s14, 1
    %p142 = scmp.ne.s32.totalorder %s137, %s139
    %p143 = scmp.eq.s32.totalorder %s14, 0
    %p144 = por %p142, %p143
    %p145 = scmp.ne.s32.totalorder %s137, %s139
    %p146 = scmp.eq.s32.totalorder %s19, 1
    %p147 = por %p145, %p146
    %p148 = scmp.ne.s32.totalorder %s139, %s140
    %p149 = scmp.eq.s32.totalorder %s19, 0
    %p150 = por %p148, %p149
    %p151 = scmp.ne.s32.totalorder %s139, %s140
    %p152 = scmp.eq.s32.totalorder %s20, 1
    %p153 = por %p151, %p152
    %p155 = scmp.ne.s32.totalorder %s140, %s154
    %p156 = scmp.eq.s32.totalorder %s20, 0
    %p157 = por %p155, %p156
    %s158 = ssub.s32 %s14, %s21
    %p159 = scmp.eq.s32.totalorder %s158, 0
    %s161 = sadd.s32 %s160, 1
    %s162 = scalar_select %p159, %s160, %s161
    %p165 = pneg %p159
    %p166 = scmp.eq.s32.totalorder %s14, 1
    %p167 = por %p165, %p166
    %p168 = scmp.ne.s32.totalorder %s160, %s163
    %p169 = scmp.eq.s32.totalorder %s14, 0
    %p170 = por %p168, %p169
    %p171 = scmp.ne.s32.totalorder %s160, %s163
    %p172 = scmp.eq.s32.totalorder %s19, 1
    %p173 = por %p171, %p172
    %p174 = scmp.ne.s32.totalorder %s163, %s164
    %p175 = scmp.eq.s32.totalorder %s19, 0
    %p176 = por %p174, %p175
    %p177 = scmp.ne.s32.totalorder %s163, %s164
    %p178 = scmp.eq.s32.totalorder %s20, 1
    %p179 = por %p177, %p178
    %p181 = scmp.ne.s32.totalorder %s164, %s180
    %p182 = scmp.eq.s32.totalorder %s20, 0
    %p183 = por %p181, %p182
    %s184 = ssub.s32 %s14, %s21
    %p185 = scmp.eq.s32.totalorder %s184, 0
    %s187 = sadd.s32 %s186, 1
    %s188 = scalar_select %p185, %s186, %s187
    %p191 = pneg %p185
    %p192 = scmp.eq.s32.totalorder %s14, 1
    %p193 = por %p191, %p192
    %p194 = scmp.ne.s32.totalorder %s186, %s189
    %p195 = scmp.eq.s32.totalorder %s14, 0
    %p196 = por %p194, %p195
    %p197 = scmp.ne.s32.totalorder %s186, %s189
    %p198 = scmp.eq.s32.totalorder %s19, 1
    %p199 = por %p197, %p198
    %p200 = scmp.ne.s32.totalorder %s189, %s190
    %p201 = scmp.eq.s32.totalorder %s19, 0
    %p202 = por %p200, %p201
    %p203 = scmp.ne.s32.totalorder %s189, %s190
    %p204 = scmp.eq.s32.totalorder %s20, 1
    %p205 = por %p203, %p204
    %p207 = scmp.ne.s32.totalorder %s190, %s206
    %p208 = scmp.eq.s32.totalorder %s20, 0
    %p209 = por %p207, %p208
    %p210 = scmp.le.s32.totalorder 1, %s14
    %p211 = scmp.lt.s32.totalorder %s14, 3
    %p212 = pnand %p210, %p211
    %p213 = pneg %p212
    // Predicated region
    $region9: #{net000_forward.4} parent=5 // pred_check
      _
    $region10: #{net000_forward.4} parent=5 // pred_check_branch
      %215 = sbr.rel (%p212) target = $region12
    $region11: #{net000_forward.4} parent=5 // pred_region
      %s216 = ssub.s32 %s14, 1
      // Predicated region
      $region13: #{net000_forward.4} parent=11 // pred_check
        %p217 = pneg %p61
      $region14: #{net000_forward.4} parent=11 // pred_check_branch
        %219 = sbr.rel (%p217) target = $region16
      $region15: #{net000_forward.4} parent=11 // pred_region
        _
      $region16: #{net000_forward.4} parent=11 // pred_fallthru
        _
      // Predicated region
      $region17: #{net000_forward.4} parent=11 // pred_check
        %p220 = pneg %p108
      $region18: #{net000_forward.4} parent=11 // pred_check_branch
        %222 = sbr.rel (%p220) target = $region20
      $region19: #{net000_forward.4} parent=11 // pred_region
        _
      $region20: #{net000_forward.4} parent=11 // pred_fallthru
        _
      // Predicated region
      $region21: #{net000_forward.4} parent=11 // pred_check
        %p223 = pneg %p129
      $region22: #{net000_forward.4} parent=11 // pred_check_branch
        %225 = sbr.rel (%p223) target = $region24
      $region23: #{net000_forward.4} parent=11 // pred_region
        _
      $region24: #{net000_forward.4} parent=11 // pred_fallthru
        _
      // Predicated region
      $region25: #{net000_forward.4} parent=11 // pred_check
        %p226 = pneg %p150
      $region26: #{net000_forward.4} parent=11 // pred_check_branch
        %228 = sbr.rel (%p226) target = $region28
      $region27: #{net000_forward.4} parent=11 // pred_region
        _
      $region28: #{net000_forward.4} parent=11 // pred_fallthru
        _
    $region12: #{net000_forward.4} parent=5 // pred_fallthru
      _
    %p229 = scmp.lt.s32.totalorder %s14, 2
    // Predicated region
    $region29: #{net000_forward.4} parent=5 // pred_check
      %p230 = pneg %p229
    $region30: #{net000_forward.4} parent=5 // pred_check_branch
      %232 = sbr.rel (%p230) target = $region32
    $region31: #{net000_forward.4} parent=5 // pred_region
      // Predicated region
      $region33: #{net000_forward.4} parent=31 // pred_check
        %p233 = pneg %p34
      $region34: #{net000_forward.4} parent=31 // pred_check_branch
        %235 = sbr.rel (%p233) target = $region36
      $region35: #{net000_forward.4} parent=31 // pred_region
        %s236 = smul.u32 8, %s14
        %p237 = scmp.lt.s32.totalorder %s236, 15
        %s238 = scalar_select %p237, %s236, 15
        %s239 = smul.addr %s238, 4
        %s240 = smul.addr %s239, 8
        %s241 = scalar_lea.vmem %s0, %s240
        %s242 = smul.u32 8, %s14
      $region36: #{net000_forward.4} parent=31 // pred_fallthru
        _
      // Predicated region
      $region37: #{net000_forward.4} parent=31 // pred_check
        %p243 = pneg %p81
      $region38: #{net000_forward.4} parent=31 // pred_check_branch
        %245 = sbr.rel (%p243) target = $region40
      $region39: #{net000_forward.4} parent=31 // pred_region
        %s246 = smul.u32 32, %s14
        %p247 = scmp.lt.s32.totalorder %s246, 63
        %s248 = scalar_select %p247, %s246, 63
        %s249 = smul.addr %s248, 8
        %s250 = scalar_lea.vmem %s2, %s249
        %s251 = smul.u32 32, %s14
      $region40: #{net000_forward.4} parent=31 // pred_fallthru
        _
    $region32: #{net000_forward.4} parent=5 // pred_fallthru
      _
    %p252 = scmp.le.s32.totalorder 1, %s14
    %p253 = scmp.lt.s32.totalorder %s14, 3
    %p254 = pnand %p252, %p253
    %p255 = pneg %p254
    // Predicated region
    $region41: #{net000_forward.4} parent=5 // pred_check
      _
    $region42: #{net000_forward.4} parent=5 // pred_check_branch
      %257 = sbr.rel (%p254) target = $region44
    $region43: #{net000_forward.4} parent=5 // pred_region
      %s258 = ssub.s32 %s14, 1
      %s259 = smul.u32 8, %s19
      %p260 = scmp.lt.s32.totalorder %s259, 15
      %s261 = scalar_select %p260, %s259, 15
      %s262 = smul.addr %s261, 4
      %s263 = smul.addr %s262, 8
      %s264 = scalar_lea.vmem %s0, %s263
      %p265 = pneg %p40
      %p266 = pneg %p37
      %p267 = pneg %p61
      %p268 = pneg %p58
      %s269 = smul.u32 32, %s19
      %p270 = scmp.lt.s32.totalorder %s269, 63
      %s271 = scalar_select %p270, %s269, 63
      %s272 = smul.addr %s271, 8
      %s273 = scalar_lea.vmem %s2, %s272
      %p274 = pneg %p87
      %p275 = pneg %p84
      %p276 = pneg %p108
      %p277 = pneg %p105
      %p278 = pneg %p129
      %p279 = pneg %p126
      %p280 = pneg %p150
      %p281 = pneg %p147
      %p282 = pneg %p176
      %p283 = pneg %p173
      %s284 = smul.u32 32, %s19
      %p285 = scmp.lt.s32.totalorder %s284, 63
      %s286 = scalar_select %p285, %s284, 63
      %s287 = smul.addr %s286, 4
      %s288 = scalar_lea.vmem %s6, %s287
      %p289 = pneg %p202
      %p290 = pneg %p199
      %s291 = smul.u32 32, %s19
      %p292 = scmp.lt.s32.totalorder %s291, 63
      %s293 = scalar_select %p292, %s291, 63
      %s294 = smul.addr %s293, 8
      %s295 = scalar_lea.vmem %s7, %s294
      %s296 = smul.u32 8, %s19
      %p297 = scmp.lt.s32.totalorder %s296, 15
      %s298 = scalar_select %p297, %s296, 15
      %s299 = smul.addr %s298, 4
      %s300 = smul.addr %s299, 8
      %s301 = scalar_lea.vmem %s0, %s300
      %s302 = smul.u32 8, %s19
      %s303 = smul.u32 32, %s19
      %p304 = scmp.lt.s32.totalorder %s303, 63
      %s305 = scalar_select %p304, %s303, 63
      %s306 = smul.addr %s305, 8
      %s307 = scalar_lea.vmem %s2, %s306
      %s308 = smul.u32 32, %s19
      %s309 = smul.u32 32, %s19
      %p310 = scmp.lt.s32.totalorder %s309, 63
      %s311 = scalar_select %p310, %s309, 63
      %s312 = smul.addr %s311, 4
      %s313 = scalar_lea.vmem %s6, %s312
      %s314 = smul.u32 32, %s19
      %s315 = smul.u32 32, %s19
      %p316 = scmp.lt.s32.totalorder %s315, 63
      %s317 = scalar_select %p316, %s315, 63
      %s318 = smul.addr %s317, 8
      %s319 = scalar_lea.vmem %s7, %s318
      %s320 = smul.u32 32, %s19
      %v322 = vld [vmem:[%s301] sm:$0xff]
      %v323 = vld [vmem:[%s301 + $0x8] sm:$0xff]
      %v324 = vld [vmem:[%s301 + $0x10] sm:$0xff]
      %v325 = vld [vmem:[%s301 + $0x18] sm:$0xff]
      %v326 = vld [vmem:[%s301 + $0x20] sm:$0xff]
      %v327 = vld [vmem:[%s301 + $0x28] sm:$0xff]
      %v328 = vld [vmem:[%s301 + $0x30] sm:$0xff]
      %v329 = vld [vmem:[%s301 + $0x38] sm:$0xff]
      %v330 = vld [vmem:[%s301 + $0x40] sm:$0xff]
      %v331 = vld [vmem:[%s301 + $0x48] sm:$0xff]
      %v332 = vld [vmem:[%s301 + $0x50] sm:$0xff]
      %v333 = vld [vmem:[%s301 + $0x58] sm:$0xff]
      %v334 = vld [vmem:[%s301 + $0x60] sm:$0xff]
      %v335 = vld [vmem:[%s301 + $0x68] sm:$0xff]
      %v336 = vld [vmem:[%s301 + $0x70] sm:$0xff]
      %v337 = vld [vmem:[%s301 + $0x78] sm:$0xff]
      %v338 = vld [vmem:[%s301 + $0x80] sm:$0xff]
      %v339 = vld [vmem:[%s301 + $0x88] sm:$0xff]
      %v340 = vld [vmem:[%s301 + $0x90] sm:$0xff]
      %v341 = vld [vmem:[%s301 + $0x98] sm:$0xff]
      %v342 = vld [vmem:[%s301 + $0xa0] sm:$0xff]
      %v343 = vld [vmem:[%s301 + $0xa8] sm:$0xff]
      %v344 = vld [vmem:[%s301 + $0xb0] sm:$0xff]
      %v345 = vld [vmem:[%s301 + $0xb8] sm:$0xff]
      %v346 = vld [vmem:[%s301 + $0xc0] sm:$0xff]
      %v347 = vld [vmem:[%s301 + $0xc8] sm:$0xff]
      %v348 = vld [vmem:[%s301 + $0xd0] sm:$0xff]
      %v349 = vld [vmem:[%s301 + $0xd8] sm:$0xff]
      %v350 = vld [vmem:[%s301 + $0xe0] sm:$0xff]
      %v351 = vld [vmem:[%s301 + $0xe8] sm:$0xff]
      %v352 = vld [vmem:[%s301 + $0xf0] sm:$0xff]
      %v353 = vld [vmem:[%s301 + $0xf8] sm:$0xff]
      %v354 = vunpack.c.0.s8 %v322
      %v355 = vunpack.c.0.s8 %v323
      %v356 = vunpack.c.0.s8 %v324
      %v357 = vunpack.c.0.s8 %v325
      %v358 = vunpack.c.1.s8 %v322
      %v359 = vunpack.c.1.s8 %v323
      %v360 = vunpack.c.1.s8 %v324
      %v361 = vunpack.c.1.s8 %v325
      %v362 = vunpack.c.2.s8 %v322
      %v363 = vunpack.c.2.s8 %v323
      %v364 = vunpack.c.2.s8 %v324
      %v365 = vunpack.c.2.s8 %v325
      %v366 = vunpack.c.3.s8 %v322
      %v367 = vunpack.c.3.s8 %v323
      %v368 = vunpack.c.3.s8 %v324
      %v369 = vunpack.c.3.s8 %v325
      %v370 = vunpack.c.0.s8 %v326
      %v371 = vunpack.c.0.s8 %v327
      %v372 = vunpack.c.0.s8 %v328
      %v373 = vunpack.c.0.s8 %v329
      %v374 = vunpack.c.1.s8 %v326
      %v375 = vunpack.c.1.s8 %v327
      %v376 = vunpack.c.1.s8 %v328
      %v377 = vunpack.c.1.s8 %v329
      %v378 = vunpack.c.2.s8 %v326
      %v379 = vunpack.c.2.s8 %v327
      %v380 = vunpack.c.2.s8 %v328
      %v381 = vunpack.c.2.s8 %v329
      %v382 = vunpack.c.3.s8 %v326
      %v383 = vunpack.c.3.s8 %v327
      %v384 = vunpack.c.3.s8 %v328
      %v385 = vunpack.c.3.s8 %v329
      %v386 = vunpack.c.0.s8 %v330
      %v387 = vunpack.c.0.s8 %v331
      %v388 = vunpack.c.0.s8 %v332
      %v389 = vunpack.c.0.s8 %v333
      %v390 = vunpack.c.1.s8 %v330
      %v391 = vunpack.c.1.s8 %v331
      %v392 = vunpack.c.1.s8 %v332
      %v393 = vunpack.c.1.s8 %v333
      %v394 = vunpack.c.2.s8 %v330
      %v395 = vunpack.c.2.s8 %v331
      %v396 = vunpack.c.2.s8 %v332
      %v397 = vunpack.c.2.s8 %v333
      %v398 = vunpack.c.3.s8 %v330
      %v399 = vunpack.c.3.s8 %v331
      %v400 = vunpack.c.3.s8 %v332
      %v401 = vunpack.c.3.s8 %v333
      %v402 = vunpack.c.0.s8 %v334
      %v403 = vunpack.c.0.s8 %v335
      %v404 = vunpack.c.0.s8 %v336
      %v405 = vunpack.c.0.s8 %v337
      %v406 = vunpack.c.1.s8 %v334
      %v407 = vunpack.c.1.s8 %v335
      %v408 = vunpack.c.1.s8 %v336
      %v409 = vunpack.c.1.s8 %v337
      %v410 = vunpack.c.2.s8 %v334
      %v411 = vunpack.c.2.s8 %v335
      %v412 = vunpack.c.2.s8 %v336
      %v413 = vunpack.c.2.s8 %v337
      %v414 = vunpack.c.3.s8 %v334
      %v415 = vunpack.c.3.s8 %v335
      %v416 = vunpack.c.3.s8 %v336
      %v417 = vunpack.c.3.s8 %v337
      %v418 = vunpack.c.0.s8 %v338
      %v419 = vunpack.c.0.s8 %v339
      %v420 = vunpack.c.0.s8 %v340
      %v421 = vunpack.c.0.s8 %v341
      %v422 = vunpack.c.1.s8 %v338
      %v423 = vunpack.c.1.s8 %v339
      %v424 = vunpack.c.1.s8 %v340
      %v425 = vunpack.c.1.s8 %v341
      %v426 = vunpack.c.2.s8 %v338
      %v427 = vunpack.c.2.s8 %v339
      %v428 = vunpack.c.2.s8 %v340
      %v429 = vunpack.c.2.s8 %v341
      %v430 = vunpack.c.3.s8 %v338
      %v431 = vunpack.c.3.s8 %v339
      %v432 = vunpack.c.3.s8 %v340
      %v433 = vunpack.c.3.s8 %v341
      %v434 = vunpack.c.0.s8 %v342
      %v435 = vunpack.c.0.s8 %v343
      %v436 = vunpack.c.0.s8 %v344
      %v437 = vunpack.c.0.s8 %v345
      %v438 = vunpack.c.1.s8 %v342
      %v439 = vunpack.c.1.s8 %v343
      %v440 = vunpack.c.1.s8 %v344
      %v441 = vunpack.c.1.s8 %v345
      %v442 = vunpack.c.2.s8 %v342
      %v443 = vunpack.c.2.s8 %v343
      %v444 = vunpack.c.2.s8 %v344
      %v445 = vunpack.c.2.s8 %v345
      %v446 = vunpack.c.3.s8 %v342
      %v447 = vunpack.c.3.s8 %v343
      %v448 = vunpack.c.3.s8 %v344
      %v449 = vunpack.c.3.s8 %v345
      %v450 = vunpack.c.0.s8 %v346
      %v451 = vunpack.c.0.s8 %v347
      %v452 = vunpack.c.0.s8 %v348
      %v453 = vunpack.c.0.s8 %v349
      %v454 = vunpack.c.1.s8 %v346
      %v455 = vunpack.c.1.s8 %v347
      %v456 = vunpack.c.1.s8 %v348
      %v457 = vunpack.c.1.s8 %v349
      %v458 = vunpack.c.2.s8 %v346
      %v459 = vunpack.c.2.s8 %v347
      %v460 = vunpack.c.2.s8 %v348
      %v461 = vunpack.c.2.s8 %v349
      %v462 = vunpack.c.3.s8 %v346
      %v463 = vunpack.c.3.s8 %v347
      %v464 = vunpack.c.3.s8 %v348
      %v465 = vunpack.c.3.s8 %v349
      %v466 = vunpack.c.0.s8 %v350
      %v467 = vunpack.c.0.s8 %v351
      %v468 = vunpack.c.0.s8 %v352
      %v469 = vunpack.c.0.s8 %v353
      %v470 = vunpack.c.1.s8 %v350
      %v471 = vunpack.c.1.s8 %v351
      %v472 = vunpack.c.1.s8 %v352
      %v473 = vunpack.c.1.s8 %v353
      %v474 = vunpack.c.2.s8 %v350
      %v475 = vunpack.c.2.s8 %v351
      %v476 = vunpack.c.2.s8 %v352
      %v477 = vunpack.c.2.s8 %v353
      %v478 = vunpack.c.3.s8 %v350
      %v479 = vunpack.c.3.s8 %v351
      %v480 = vunpack.c.3.s8 %v352
      %v481 = vunpack.c.3.s8 %v353
      %v482 = vcvt.s32.f32 %v354
      %v483 = vcvt.s32.f32 %v355
      %v484 = vcvt.s32.f32 %v356
      %v485 = vcvt.s32.f32 %v357
      %v486 = vcvt.s32.f32 %v358
      %v487 = vcvt.s32.f32 %v359
      %v488 = vcvt.s32.f32 %v360
      %v489 = vcvt.s32.f32 %v361
      %v490 = vcvt.s32.f32 %v362
      %v491 = vcvt.s32.f32 %v363
      %v492 = vcvt.s32.f32 %v364
      %v493 = vcvt.s32.f32 %v365
      %v494 = vcvt.s32.f32 %v366
      %v495 = vcvt.s32.f32 %v367
      %v496 = vcvt.s32.f32 %v368
      %v497 = vcvt.s32.f32 %v369
      %v498 = vcvt.s32.f32 %v370
      %v499 = vcvt.s32.f32 %v371
      %v500 = vcvt.s32.f32 %v372
      %v501 = vcvt.s32.f32 %v373
      %v502 = vcvt.s32.f32 %v374
      %v503 = vcvt.s32.f32 %v375
      %v504 = vcvt.s32.f32 %v376
      %v505 = vcvt.s32.f32 %v377
      %v506 = vcvt.s32.f32 %v378
      %v507 = vcvt.s32.f32 %v379
      %v508 = vcvt.s32.f32 %v380
      %v509 = vcvt.s32.f32 %v381
      %v510 = vcvt.s32.f32 %v382
      %v511 = vcvt.s32.f32 %v383
      %v512 = vcvt.s32.f32 %v384
      %v513 = vcvt.s32.f32 %v385
      %v514 = vcvt.s32.f32 %v386
      %v515 = vcvt.s32.f32 %v387
      %v516 = vcvt.s32.f32 %v388
      %v517 = vcvt.s32.f32 %v389
      %v518 = vcvt.s32.f32 %v390
      %v519 = vcvt.s32.f32 %v391
      %v520 = vcvt.s32.f32 %v392
      %v521 = vcvt.s32.f32 %v393
      %v522 = vcvt.s32.f32 %v394
      %v523 = vcvt.s32.f32 %v395
      %v524 = vcvt.s32.f32 %v396
      %v525 = vcvt.s32.f32 %v397
      %v526 = vcvt.s32.f32 %v398
      %v527 = vcvt.s32.f32 %v399
      %v528 = vcvt.s32.f32 %v400
      %v529 = vcvt.s32.f32 %v401
      %v530 = vcvt.s32.f32 %v402
      %v531 = vcvt.s32.f32 %v403
      %v532 = vcvt.s32.f32 %v404
      %v533 = vcvt.s32.f32 %v405
      %v534 = vcvt.s32.f32 %v406
      %v535 = vcvt.s32.f32 %v407
      %v536 = vcvt.s32.f32 %v408
      %v537 = vcvt.s32.f32 %v409
      %v538 = vcvt.s32.f32 %v410
      %v539 = vcvt.s32.f32 %v411
      %v540 = vcvt.s32.f32 %v412
      %v541 = vcvt.s32.f32 %v413
      %v542 = vcvt.s32.f32 %v414
      %v543 = vcvt.s32.f32 %v415
      %v544 = vcvt.s32.f32 %v416
      %v545 = vcvt.s32.f32 %v417
      %v546 = vcvt.s32.f32 %v418
      %v547 = vcvt.s32.f32 %v419
      %v548 = vcvt.s32.f32 %v420
      %v549 = vcvt.s32.f32 %v421
      %v550 = vcvt.s32.f32 %v422
      %v551 = vcvt.s32.f32 %v423
      %v552 = vcvt.s32.f32 %v424
      %v553 = vcvt.s32.f32 %v425
      %v554 = vcvt.s32.f32 %v426
      %v555 = vcvt.s32.f32 %v427
      %v556 = vcvt.s32.f32 %v428
      %v557 = vcvt.s32.f32 %v429
      %v558 = vcvt.s32.f32 %v430
      %v559 = vcvt.s32.f32 %v431
      %v560 = vcvt.s32.f32 %v432
      %v561 = vcvt.s32.f32 %v433
      %v562 = vcvt.s32.f32 %v434
      %v563 = vcvt.s32.f32 %v435
      %v564 = vcvt.s32.f32 %v436
      %v565 = vcvt.s32.f32 %v437
      %v566 = vcvt.s32.f32 %v438
      %v567 = vcvt.s32.f32 %v439
      %v568 = vcvt.s32.f32 %v440
      %v569 = vcvt.s32.f32 %v441
      %v570 = vcvt.s32.f32 %v442
      %v571 = vcvt.s32.f32 %v443
      %v572 = vcvt.s32.f32 %v444
      %v573 = vcvt.s32.f32 %v445
      %v574 = vcvt.s32.f32 %v446
      %v575 = vcvt.s32.f32 %v447
      %v576 = vcvt.s32.f32 %v448
      %v577 = vcvt.s32.f32 %v449
      %v578 = vcvt.s32.f32 %v450
      %v579 = vcvt.s32.f32 %v451
      %v580 = vcvt.s32.f32 %v452
      %v581 = vcvt.s32.f32 %v453
      %v582 = vcvt.s32.f32 %v454
      %v583 = vcvt.s32.f32 %v455
      %v584 = vcvt.s32.f32 %v456
      %v585 = vcvt.s32.f32 %v457
      %v586 = vcvt.s32.f32 %v458
      %v587 = vcvt.s32.f32 %v459
      %v588 = vcvt.s32.f32 %v460
      %v589 = vcvt.s32.f32 %v461
      %v590 = vcvt.s32.f32 %v462
      %v591 = vcvt.s32.f32 %v463
      %v592 = vcvt.s32.f32 %v464
      %v593 = vcvt.s32.f32 %v465
      %v594 = vcvt.s32.f32 %v466
      %v595 = vcvt.s32.f32 %v467
      %v596 = vcvt.s32.f32 %v468
      %v597 = vcvt.s32.f32 %v469
      %v598 = vcvt.s32.f32 %v470
      %v599 = vcvt.s32.f32 %v471
      %v600 = vcvt.s32.f32 %v472
      %v601 = vcvt.s32.f32 %v473
      %v602 = vcvt.s32.f32 %v474
      %v603 = vcvt.s32.f32 %v475
      %v604 = vcvt.s32.f32 %v476
      %v605 = vcvt.s32.f32 %v477
      %v606 = vcvt.s32.f32 %v478
      %v607 = vcvt.s32.f32 %v479
      %v608 = vcvt.s32.f32 %v480
      %v609 = vcvt.s32.f32 %v481
      %v610 = vpack.c.bf16 %v486, %v482
      %v611 = vpack.c.bf16 %v487, %v483
      %v612 = vpack.c.bf16 %v488, %v484
      %v613 = vpack.c.bf16 %v489, %v485
      %v614 = vpack.c.bf16 %v494, %v490
      %v615 = vpack.c.bf16 %v495, %v491
      %v616 = vpack.c.bf16 %v496, %v492
      %v617 = vpack.c.bf16 %v497, %v493
      %v618 = vpack.c.bf16 %v502, %v498
      %v619 = vpack.c.bf16 %v503, %v499
      %v620 = vpack.c.bf16 %v504, %v500
      %v621 = vpack.c.bf16 %v505, %v501
      %v622 = vpack.c.bf16 %v510, %v506
      %v623 = vpack.c.bf16 %v511, %v507
      %v624 = vpack.c.bf16 %v512, %v508
      %v625 = vpack.c.bf16 %v513, %v509
      %v626 = vpack.c.bf16 %v518, %v514
      %v627 = vpack.c.bf16 %v519, %v515
      %v628 = vpack.c.bf16 %v520, %v516
      %v629 = vpack.c.bf16 %v521, %v517
      %v630 = vpack.c.bf16 %v526, %v522
      %v631 = vpack.c.bf16 %v527, %v523
      %v632 = vpack.c.bf16 %v528, %v524
      %v633 = vpack.c.bf16 %v529, %v525
      %v634 = vpack.c.bf16 %v534, %v530
      %v635 = vpack.c.bf16 %v535, %v531
      %v636 = vpack.c.bf16 %v536, %v532
      %v637 = vpack.c.bf16 %v537, %v533
      %v638 = vpack.c.bf16 %v542, %v538
      %v639 = vpack.c.bf16 %v543, %v539
      %v640 = vpack.c.bf16 %v544, %v540
      %v641 = vpack.c.bf16 %v545, %v541
      %v642 = vpack.c.bf16 %v550, %v546
      %v643 = vpack.c.bf16 %v551, %v547
      %v644 = vpack.c.bf16 %v552, %v548
      %v645 = vpack.c.bf16 %v553, %v549
      %v646 = vpack.c.bf16 %v558, %v554
      %v647 = vpack.c.bf16 %v559, %v555
      %v648 = vpack.c.bf16 %v560, %v556
      %v649 = vpack.c.bf16 %v561, %v557
      %v650 = vpack.c.bf16 %v566, %v562
      %v651 = vpack.c.bf16 %v567, %v563
      %v652 = vpack.c.bf16 %v568, %v564
      %v653 = vpack.c.bf16 %v569, %v565
      %v654 = vpack.c.bf16 %v574, %v570
      %v655 = vpack.c.bf16 %v575, %v571
      %v656 = vpack.c.bf16 %v576, %v572
      %v657 = vpack.c.bf16 %v577, %v573
      %v658 = vpack.c.bf16 %v582, %v578
      %v659 = vpack.c.bf16 %v583, %v579
      %v660 = vpack.c.bf16 %v584, %v580
      %v661 = vpack.c.bf16 %v585, %v581
      %v662 = vpack.c.bf16 %v590, %v586
      %v663 = vpack.c.bf16 %v591, %v587
      %v664 = vpack.c.bf16 %v592, %v588
      %v665 = vpack.c.bf16 %v593, %v589
      %v666 = vpack.c.bf16 %v598, %v594
      %v667 = vpack.c.bf16 %v599, %v595
      %v668 = vpack.c.bf16 %v600, %v596
      %v669 = vpack.c.bf16 %v601, %v597
      %v670 = vpack.c.bf16 %v606, %v602
      %v671 = vpack.c.bf16 %v607, %v603
      %v672 = vpack.c.bf16 %v608, %v604
      %v673 = vpack.c.bf16 %v609, %v605
      %v674 = vld [vmem:[%s1] sm:$0xf]
      %v675 = vld [vmem:[%s1 + $0x4] sm:$0xf]
      %v676 = vld [vmem:[%s1 + $0x8] sm:$0xf]
      %v677 = vld [vmem:[%s1 + $0xc] sm:$0xf]
      %v678 = vld [vmem:[%s1 + $0x10] sm:$0xf]
      %v679 = vld [vmem:[%s1 + $0x14] sm:$0xf]
      %v680 = vld [vmem:[%s1 + $0x18] sm:$0xf]
      %v681 = vld [vmem:[%s1 + $0x1c] sm:$0xf]
      %v682 = vld [vmem:[%s1 + $0x20] sm:$0xf]
      %v683 = vld [vmem:[%s1 + $0x24] sm:$0xf]
      %v684 = vld [vmem:[%s1 + $0x28] sm:$0xf]
      %v685 = vld [vmem:[%s1 + $0x2c] sm:$0xf]
      %v686 = vld [vmem:[%s1 + $0x30] sm:$0xf]
      %v687 = vld [vmem:[%s1 + $0x34] sm:$0xf]
      %v688 = vld [vmem:[%s1 + $0x38] sm:$0xf]
      %v689 = vld [vmem:[%s1 + $0x3c] sm:$0xf]
      %v690 = vld [vmem:[%s1 + $0x40] sm:$0xf]
      %v691 = vld [vmem:[%s1 + $0x44] sm:$0xf]
      %v692 = vld [vmem:[%s1 + $0x48] sm:$0xf]
      %v693 = vld [vmem:[%s1 + $0x4c] sm:$0xf]
      %v694 = vld [vmem:[%s1 + $0x50] sm:$0xf]
      %v695 = vld [vmem:[%s1 + $0x54] sm:$0xf]
      %v696 = vld [vmem:[%s1 + $0x58] sm:$0xf]
      %v697 = vld [vmem:[%s1 + $0x5c] sm:$0xf]
      %v698 = vld [vmem:[%s1 + $0x60] sm:$0xf]
      %v699 = vld [vmem:[%s1 + $0x64] sm:$0xf]
      %v700 = vld [vmem:[%s1 + $0x68] sm:$0xf]
      %v701 = vld [vmem:[%s1 + $0x6c] sm:$0xf]
      %v702 = vld [vmem:[%s1 + $0x70] sm:$0xf]
      %v703 = vld [vmem:[%s1 + $0x74] sm:$0xf]
      %v704 = vld [vmem:[%s1 + $0x78] sm:$0xf]
      %v705 = vld [vmem:[%s1 + $0x7c] sm:$0xf]
      %v706 = vld [vmem:[%s1 + $0x80] sm:$0xf]
      %v707 = vld [vmem:[%s1 + $0x84] sm:$0xf]
      %v708 = vld [vmem:[%s1 + $0x88] sm:$0xf]
      %v709 = vld [vmem:[%s1 + $0x8c] sm:$0xf]
      %v710 = vld [vmem:[%s1 + $0x90] sm:$0xf]
      %v711 = vld [vmem:[%s1 + $0x94] sm:$0xf]
      %v712 = vld [vmem:[%s1 + $0x98] sm:$0xf]
      %v713 = vld [vmem:[%s1 + $0x9c] sm:$0xf]
      %v714 = vld [vmem:[%s1 + $0xa0] sm:$0xf]
      %v715 = vld [vmem:[%s1 + $0xa4] sm:$0xf]
      %v716 = vld [vmem:[%s1 + $0xa8] sm:$0xf]
      %v717 = vld [vmem:[%s1 + $0xac] sm:$0xf]
      %v718 = vld [vmem:[%s1 + $0xb0] sm:$0xf]
      %v719 = vld [vmem:[%s1 + $0xb4] sm:$0xf]
      %v720 = vld [vmem:[%s1 + $0xb8] sm:$0xf]
      %v721 = vld [vmem:[%s1 + $0xbc] sm:$0xf]
      %v722 = vld [vmem:[%s1 + $0xc0] sm:$0xf]
      %v723 = vld [vmem:[%s1 + $0xc4] sm:$0xf]
      %v724 = vld [vmem:[%s1 + $0xc8] sm:$0xf]
      %v725 = vld [vmem:[%s1 + $0xcc] sm:$0xf]
      %v726 = vld [vmem:[%s1 + $0xd0] sm:$0xf]
      %v727 = vld [vmem:[%s1 + $0xd4] sm:$0xf]
      %v728 = vld [vmem:[%s1 + $0xd8] sm:$0xf]
      %v729 = vld [vmem:[%s1 + $0xdc] sm:$0xf]
      %v730 = vld [vmem:[%s1 + $0xe0] sm:$0xf]
      %v731 = vld [vmem:[%s1 + $0xe4] sm:$0xf]
      %v732 = vld [vmem:[%s1 + $0xe8] sm:$0xf]
      %v733 = vld [vmem:[%s1 + $0xec] sm:$0xf]
      %v734 = vld [vmem:[%s1 + $0xf0] sm:$0xf]
      %v735 = vld [vmem:[%s1 + $0xf4] sm:$0xf]
      %v736 = vld [vmem:[%s1 + $0xf8] sm:$0xf]
      %v737 = vld [vmem:[%s1 + $0xfc] sm:$0xf]
      %v738 = vld [vmem:[%s307] sm:$0xff]
      %v739 = vld [vmem:[%s307 + $0x8] sm:$0xff]
      %v740 = vld [vmem:[%s307 + $0x10] sm:$0xff]
      %v741 = vld [vmem:[%s307 + $0x18] sm:$0xff]
      %v742 = vld [vmem:[%s307 + $0x20] sm:$0xff]
      %v743 = vld [vmem:[%s307 + $0x28] sm:$0xff]
      %v744 = vld [vmem:[%s307 + $0x30] sm:$0xff]
      %v745 = vld [vmem:[%s307 + $0x38] sm:$0xff]
      %v746 = vld [vmem:[%s307 + $0x40] sm:$0xff]
      %v747 = vld [vmem:[%s307 + $0x48] sm:$0xff]
      %v748 = vld [vmem:[%s307 + $0x50] sm:$0xff]
      %v749 = vld [vmem:[%s307 + $0x58] sm:$0xff]
      %v750 = vld [vmem:[%s307 + $0x60] sm:$0xff]
      %v751 = vld [vmem:[%s307 + $0x68] sm:$0xff]
      %v752 = vld [vmem:[%s307 + $0x70] sm:$0xff]
      %v753 = vld [vmem:[%s307 + $0x78] sm:$0xff]
      %v754 = vld [vmem:[%s307 + $0x80] sm:$0xff]
      %v755 = vld [vmem:[%s307 + $0x88] sm:$0xff]
      %v756 = vld [vmem:[%s307 + $0x90] sm:$0xff]
      %v757 = vld [vmem:[%s307 + $0x98] sm:$0xff]
      %v758 = vld [vmem:[%s307 + $0xa0] sm:$0xff]
      %v759 = vld [vmem:[%s307 + $0xa8] sm:$0xff]
      %v760 = vld [vmem:[%s307 + $0xb0] sm:$0xff]
      %v761 = vld [vmem:[%s307 + $0xb8] sm:$0xff]
      %v762 = vld [vmem:[%s307 + $0xc0] sm:$0xff]
      %v763 = vld [vmem:[%s307 + $0xc8] sm:$0xff]
      %v764 = vld [vmem:[%s307 + $0xd0] sm:$0xff]
      %v765 = vld [vmem:[%s307 + $0xd8] sm:$0xff]
      %v766 = vld [vmem:[%s307 + $0xe0] sm:$0xff]
      %v767 = vld [vmem:[%s307 + $0xe8] sm:$0xff]
      %v768 = vld [vmem:[%s307 + $0xf0] sm:$0xff]
      %v769 = vld [vmem:[%s307 + $0xf8] sm:$0xff]
      %v834 = vunpack.c.l.b16 %v674
      %v835 = vunpack.c.l.b16 %v675
      %v836 = vunpack.c.l.b16 %v676
      %v837 = vunpack.c.l.b16 %v677
      %v838 = vunpack.c.l.b16 %v678
      %v839 = vunpack.c.l.b16 %v679
      %v840 = vunpack.c.l.b16 %v680
      %v841 = vunpack.c.l.b16 %v681
      %v842 = vunpack.c.l.b16 %v682
      %v843 = vunpack.c.l.b16 %v683
      %v844 = vunpack.c.l.b16 %v684
      %v845 = vunpack.c.l.b16 %v685
      %v846 = vunpack.c.l.b16 %v686
      %v847 = vunpack.c.l.b16 %v687
      %v848 = vunpack.c.l.b16 %v688
      %v849 = vunpack.c.l.b16 %v689
      %v850 = vunpack.c.l.b16 %v690
      %v851 = vunpack.c.l.b16 %v691
      %v852 = vunpack.c.l.b16 %v692
      %v853 = vunpack.c.l.b16 %v693
      %v854 = vunpack.c.l.b16 %v694
      %v855 = vunpack.c.l.b16 %v695
      %v856 = vunpack.c.l.b16 %v696
      %v857 = vunpack.c.l.b16 %v697
      %v858 = vunpack.c.l.b16 %v698
      %v859 = vunpack.c.l.b16 %v699
      %v860 = vunpack.c.l.b16 %v700
      %v861 = vunpack.c.l.b16 %v701
      %v862 = vunpack.c.l.b16 %v702
      %v863 = vunpack.c.l.b16 %v703
      %v864 = vunpack.c.l.b16 %v704
      %v865 = vunpack.c.l.b16 %v705
      %v866 = vunpack.c.l.b16 %v706
      %v867 = vunpack.c.l.b16 %v707
      %v868 = vunpack.c.l.b16 %v708
      %v869 = vunpack.c.l.b16 %v709
      %v870 = vunpack.c.l.b16 %v710
      %v871 = vunpack.c.l.b16 %v711
      %v872 = vunpack.c.l.b16 %v712
      %v873 = vunpack.c.l.b16 %v713
      %v874 = vunpack.c.l.b16 %v714
      %v875 = vunpack.c.l.b16 %v715
      %v876 = vunpack.c.l.b16 %v716
      %v877 = vunpack.c.l.b16 %v717
      %v878 = vunpack.c.l.b16 %v718
      %v879 = vunpack.c.l.b16 %v719
      %v880 = vunpack.c.l.b16 %v720
      %v881 = vunpack.c.l.b16 %v721
      %v882 = vunpack.c.l.b16 %v722
      %v883 = vunpack.c.l.b16 %v723
      %v884 = vunpack.c.l.b16 %v724
      %v885 = vunpack.c.l.b16 %v725
      %v886 = vunpack.c.l.b16 %v726
      %v887 = vunpack.c.l.b16 %v727
      %v888 = vunpack.c.l.b16 %v728
      %v889 = vunpack.c.l.b16 %v729
      %v890 = vunpack.c.l.b16 %v730
      %v891 = vunpack.c.l.b16 %v731
      %v892 = vunpack.c.l.b16 %v732
      %v893 = vunpack.c.l.b16 %v733
      %v894 = vunpack.c.l.b16 %v734
      %v895 = vunpack.c.l.b16 %v735
      %v896 = vunpack.c.l.b16 %v736
      %v897 = vunpack.c.l.b16 %v737
      %v898 = vpack.c.b16 %v835, %v834
      %v899 = vpack.c.b16 %v837, %v836
      %v900 = vpack.c.b16 %v839, %v838
      %v901 = vpack.c.b16 %v841, %v840
      %v902 = vpack.c.b16 %v843, %v842
      %v903 = vpack.c.b16 %v845, %v844
      %v904 = vpack.c.b16 %v847, %v846
      %v905 = vpack.c.b16 %v849, %v848
      %v906 = vpack.c.b16 %v851, %v850
      %v907 = vpack.c.b16 %v853, %v852
      %v908 = vpack.c.b16 %v855, %v854
      %v909 = vpack.c.b16 %v857, %v856
      %v910 = vpack.c.b16 %v859, %v858
      %v911 = vpack.c.b16 %v861, %v860
      %v912 = vpack.c.b16 %v863, %v862
      %v913 = vpack.c.b16 %v865, %v864
      %v914 = vpack.c.b16 %v867, %v866
      %v915 = vpack.c.b16 %v869, %v868
      %v916 = vpack.c.b16 %v871, %v870
      %v917 = vpack.c.b16 %v873, %v872
      %v918 = vpack.c.b16 %v875, %v874
      %v919 = vpack.c.b16 %v877, %v876
      %v920 = vpack.c.b16 %v879, %v878
      %v921 = vpack.c.b16 %v881, %v880
      %v922 = vpack.c.b16 %v883, %v882
      %v923 = vpack.c.b16 %v885, %v884
      %v924 = vpack.c.b16 %v887, %v886
      %v925 = vpack.c.b16 %v889, %v888
      %v926 = vpack.c.b16 %v891, %v890
      %v927 = vpack.c.b16 %v893, %v892
      %v928 = vpack.c.b16 %v895, %v894
      %v929 = vpack.c.b16 %v897, %v896
      %962 = vmatpush.bf16.msra.mxu0 %v905
      %963 = vmatpush.bf16.msra.mxu0 %v904
      %964 = vmatpush.bf16.msra.mxu0 %v903
      %965 = vmatpush.bf16.msra.mxu0 %v902
      %966 = vmatpush.bf16.msra.mxu0 %v901
      %967 = vmatpush.bf16.msra.mxu0 %v900
      %968 = vmatpush.bf16.msra.mxu0 %v899
      %969 = vmatpush.bf16.msra.mxu0 %v898
      %970 = vmatmul.bf16.gmra.mxu0 %v610
      %v971 = vpop.f32.mrf.mxu0
      %v972 = vadd.f32 %v738, %v971
      %v973 = vpop.f32.mrf.mxu0
      %v974 = vadd.f32 %v739, %v973
      %975 = vmatmul.bf16.gmra.mxu0 %v614
      %v976 = vpop.f32.mrf.mxu0
      %v977 = vadd.f32 %v740, %v976
      %v978 = vpop.f32.mrf.mxu0
      %v979 = vadd.f32 %v741, %v978
      %980 = vmatmul.bf16.gmra.mxu0 %v618
      %v981 = vpop.f32.mrf.mxu0
      %v982 = vadd.f32 %v742, %v981
      %v983 = vpop.f32.mrf.mxu0
      %v984 = vadd.f32 %v743, %v983
      %985 = vmatmul.bf16.gmra.mxu0 %v622
      %v986 = vpop.f32.mrf.mxu0
      %v987 = vadd.f32 %v744, %v986
      %v988 = vpop.f32.mrf.mxu0
      %v989 = vadd.f32 %v745, %v988
      %990 = vmatmul.bf16.gmra.mxu0 %v626
      %v991 = vpop.f32.mrf.mxu0
      %v992 = vadd.f32 %v746, %v991
      %v993 = vpop.f32.mrf.mxu0
      %v994 = vadd.f32 %v747, %v993
      %995 = vmatmul.bf16.gmra.mxu0 %v630
      %v996 = vpop.f32.mrf.mxu0
      %v997 = vadd.f32 %v748, %v996
      %v998 = vpop.f32.mrf.mxu0
      %v999 = vadd.f32 %v749, %v998
      %1000 = vmatmul.bf16.gmra.mxu0 %v634
      %v1001 = vpop.f32.mrf.mxu0
      %v1002 = vadd.f32 %v750, %v1001
      %v1003 = vpop.f32.mrf.mxu0
      %v1004 = vadd.f32 %v751, %v1003
      %1005 = vmatmul.bf16.gmra.mxu0 %v638
      %v1006 = vpop.f32.mrf.mxu0
      %v1007 = vadd.f32 %v752, %v1006
      %v1008 = vpop.f32.mrf.mxu0
      %v1009 = vadd.f32 %v753, %v1008
      %1010 = vmatmul.bf16.gmra.mxu0 %v642
      %v1011 = vpop.f32.mrf.mxu0
      %v1012 = vadd.f32 %v754, %v1011
      %v1013 = vpop.f32.mrf.mxu0
      %v1014 = vadd.f32 %v755, %v1013
      %1015 = vmatmul.bf16.gmra.mxu0 %v646
      %v1016 = vpop.f32.mrf.mxu0
      %v1017 = vadd.f32 %v756, %v1016
      %v1018 = vpop.f32.mrf.mxu0
      %v1019 = vadd.f32 %v757, %v1018
      %1020 = vmatmul.bf16.gmra.mxu0 %v650
      %v1021 = vpop.f32.mrf.mxu0
      %v1022 = vadd.f32 %v758, %v1021
      %v1023 = vpop.f32.mrf.mxu0
      %v1024 = vadd.f32 %v759, %v1023
      %1025 = vmatmul.bf16.gmra.mxu0 %v654
      %v1026 = vpop.f32.mrf.mxu0
      %v1027 = vadd.f32 %v760, %v1026
      %v1028 = vpop.f32.mrf.mxu0
      %v1029 = vadd.f32 %v761, %v1028
      %1030 = vmatmul.bf16.gmra.mxu0 %v658
      %v1031 = vpop.f32.mrf.mxu0
      %v1032 = vadd.f32 %v762, %v1031
      %v1033 = vpop.f32.mrf.mxu0
      %v1034 = vadd.f32 %v763, %v1033
      %1035 = vmatmul.bf16.gmra.mxu0 %v662
      %v1036 = vpop.f32.mrf.mxu0
      %v1037 = vadd.f32 %v764, %v1036
      %v1038 = vpop.f32.mrf.mxu0
      %v1039 = vadd.f32 %v765, %v1038
      %1040 = vmatmul.bf16.gmra.mxu0 %v666
      %v1041 = vpop.f32.mrf.mxu0
      %v1042 = vadd.f32 %v766, %v1041
      %v1043 = vpop.f32.mrf.mxu0
      %v1044 = vadd.f32 %v767, %v1043
      %1045 = vmatmul.bf16.gmra.mxu0 %v670
      %v1046 = vpop.f32.mrf.mxu0
      %v1047 = vadd.f32 %v768, %v1046
      %v1048 = vpop.f32.mrf.mxu0
      %v1049 = vadd.f32 %v769, %v1048
      %1050 = vdwg.mxu0
      %1051 = vmatpush.bf16.msra.mxu0 %v913
      %1052 = vmatpush.bf16.msra.mxu0 %v912
      %1053 = vmatpush.bf16.msra.mxu0 %v911
      %1054 = vmatpush.bf16.msra.mxu0 %v910
      %1055 = vmatpush.bf16.msra.mxu0 %v909
      %1056 = vmatpush.bf16.msra.mxu0 %v908
      %1057 = vmatpush.bf16.msra.mxu0 %v907
      %1058 = vmatpush.bf16.msra.mxu0 %v906
      %1059 = vmatmul.bf16.gmra.mxu0 %v611
      %v1060 = vpop.f32.mrf.mxu0
      %v1061 = vadd.f32 %v972, %v1060
      %v1062 = vpop.f32.mrf.mxu0
      %v1063 = vadd.f32 %v974, %v1062
      %1064 = vmatmul.bf16.gmra.mxu0 %v615
      %v1065 = vpop.f32.mrf.mxu0
      %v1066 = vadd.f32 %v977, %v1065
      %v1067 = vpop.f32.mrf.mxu0
      %v1068 = vadd.f32 %v979, %v1067
      %1069 = vmatmul.bf16.gmra.mxu0 %v619
      %v1070 = vpop.f32.mrf.mxu0
      %v1071 = vadd.f32 %v982, %v1070
      %v1072 = vpop.f32.mrf.mxu0
      %v1073 = vadd.f32 %v984, %v1072
      %1074 = vmatmul.bf16.gmra.mxu0 %v623
      %v1075 = vpop.f32.mrf.mxu0
      %v1076 = vadd.f32 %v987, %v1075
      %v1077 = vpop.f32.mrf.mxu0
      %v1078 = vadd.f32 %v989, %v1077
      %1079 = vmatmul.bf16.gmra.mxu0 %v627
      %v1080 = vpop.f32.mrf.mxu0
      %v1081 = vadd.f32 %v992, %v1080
      %v1082 = vpop.f32.mrf.mxu0
      %v1083 = vadd.f32 %v994, %v1082
      %1084 = vmatmul.bf16.gmra.mxu0 %v631
      %v1085 = vpop.f32.mrf.mxu0
      %v1086 = vadd.f32 %v997, %v1085
      %v1087 = vpop.f32.mrf.mxu0
      %v1088 = vadd.f32 %v999, %v1087
      %1089 = vmatmul.bf16.gmra.mxu0 %v635
      %v1090 = vpop.f32.mrf.mxu0
      %v1091 = vadd.f32 %v1002, %v1090
      %v1092 = vpop.f32.mrf.mxu0
      %v1093 = vadd.f32 %v1004, %v1092
      %1094 = vmatmul.bf16.gmra.mxu0 %v639
      %v1095 = vpop.f32.mrf.mxu0
      %v1096 = vadd.f32 %v1007, %v1095
      %v1097 = vpop.f32.mrf.mxu0
      %v1098 = vadd.f32 %v1009, %v1097
      %1099 = vmatmul.bf16.gmra.mxu0 %v643
      %v1100 = vpop.f32.mrf.mxu0
      %v1101 = vadd.f32 %v1012, %v1100
      %v1102 = vpop.f32.mrf.mxu0
      %v1103 = vadd.f32 %v1014, %v1102
      %1104 = vmatmul.bf16.gmra.mxu0 %v647
      %v1105 = vpop.f32.mrf.mxu0
      %v1106 = vadd.f32 %v1017, %v1105
      %v1107 = vpop.f32.mrf.mxu0
      %v1108 = vadd.f32 %v1019, %v1107
      %1109 = vmatmul.bf16.gmra.mxu0 %v651
      %v1110 = vpop.f32.mrf.mxu0
      %v1111 = vadd.f32 %v1022, %v1110
      %v1112 = vpop.f32.mrf.mxu0
      %v1113 = vadd.f32 %v1024, %v1112
      %1114 = vmatmul.bf16.gmra.mxu0 %v655
      %v1115 = vpop.f32.mrf.mxu0
      %v1116 = vadd.f32 %v1027, %v1115
      %v1117 = vpop.f32.mrf.mxu0
      %v1118 = vadd.f32 %v1029, %v1117
      %1119 = vmatmul.bf16.gmra.mxu0 %v659
      %v1120 = vpop.f32.mrf.mxu0
      %v1121 = vadd.f32 %v1032, %v1120
      %v1122 = vpop.f32.mrf.mxu0
      %v1123 = vadd.f32 %v1034, %v1122
      %1124 = vmatmul.bf16.gmra.mxu0 %v663
      %v1125 = vpop.f32.mrf.mxu0
      %v1126 = vadd.f32 %v1037, %v1125
      %v1127 = vpop.f32.mrf.mxu0
      %v1128 = vadd.f32 %v1039, %v1127
      %1129 = vmatmul.bf16.gmra.mxu0 %v667
      %v1130 = vpop.f32.mrf.mxu0
      %v1131 = vadd.f32 %v1042, %v1130
      %v1132 = vpop.f32.mrf.mxu0
      %v1133 = vadd.f32 %v1044, %v1132
      %1134 = vmatmul.bf16.gmra.mxu0 %v671
      %v1135 = vpop.f32.mrf.mxu0
      %v1136 = vadd.f32 %v1047, %v1135
      %v1137 = vpop.f32.mrf.mxu0
      %v1138 = vadd.f32 %v1049, %v1137
      %1139 = vdwg.mxu0
      %1140 = vmatpush.bf16.msra.mxu0 %v921
      %1141 = vmatpush.bf16.msra.mxu0 %v920
      %1142 = vmatpush.bf16.msra.mxu0 %v919
      %1143 = vmatpush.bf16.msra.mxu0 %v918
      %1144 = vmatpush.bf16.msra.mxu0 %v917
      %1145 = vmatpush.bf16.msra.mxu0 %v916
      %1146 = vmatpush.bf16.msra.mxu0 %v915
      %1147 = vmatpush.bf16.msra.mxu0 %v914
      %1148 = vmatmul.bf16.gmra.mxu0 %v612
      %v1149 = vpop.f32.mrf.mxu0
      %v1150 = vadd.f32 %v1061, %v1149
      %v1151 = vpop.f32.mrf.mxu0
      %v1152 = vadd.f32 %v1063, %v1151
      %1153 = vmatmul.bf16.gmra.mxu0 %v616
      %v1154 = vpop.f32.mrf.mxu0
      %v1155 = vadd.f32 %v1066, %v1154
      %v1156 = vpop.f32.mrf.mxu0
      %v1157 = vadd.f32 %v1068, %v1156
      %1158 = vmatmul.bf16.gmra.mxu0 %v620
      %v1159 = vpop.f32.mrf.mxu0
      %v1160 = vadd.f32 %v1071, %v1159
      %v1161 = vpop.f32.mrf.mxu0
      %v1162 = vadd.f32 %v1073, %v1161
      %1163 = vmatmul.bf16.gmra.mxu0 %v624
      %v1164 = vpop.f32.mrf.mxu0
      %v1165 = vadd.f32 %v1076, %v1164
      %v1166 = vpop.f32.mrf.mxu0
      %v1167 = vadd.f32 %v1078, %v1166
      %1168 = vmatmul.bf16.gmra.mxu0 %v628
      %v1169 = vpop.f32.mrf.mxu0
      %v1170 = vadd.f32 %v1081, %v1169
      %v1171 = vpop.f32.mrf.mxu0
      %v1172 = vadd.f32 %v1083, %v1171
      %1173 = vmatmul.bf16.gmra.mxu0 %v632
      %v1174 = vpop.f32.mrf.mxu0
      %v1175 = vadd.f32 %v1086, %v1174
      %v1176 = vpop.f32.mrf.mxu0
      %v1177 = vadd.f32 %v1088, %v1176
      %1178 = vmatmul.bf16.gmra.mxu0 %v636
      %v1179 = vpop.f32.mrf.mxu0
      %v1180 = vadd.f32 %v1091, %v1179
      %v1181 = vpop.f32.mrf.mxu0
      %v1182 = vadd.f32 %v1093, %v1181
      %1183 = vmatmul.bf16.gmra.mxu0 %v640
      %v1184 = vpop.f32.mrf.mxu0
      %v1185 = vadd.f32 %v1096, %v1184
      %v1186 = vpop.f32.mrf.mxu0
      %v1187 = vadd.f32 %v1098, %v1186
      %1188 = vmatmul.bf16.gmra.mxu0 %v644
      %v1189 = vpop.f32.mrf.mxu0
      %v1190 = vadd.f32 %v1101, %v1189
      %v1191 = vpop.f32.mrf.mxu0
      %v1192 = vadd.f32 %v1103, %v1191
      %1193 = vmatmul.bf16.gmra.mxu0 %v648
      %v1194 = vpop.f32.mrf.mxu0
      %v1195 = vadd.f32 %v1106, %v1194
      %v1196 = vpop.f32.mrf.mxu0
      %v1197 = vadd.f32 %v1108, %v1196
      %1198 = vmatmul.bf16.gmra.mxu0 %v652
      %v1199 = vpop.f32.mrf.mxu0
      %v1200 = vadd.f32 %v1111, %v1199
      %v1201 = vpop.f32.mrf.mxu0
      %v1202 = vadd.f32 %v1113, %v1201
      %1203 = vmatmul.bf16.gmra.mxu0 %v656
      %v1204 = vpop.f32.mrf.mxu0
      %v1205 = vadd.f32 %v1116, %v1204
      %v1206 = vpop.f32.mrf.mxu0
      %v1207 = vadd.f32 %v1118, %v1206
      %1208 = vmatmul.bf16.gmra.mxu0 %v660
      %v1209 = vpop.f32.mrf.mxu0
      %v1210 = vadd.f32 %v1121, %v1209
      %v1211 = vpop.f32.mrf.mxu0
      %v1212 = vadd.f32 %v1123, %v1211
      %1213 = vmatmul.bf16.gmra.mxu0 %v664
      %v1214 = vpop.f32.mrf.mxu0
      %v1215 = vadd.f32 %v1126, %v1214
      %v1216 = vpop.f32.mrf.mxu0
      %v1217 = vadd.f32 %v1128, %v1216
      %1218 = vmatmul.bf16.gmra.mxu0 %v668
      %v1219 = vpop.f32.mrf.mxu0
      %v1220 = vadd.f32 %v1131, %v1219
      %v1221 = vpop.f32.mrf.mxu0
      %v1222 = vadd.f32 %v1133, %v1221
      %1223 = vmatmul.bf16.gmra.mxu0 %v672
      %v1224 = vpop.f32.mrf.mxu0
      %v1225 = vadd.f32 %v1136, %v1224
      %v1226 = vpop.f32.mrf.mxu0
      %v1227 = vadd.f32 %v1138, %v1226
      %1228 = vdwg.mxu0
      %1229 = vmatpush.bf16.msra.mxu0 %v929
      %1230 = vmatpush.bf16.msra.mxu0 %v928
      %1231 = vmatpush.bf16.msra.mxu0 %v927
      %1232 = vmatpush.bf16.msra.mxu0 %v926
      %1233 = vmatpush.bf16.msra.mxu0 %v925
      %1234 = vmatpush.bf16.msra.mxu0 %v924
      %1235 = vmatpush.bf16.msra.mxu0 %v923
      %1236 = vmatpush.bf16.msra.mxu0 %v922
      %1237 = vmatmul.bf16.gmra.mxu0 %v613
      %v1238 = vpop.f32.mrf.mxu0
      %v1239 = vadd.f32 %v1150, %v1238
      %v1240 = vpop.f32.mrf.mxu0
      %v1241 = vadd.f32 %v1152, %v1240
      %1242 = vmatmul.bf16.gmra.mxu0 %v617
      %v1243 = vpop.f32.mrf.mxu0
      %v1244 = vadd.f32 %v1155, %v1243
      %v1245 = vpop.f32.mrf.mxu0
      %v1246 = vadd.f32 %v1157, %v1245
      %1247 = vmatmul.bf16.gmra.mxu0 %v621
      %v1248 = vpop.f32.mrf.mxu0
      %v1249 = vadd.f32 %v1160, %v1248
      %v1250 = vpop.f32.mrf.mxu0
      %v1251 = vadd.f32 %v1162, %v1250
      %1252 = vmatmul.bf16.gmra.mxu0 %v625
      %v1253 = vpop.f32.mrf.mxu0
      %v1254 = vadd.f32 %v1165, %v1253
      %v1255 = vpop.f32.mrf.mxu0
      %v1256 = vadd.f32 %v1167, %v1255
      %1257 = vmatmul.bf16.gmra.mxu0 %v629
      %v1258 = vpop.f32.mrf.mxu0
      %v1259 = vadd.f32 %v1170, %v1258
      %v1260 = vpop.f32.mrf.mxu0
      %v1261 = vadd.f32 %v1172, %v1260
      %1262 = vmatmul.bf16.gmra.mxu0 %v633
      %v1263 = vpop.f32.mrf.mxu0
      %v1264 = vadd.f32 %v1175, %v1263
      %v1265 = vpop.f32.mrf.mxu0
      %v1266 = vadd.f32 %v1177, %v1265
      %1267 = vmatmul.bf16.gmra.mxu0 %v637
      %v1268 = vpop.f32.mrf.mxu0
      %v1269 = vadd.f32 %v1180, %v1268
      %v1270 = vpop.f32.mrf.mxu0
      %v1271 = vadd.f32 %v1182, %v1270
      %1272 = vmatmul.bf16.gmra.mxu0 %v641
      %v1273 = vpop.f32.mrf.mxu0
      %v1274 = vadd.f32 %v1185, %v1273
      %v1275 = vpop.f32.mrf.mxu0
      %v1276 = vadd.f32 %v1187, %v1275
      %1277 = vmatmul.bf16.gmra.mxu0 %v645
      %v1278 = vpop.f32.mrf.mxu0
      %v1279 = vadd.f32 %v1190, %v1278
      %v1280 = vpop.f32.mrf.mxu0
      %v1281 = vadd.f32 %v1192, %v1280
      %1282 = vmatmul.bf16.gmra.mxu0 %v649
      %v1283 = vpop.f32.mrf.mxu0
      %v1284 = vadd.f32 %v1195, %v1283
      %v1285 = vpop.f32.mrf.mxu0
      %v1286 = vadd.f32 %v1197, %v1285
      %1287 = vmatmul.bf16.gmra.mxu0 %v653
      %v1288 = vpop.f32.mrf.mxu0
      %v1289 = vadd.f32 %v1200, %v1288
      %v1290 = vpop.f32.mrf.mxu0
      %v1291 = vadd.f32 %v1202, %v1290
      %1292 = vmatmul.bf16.gmra.mxu0 %v657
      %v1293 = vpop.f32.mrf.mxu0
      %v1294 = vadd.f32 %v1205, %v1293
      %v1295 = vpop.f32.mrf.mxu0
      %v1296 = vadd.f32 %v1207, %v1295
      %1297 = vmatmul.bf16.gmra.mxu0 %v661
      %v1298 = vpop.f32.mrf.mxu0
      %v1299 = vadd.f32 %v1210, %v1298
      %v1300 = vpop.f32.mrf.mxu0
      %v1301 = vadd.f32 %v1212, %v1300
      %1302 = vmatmul.bf16.gmra.mxu0 %v665
      %v1303 = vpop.f32.mrf.mxu0
      %v1304 = vadd.f32 %v1215, %v1303
      %v1305 = vpop.f32.mrf.mxu0
      %v1306 = vadd.f32 %v1217, %v1305
      %1307 = vmatmul.bf16.gmra.mxu0 %v669
      %v1308 = vpop.f32.mrf.mxu0
      %v1309 = vadd.f32 %v1220, %v1308
      %v1310 = vpop.f32.mrf.mxu0
      %v1311 = vadd.f32 %v1222, %v1310
      %1312 = vmatmul.bf16.gmra.mxu0 %v673
      %v1313 = vpop.f32.mrf.mxu0
      %v1314 = vadd.f32 %v1225, %v1313
      %v1315 = vpop.f32.mrf.mxu0
      %v1316 = vadd.f32 %v1227, %v1315
      %1317 = vdwg.mxu0
      %v1318 = vld [vmem:[%s3] sm:$0x1]
      %v1320 = vperm.slane %v1318, 0
      %v1322 = vadd.f32 %v1239, %v1320
      %v1323 = vadd.f32 %v1241, %v1320
      %v1324 = vadd.f32 %v1244, %v1320
      %v1325 = vadd.f32 %v1246, %v1320
      %v1326 = vadd.f32 %v1249, %v1320
      %v1327 = vadd.f32 %v1251, %v1320
      %v1328 = vadd.f32 %v1254, %v1320
      %v1329 = vadd.f32 %v1256, %v1320
      %v1330 = vadd.f32 %v1259, %v1320
      %v1331 = vadd.f32 %v1261, %v1320
      %v1332 = vadd.f32 %v1264, %v1320
      %v1333 = vadd.f32 %v1266, %v1320
      %v1334 = vadd.f32 %v1269, %v1320
      %v1335 = vadd.f32 %v1271, %v1320
      %v1336 = vadd.f32 %v1274, %v1320
      %v1337 = vadd.f32 %v1276, %v1320
      %v1338 = vadd.f32 %v1279, %v1320
      %v1339 = vadd.f32 %v1281, %v1320
      %v1340 = vadd.f32 %v1284, %v1320
      %v1341 = vadd.f32 %v1286, %v1320
      %v1342 = vadd.f32 %v1289, %v1320
      %v1343 = vadd.f32 %v1291, %v1320
      %v1344 = vadd.f32 %v1294, %v1320
      %v1345 = vadd.f32 %v1296, %v1320
      %v1346 = vadd.f32 %v1299, %v1320
      %v1347 = vadd.f32 %v1301, %v1320
      %v1348 = vadd.f32 %v1304, %v1320
      %v1349 = vadd.f32 %v1306, %v1320
      %v1350 = vadd.f32 %v1309, %v1320
      %v1351 = vadd.f32 %v1311, %v1320
      %v1352 = vadd.f32 %v1314, %v1320
      %v1353 = vadd.f32 %v1316, %v1320
      %v1354 = vmax.f32 %v1322, 0.0
      %v1355 = vmax.f32 %v1323, 0.0
      %v1356 = vmax.f32 %v1324, 0.0
      %v1357 = vmax.f32 %v1325, 0.0
      %v1358 = vmax.f32 %v1326, 0.0
      %v1359 = vmax.f32 %v1327, 0.0
      %v1360 = vmax.f32 %v1328, 0.0
      %v1361 = vmax.f32 %v1329, 0.0
      %v1362 = vmax.f32 %v1330, 0.0
      %v1363 = vmax.f32 %v1331, 0.0
      %v1364 = vmax.f32 %v1332, 0.0
      %v1365 = vmax.f32 %v1333, 0.0
      %v1366 = vmax.f32 %v1334, 0.0
      %v1367 = vmax.f32 %v1335, 0.0
      %v1368 = vmax.f32 %v1336, 0.0
      %v1369 = vmax.f32 %v1337, 0.0
      %v1370 = vmax.f32 %v1338, 0.0
      %v1371 = vmax.f32 %v1339, 0.0
      %v1372 = vmax.f32 %v1340, 0.0
      %v1373 = vmax.f32 %v1341, 0.0
      %v1374 = vmax.f32 %v1342, 0.0
      %v1375 = vmax.f32 %v1343, 0.0
      %v1376 = vmax.f32 %v1344, 0.0
      %v1377 = vmax.f32 %v1345, 0.0
      %v1378 = vmax.f32 %v1346, 0.0
      %v1379 = vmax.f32 %v1347, 0.0
      %v1380 = vmax.f32 %v1348, 0.0
      %v1381 = vmax.f32 %v1349, 0.0
      %v1382 = vmax.f32 %v1350, 0.0
      %v1383 = vmax.f32 %v1351, 0.0
      %v1384 = vmax.f32 %v1352, 0.0
      %v1385 = vmax.f32 %v1353, 0.0
      %v1386 = vpack.c.bf16 %v1355, %v1354
      %v1387 = vpack.c.bf16 %v1357, %v1356
      %v1388 = vpack.c.bf16 %v1359, %v1358
      %v1389 = vpack.c.bf16 %v1361, %v1360
      %v1390 = vpack.c.bf16 %v1363, %v1362
      %v1391 = vpack.c.bf16 %v1365, %v1364
      %v1392 = vpack.c.bf16 %v1367, %v1366
      %v1393 = vpack.c.bf16 %v1369, %v1368
      %v1394 = vpack.c.bf16 %v1371, %v1370
      %v1395 = vpack.c.bf16 %v1373, %v1372
      %v1396 = vpack.c.bf16 %v1375, %v1374
      %v1397 = vpack.c.bf16 %v1377, %v1376
      %v1398 = vpack.c.bf16 %v1379, %v1378
      %v1399 = vpack.c.bf16 %v1381, %v1380
      %v1400 = vpack.c.bf16 %v1383, %v1382
      %v1401 = vpack.c.bf16 %v1385, %v1384
      %v1402 = vld [vmem:[%s4] sm:$0xf]
      %v1403 = vld [vmem:[%s4 + $0x4] sm:$0xf]
      %v1404 = vld [vmem:[%s4 + $0x8] sm:$0xf]
      %v1405 = vld [vmem:[%s4 + $0xc] sm:$0xf]
      %v1406 = vld [vmem:[%s4 + $0x10] sm:$0xf]
      %v1407 = vld [vmem:[%s4 + $0x14] sm:$0xf]
      %v1408 = vld [vmem:[%s4 + $0x18] sm:$0xf]
      %v1409 = vld [vmem:[%s4 + $0x1c] sm:$0xf]
      %v1418 = vunpack.c.l.b16 %v1402
      %v1419 = vunpack.c.l.b16 %v1403
      %v1420 = vunpack.c.l.b16 %v1404
      %v1421 = vunpack.c.l.b16 %v1405
      %v1422 = vunpack.c.l.b16 %v1406
      %v1423 = vunpack.c.l.b16 %v1407
      %v1424 = vunpack.c.l.b16 %v1408
      %v1425 = vunpack.c.l.b16 %v1409
      %v1426 = vpack.c.b16 %v1419, %v1418
      %v1427 = vpack.c.b16 %v1421, %v1420
      %v1428 = vpack.c.b16 %v1423, %v1422
      %v1429 = vpack.c.b16 %v1425, %v1424
      %vm1434 = vcmask 523264
      %v1436 = vsel %vm1434, %v1386, 0
      %v1439 = vsel %vm1434, %v1387, 0
      %v1442 = vsel %vm1434, %v1388, 0
      %v1445 = vsel %vm1434, %v1389, 0
      %v1448 = vsel %vm1434, %v1390, 0
      %v1451 = vsel %vm1434, %v1391, 0
      %v1454 = vsel %vm1434, %v1392, 0
      %v1457 = vsel %vm1434, %v1393, 0
      %v1460 = vsel %vm1434, %v1394, 0
      %v1463 = vsel %vm1434, %v1395, 0
      %v1466 = vsel %vm1434, %v1396, 0
      %v1469 = vsel %vm1434, %v1397, 0
      %v1472 = vsel %vm1434, %v1398, 0
      %v1475 = vsel %vm1434, %v1399, 0
      %v1478 = vsel %vm1434, %v1400, 0
      %v1481 = vsel %vm1434, %v1401, 0
      %1483 = vmatpush.bf16.msra.mxu0 0
      %1484 = vmatpush.bf16.msra.mxu0 0
      %1485 = vmatpush.bf16.msra.mxu0 0
      %1486 = vmatpush.bf16.msra.mxu0 0
      %1487 = vmatpush.bf16.msra.mxu0 %v1429
      %1488 = vmatpush.bf16.msra.mxu0 %v1428
      %1489 = vmatpush.bf16.msra.mxu0 %v1427
      %1490 = vmatpush.bf16.msra.mxu0 %v1426
      %1491 = vmatmul.bf16.gmra.mxu0 %v1436
      %v1492 = vpop.f32.mrf.mxu0
      %v1493 = vadd.f32 0.0, %v1492
      %v1494 = vpop.f32.mrf.mxu0
      %v1495 = vadd.f32 0.0, %v1494
      %1496 = vmatmul.bf16.gmra.mxu0 %v1439
      %v1497 = vpop.f32.mrf.mxu0
      %v1498 = vadd.f32 0.0, %v1497
      %v1499 = vpop.f32.mrf.mxu0
      %v1500 = vadd.f32 0.0, %v1499
      %1501 = vmatmul.bf16.gmra.mxu0 %v1442
      %v1502 = vpop.f32.mrf.mxu0
      %v1503 = vadd.f32 0.0, %v1502
      %v1504 = vpop.f32.mrf.mxu0
      %v1505 = vadd.f32 0.0, %v1504
      %1506 = vmatmul.bf16.gmra.mxu0 %v1445
      %v1507 = vpop.f32.mrf.mxu0
      %v1508 = vadd.f32 0.0, %v1507
      %v1509 = vpop.f32.mrf.mxu0
      %v1510 = vadd.f32 0.0, %v1509
      %1511 = vmatmul.bf16.gmra.mxu0 %v1448
      %v1512 = vpop.f32.mrf.mxu0
      %v1513 = vadd.f32 0.0, %v1512
      %v1514 = vpop.f32.mrf.mxu0
      %v1515 = vadd.f32 0.0, %v1514
      %1516 = vmatmul.bf16.gmra.mxu0 %v1451
      %v1517 = vpop.f32.mrf.mxu0
      %v1518 = vadd.f32 0.0, %v1517
      %v1519 = vpop.f32.mrf.mxu0
      %v1520 = vadd.f32 0.0, %v1519
      %1521 = vmatmul.bf16.gmra.mxu0 %v1454
      %v1522 = vpop.f32.mrf.mxu0
      %v1523 = vadd.f32 0.0, %v1522
      %v1524 = vpop.f32.mrf.mxu0
      %v1525 = vadd.f32 0.0, %v1524
      %1526 = vmatmul.bf16.gmra.mxu0 %v1457
      %v1527 = vpop.f32.mrf.mxu0
      %v1528 = vadd.f32 0.0, %v1527
      %v1529 = vpop.f32.mrf.mxu0
      %v1530 = vadd.f32 0.0, %v1529
      %1531 = vmatmul.bf16.gmra.mxu0 %v1460
      %v1532 = vpop.f32.mrf.mxu0
      %v1533 = vadd.f32 0.0, %v1532
      %v1534 = vpop.f32.mrf.mxu0
      %v1535 = vadd.f32 0.0, %v1534
      %1536 = vmatmul.bf16.gmra.mxu0 %v1463
      %v1537 = vpop.f32.mrf.mxu0
      %v1538 = vadd.f32 0.0, %v1537
      %v1539 = vpop.f32.mrf.mxu0
      %v1540 = vadd.f32 0.0, %v1539
      %1541 = vmatmul.bf16.gmra.mxu0 %v1466
      %v1542 = vpop.f32.mrf.mxu0
      %v1543 = vadd.f32 0.0, %v1542
      %v1544 = vpop.f32.mrf.mxu0
      %v1545 = vadd.f32 0.0, %v1544
      %1546 = vmatmul.bf16.gmra.mxu0 %v1469
      %v1547 = vpop.f32.mrf.mxu0
      %v1548 = vadd.f32 0.0, %v1547
      %v1549 = vpop.f32.mrf.mxu0
      %v1550 = vadd.f32 0.0, %v1549
      %1551 = vmatmul.bf16.gmra.mxu0 %v1472
      %v1552 = vpop.f32.mrf.mxu0
      %v1553 = vadd.f32 0.0, %v1552
      %v1554 = vpop.f32.mrf.mxu0
      %v1555 = vadd.f32 0.0, %v1554
      %1556 = vmatmul.bf16.gmra.mxu0 %v1475
      %v1557 = vpop.f32.mrf.mxu0
      %v1558 = vadd.f32 0.0, %v1557
      %v1559 = vpop.f32.mrf.mxu0
      %v1560 = vadd.f32 0.0, %v1559
      %1561 = vmatmul.bf16.gmra.mxu0 %v1478
      %v1562 = vpop.f32.mrf.mxu0
      %v1563 = vadd.f32 0.0, %v1562
      %v1564 = vpop.f32.mrf.mxu0
      %v1565 = vadd.f32 0.0, %v1564
      %1566 = vmatmul.bf16.gmra.mxu0 %v1481
      %v1567 = vpop.f32.mrf.mxu0
      %v1568 = vadd.f32 0.0, %v1567
      %v1569 = vpop.f32.mrf.mxu0
      %v1570 = vadd.f32 0.0, %v1569
      %1571 = vdwg.mxu0
      %v1572 = vpack.c.bf16 %v1493, %v1493
      %v1573 = vpack.c.bf16 %v1495, %v1495
      %v1574 = vpack.c.bf16 %v1498, %v1498
      %v1575 = vpack.c.bf16 %v1500, %v1500
      %v1576 = vpack.c.bf16 %v1503, %v1503
      %v1577 = vpack.c.bf16 %v1505, %v1505
      %v1578 = vpack.c.bf16 %v1508, %v1508
      %v1579 = vpack.c.bf16 %v1510, %v1510
      %v1580 = vpack.c.bf16 %v1513, %v1513
      %v1581 = vpack.c.bf16 %v1515, %v1515
      %v1582 = vpack.c.bf16 %v1518, %v1518
      %v1583 = vpack.c.bf16 %v1520, %v1520
      %v1584 = vpack.c.bf16 %v1523, %v1523
      %v1585 = vpack.c.bf16 %v1525, %v1525
      %v1586 = vpack.c.bf16 %v1528, %v1528
      %v1587 = vpack.c.bf16 %v1530, %v1530
      %v1588 = vpack.c.bf16 %v1533, %v1533
      %v1589 = vpack.c.bf16 %v1535, %v1535
      %v1590 = vpack.c.bf16 %v1538, %v1538
      %v1591 = vpack.c.bf16 %v1540, %v1540
      %v1592 = vpack.c.bf16 %v1543, %v1543
      %v1593 = vpack.c.bf16 %v1545, %v1545
      %v1594 = vpack.c.bf16 %v1548, %v1548
      %v1595 = vpack.c.bf16 %v1550, %v1550
      %v1596 = vpack.c.bf16 %v1553, %v1553
      %v1597 = vpack.c.bf16 %v1555, %v1555
      %v1598 = vpack.c.bf16 %v1558, %v1558
      %v1599 = vpack.c.bf16 %v1560, %v1560
      %v1600 = vpack.c.bf16 %v1563, %v1563
      %v1601 = vpack.c.bf16 %v1565, %v1565
      %v1602 = vpack.c.bf16 %v1568, %v1568
      %v1603 = vpack.c.bf16 %v1570, %v1570
      %1604 = vst [vmem:[%s313] sm:$0xf] %v1572
      %1605 = vst [vmem:[%s313 + $0x4] sm:$0xf] %v1573
      %1606 = vst [vmem:[%s313 + $0x8] sm:$0xf] %v1574
      %1607 = vst [vmem:[%s313 + $0xc] sm:$0xf] %v1575
      %1608 = vst [vmem:[%s313 + $0x10] sm:$0xf] %v1576
      %1609 = vst [vmem:[%s313 + $0x14] sm:$0xf] %v1577
      %1610 = vst [vmem:[%s313 + $0x18] sm:$0xf] %v1578
      %1611 = vst [vmem:[%s313 + $0x1c] sm:$0xf] %v1579
      %1612 = vst [vmem:[%s313 + $0x20] sm:$0xf] %v1580
      %1613 = vst [vmem:[%s313 + $0x24] sm:$0xf] %v1581
      %1614 = vst [vmem:[%s313 + $0x28] sm:$0xf] %v1582
      %1615 = vst [vmem:[%s313 + $0x2c] sm:$0xf] %v1583
      %1616 = vst [vmem:[%s313 + $0x30] sm:$0xf] %v1584
      %1617 = vst [vmem:[%s313 + $0x34] sm:$0xf] %v1585
      %1618 = vst [vmem:[%s313 + $0x38] sm:$0xf] %v1586
      %1619 = vst [vmem:[%s313 + $0x3c] sm:$0xf] %v1587
      %1620 = vst [vmem:[%s313 + $0x40] sm:$0xf] %v1588
      %1621 = vst [vmem:[%s313 + $0x44] sm:$0xf] %v1589
      %1622 = vst [vmem:[%s313 + $0x48] sm:$0xf] %v1590
      %1623 = vst [vmem:[%s313 + $0x4c] sm:$0xf] %v1591
      %1624 = vst [vmem:[%s313 + $0x50] sm:$0xf] %v1592
      %1625 = vst [vmem:[%s313 + $0x54] sm:$0xf] %v1593
      %1626 = vst [vmem:[%s313 + $0x58] sm:$0xf] %v1594
      %1627 = vst [vmem:[%s313 + $0x5c] sm:$0xf] %v1595
      %1628 = vst [vmem:[%s313 + $0x60] sm:$0xf] %v1596
      %1629 = vst [vmem:[%s313 + $0x64] sm:$0xf] %v1597
      %1630 = vst [vmem:[%s313 + $0x68] sm:$0xf] %v1598
      %1631 = vst [vmem:[%s313 + $0x6c] sm:$0xf] %v1599
      %1632 = vst [vmem:[%s313 + $0x70] sm:$0xf] %v1600
      %1633 = vst [vmem:[%s313 + $0x74] sm:$0xf] %v1601
      %1634 = vst [vmem:[%s313 + $0x78] sm:$0xf] %v1602
      %1635 = vst [vmem:[%s313 + $0x7c] sm:$0xf] %v1603
      %v1636 = vld [vmem:[%s5] sm:$0xf]
      %v1637 = vld [vmem:[%s5 + $0x4] sm:$0xf]
      %v1638 = vld [vmem:[%s5 + $0x8] sm:$0xf]
      %v1639 = vld [vmem:[%s5 + $0xc] sm:$0xf]
      %v1640 = vld [vmem:[%s5 + $0x10] sm:$0xf]
      %v1641 = vld [vmem:[%s5 + $0x14] sm:$0xf]
      %v1642 = vld [vmem:[%s5 + $0x18] sm:$0xf]
      %v1643 = vld [vmem:[%s5 + $0x1c] sm:$0xf]
      %v1652 = vunpack.c.l.b16 %v1636
      %v1653 = vunpack.c.l.b16 %v1637
      %v1654 = vunpack.c.l.b16 %v1638
      %v1655 = vunpack.c.l.b16 %v1639
      %v1656 = vunpack.c.l.b16 %v1640
      %v1657 = vunpack.c.l.b16 %v1641
      %v1658 = vunpack.c.l.b16 %v1642
      %v1659 = vunpack.c.l.b16 %v1643
      %v1660 = vpack.c.b16 %v1653, %v1652
      %v1661 = vpack.c.b16 %v1655, %v1654
      %v1662 = vpack.c.b16 %v1657, %v1656
      %v1663 = vpack.c.b16 %v1659, %v1658
      %1668 = vmatpush.bf16.msra.mxu0 0
      %1669 = vmatpush.bf16.msra.mxu0 0
      %1670 = vmatpush.bf16.msra.mxu0 0
      %1671 = vmatpush.bf16.msra.mxu0 0
      %1672 = vmatpush.bf16.msra.mxu0 %v1663
      %1673 = vmatpush.bf16.msra.mxu0 %v1662
      %1674 = vmatpush.bf16.msra.mxu0 %v1661
      %1675 = vmatpush.bf16.msra.mxu0 %v1660
      %1676 = vmatmul.bf16.gmra.mxu0 %v1436
      %v1677 = vpop.f32.mrf.mxu0
      %v1678 = vadd.f32 0.0, %v1677
      %v1679 = vpop.f32.mrf.mxu0
      %v1680 = vadd.f32 0.0, %v1679
      %1681 = vmatmul.bf16.gmra.mxu0 %v1439
      %v1682 = vpop.f32.mrf.mxu0
      %v1683 = vadd.f32 0.0, %v1682
      %v1684 = vpop.f32.mrf.mxu0
      %v1685 = vadd.f32 0.0, %v1684
      %1686 = vmatmul.bf16.gmra.mxu0 %v1442
      %v1687 = vpop.f32.mrf.mxu0
      %v1688 = vadd.f32 0.0, %v1687
      %v1689 = vpop.f32.mrf.mxu0
      %v1690 = vadd.f32 0.0, %v1689
      %1691 = vmatmul.bf16.gmra.mxu0 %v1445
      %v1692 = vpop.f32.mrf.mxu0
      %v1693 = vadd.f32 0.0, %v1692
      %v1694 = vpop.f32.mrf.mxu0
      %v1695 = vadd.f32 0.0, %v1694
      %1696 = vmatmul.bf16.gmra.mxu0 %v1448
      %v1697 = vpop.f32.mrf.mxu0
      %v1698 = vadd.f32 0.0, %v1697
      %v1699 = vpop.f32.mrf.mxu0
      %v1700 = vadd.f32 0.0, %v1699
      %1701 = vmatmul.bf16.gmra.mxu0 %v1451
      %v1702 = vpop.f32.mrf.mxu0
      %v1703 = vadd.f32 0.0, %v1702
      %v1704 = vpop.f32.mrf.mxu0
      %v1705 = vadd.f32 0.0, %v1704
      %1706 = vmatmul.bf16.gmra.mxu0 %v1454
      %v1707 = vpop.f32.mrf.mxu0
      %v1708 = vadd.f32 0.0, %v1707
      %v1709 = vpop.f32.mrf.mxu0
      %v1710 = vadd.f32 0.0, %v1709
      %1711 = vmatmul.bf16.gmra.mxu0 %v1457
      %v1712 = vpop.f32.mrf.mxu0
      %v1713 = vadd.f32 0.0, %v1712
      %v1714 = vpop.f32.mrf.mxu0
      %v1715 = vadd.f32 0.0, %v1714
      %1716 = vmatmul.bf16.gmra.mxu0 %v1460
      %v1717 = vpop.f32.mrf.mxu0
      %v1718 = vadd.f32 0.0, %v1717
      %v1719 = vpop.f32.mrf.mxu0
      %v1720 = vadd.f32 0.0, %v1719
      %1721 = vmatmul.bf16.gmra.mxu0 %v1463
      %v1722 = vpop.f32.mrf.mxu0
      %v1723 = vadd.f32 0.0, %v1722
      %v1724 = vpop.f32.mrf.mxu0
      %v1725 = vadd.f32 0.0, %v1724
      %1726 = vmatmul.bf16.gmra.mxu0 %v1466
      %v1727 = vpop.f32.mrf.mxu0
      %v1728 = vadd.f32 0.0, %v1727
      %v1729 = vpop.f32.mrf.mxu0
      %v1730 = vadd.f32 0.0, %v1729
      %1731 = vmatmul.bf16.gmra.mxu0 %v1469
      %v1732 = vpop.f32.mrf.mxu0
      %v1733 = vadd.f32 0.0, %v1732
      %v1734 = vpop.f32.mrf.mxu0
      %v1735 = vadd.f32 0.0, %v1734
      %1736 = vmatmul.bf16.gmra.mxu0 %v1472
      %v1737 = vpop.f32.mrf.mxu0
      %v1738 = vadd.f32 0.0, %v1737
      %v1739 = vpop.f32.mrf.mxu0
      %v1740 = vadd.f32 0.0, %v1739
      %1741 = vmatmul.bf16.gmra.mxu0 %v1475
      %v1742 = vpop.f32.mrf.mxu0
      %v1743 = vadd.f32 0.0, %v1742
      %v1744 = vpop.f32.mrf.mxu0
      %v1745 = vadd.f32 0.0, %v1744
      %1746 = vmatmul.bf16.gmra.mxu0 %v1478
      %v1747 = vpop.f32.mrf.mxu0
      %v1748 = vadd.f32 0.0, %v1747
      %v1749 = vpop.f32.mrf.mxu0
      %v1750 = vadd.f32 0.0, %v1749
      %1751 = vmatmul.bf16.gmra.mxu0 %v1481
      %v1752 = vpop.f32.mrf.mxu0
      %v1753 = vadd.f32 0.0, %v1752
      %v1754 = vpop.f32.mrf.mxu0
      %v1755 = vadd.f32 0.0, %v1754
      %1756 = vdwg.mxu0
      %1757 = vst [vmem:[%s319] sm:$0xff] %v1678
      %1758 = vst [vmem:[%s319 + $0x8] sm:$0xff] %v1680
      %1759 = vst [vmem:[%s319 + $0x10] sm:$0xff] %v1683
      %1760 = vst [vmem:[%s319 + $0x18] sm:$0xff] %v1685
      %1761 = vst [vmem:[%s319 + $0x20] sm:$0xff] %v1688
      %1762 = vst [vmem:[%s319 + $0x28] sm:$0xff] %v1690
      %1763 = vst [vmem:[%s319 + $0x30] sm:$0xff] %v1693
      %1764 = vst [vmem:[%s319 + $0x38] sm:$0xff] %v1695
      %1765 = vst [vmem:[%s319 + $0x40] sm:$0xff] %v1698
      %1766 = vst [vmem:[%s319 + $0x48] sm:$0xff] %v1700
      %1767 = vst [vmem:[%s319 + $0x50] sm:$0xff] %v1703
      %1768 = vst [vmem:[%s319 + $0x58] sm:$0xff] %v1705
      %1769 = vst [vmem:[%s319 + $0x60] sm:$0xff] %v1708
      %1770 = vst [vmem:[%s319 + $0x68] sm:$0xff] %v1710
      %1771 = vst [vmem:[%s319 + $0x70] sm:$0xff] %v1713
      %1772 = vst [vmem:[%s319 + $0x78] sm:$0xff] %v1715
      %1773 = vst [vmem:[%s319 + $0x80] sm:$0xff] %v1718
      %1774 = vst [vmem:[%s319 + $0x88] sm:$0xff] %v1720
      %1775 = vst [vmem:[%s319 + $0x90] sm:$0xff] %v1723
      %1776 = vst [vmem:[%s319 + $0x98] sm:$0xff] %v1725
      %1777 = vst [vmem:[%s319 + $0xa0] sm:$0xff] %v1728
      %1778 = vst [vmem:[%s319 + $0xa8] sm:$0xff] %v1730
      %1779 = vst [vmem:[%s319 + $0xb0] sm:$0xff] %v1733
      %1780 = vst [vmem:[%s319 + $0xb8] sm:$0xff] %v1735
      %1781 = vst [vmem:[%s319 + $0xc0] sm:$0xff] %v1738
      %1782 = vst [vmem:[%s319 + $0xc8] sm:$0xff] %v1740
      %1783 = vst [vmem:[%s319 + $0xd0] sm:$0xff] %v1743
      %1784 = vst [vmem:[%s319 + $0xd8] sm:$0xff] %v1745
      %1785 = vst [vmem:[%s319 + $0xe0] sm:$0xff] %v1748
      %1786 = vst [vmem:[%s319 + $0xe8] sm:$0xff] %v1750
      %1787 = vst [vmem:[%s319 + $0xf0] sm:$0xff] %v1753
      %1788 = vst [vmem:[%s319 + $0xf8] sm:$0xff] %v1755
      %s1789 = smul.u32 32, %s19
      %p1790 = scmp.lt.s32.totalorder %s1789, 63
      %s1791 = scalar_select %p1790, %s1789, 63
      %s1792 = smul.addr %s1791, 4
      %s1793 = scalar_lea.vmem %s6, %s1792
      %s1794 = smul.u32 32, %s19
      %p1795 = scmp.lt.s32.totalorder %s1794, 63
      %s1796 = scalar_select %p1795, %s1794, 63
      %s1797 = smul.addr %s1796, 8
      %s1798 = scalar_lea.vmem %s7, %s1797
      // Predicated region
      $region45: #{net000_forward.4} parent=43 // pred_check
        %p1799 = pneg %p173
      $region46: #{net000_forward.4} parent=43 // pred_check_branch
        %1801 = sbr.rel (%p1799) target = $region48
      $region47: #{net000_forward.4} parent=43 // pred_region
        %s1802 = smul.u32 32, %s19
      $region48: #{net000_forward.4} parent=43 // pred_fallthru
        _
      // Predicated region
      $region49: #{net000_forward.4} parent=43 // pred_check
        %p1803 = pneg %p199
      $region50: #{net000_forward.4} parent=43 // pred_check_branch
        %1805 = sbr.rel (%p1803) target = $region52
      $region51: #{net000_forward.4} parent=43 // pred_region
        %s1806 = smul.u32 32, %s19
      $region52: #{net000_forward.4} parent=43 // pred_fallthru
        _
    $region44: #{net000_forward.4} parent=5 // pred_fallthru
      _
    %p1807 = scmp.le.s32.totalorder 2, %s14
    // Predicated region
    $region53: #{net000_forward.4} parent=5 // pred_check
      %p1808 = pneg %p1807
    $region54: #{net000_forward.4} parent=5 // pred_check_branch
      %1810 = sbr.rel (%p1808) target = $region56
    $region55: #{net000_forward.4} parent=5 // pred_region
      %s1811 = ssub.s32 %s14, 2
      // Predicated region
      $region57: #{net000_forward.4} parent=55 // pred_check
        %p1812 = pneg %p179
      $region58: #{net000_forward.4} parent=55 // pred_check_branch
        %1814 = sbr.rel (%p1812) target = $region60
      $region59: #{net000_forward.4} parent=55 // pred_region
        %s1815 = smul.u32 32, %s20
        %p1816 = scmp.lt.s32.totalorder %s1815, 63
        %s1817 = scalar_select %p1816, %s1815, 63
        %s1818 = smul.addr %s1817, 4
        %s1819 = scalar_lea.vmem %s6, %s1818
      $region60: #{net000_forward.4} parent=55 // pred_fallthru
        _
      // Predicated region
      $region61: #{net000_forward.4} parent=55 // pred_check
        %p1820 = pneg %p205
      $region62: #{net000_forward.4} parent=55 // pred_check_branch
        %1822 = sbr.rel (%p1820) target = $region64
      $region63: #{net000_forward.4} parent=55 // pred_region
        %s1823 = smul.u32 32, %s20
        %p1824 = scmp.lt.s32.totalorder %s1823, 63
        %s1825 = scalar_select %p1824, %s1823, 63
        %s1826 = smul.addr %s1825, 8
        %s1827 = scalar_lea.vmem %s7, %s1826
      $region64: #{net000_forward.4} parent=55 // pred_fallthru
        _
    $region56: #{net000_forward.4} parent=5 // pred_fallthru
      _
  $region6: #{net000_forward.4} parent=0 // loop_footer
    %s18 = sadd.s32 1, %s14
  $region7: #{net000_forward.4} parent=0 // loop_footer_branch
    %13 = sbr.rel target = $region3
  $region8: #{net000_forward.4} parent=0 // loop_exit
    _

// kernel: net000_forward.3
$region0: #{net000_forward.3}
  #allocation0 [shape = 'u32[]', space=smem, size = 0x4, offset = 0x4, fixed_abs, tag = 'smem constant byte address 0x4 - core index']
  #allocation1 [shape = 'u32[72,128]{1,0:T(1,128)}', space=vmem, size = 0x9000, scoped, tag = 'internal scratch']
  %s0 = inlined_call_operand.vmem [shape: bf16[512,608], index: 0, kind: input, shape index: {}]
  %s1 = inlined_call_operand.vmem [shape: bf16[608,64], index: 1, kind: input, shape index: {}]
  %s2 = inlined_call_operand.vmem [shape: bf16[608,64], index: 2, kind: input, shape index: {}]
  %s3 = inlined_call_operand.vmem [shape: bf16[512,64], index: 3, kind: output, shape index: {0}]
  %s4 = inlined_call_operand.vmem [shape: f32[512,64], index: 4, kind: output, shape index: {1}]
  %5 = xla_tuple %s3, %s4
  %s6 = sld [smem:[#allocation0]]
  $region53: #{net000_forward.3} parent=0
    _
  %s8 = ssub.s32 1, %s6
  %s9 = scalar_select 0, %s8, %s6
  loop: start=0, step=1, limit=4
  $region2: #{net000_forward.3} parent=0 // loop_pre_header
    _
  $region3: #{net000_forward.3} parent=0 // loop_header
    %s11 = sphi 0, %s15
    %p12 = scmp.ge.s32.totalorder %s11, 4
    %s21 = sphi 0, %s23
    %s24 = sphi 0, %s21
    %s25 = sphi 0, %s24
    %s41 = sphi 0, %s25
    %s45 = sphi 0, %s45
    %s47 = sphi 0, %s45
    %s48 = sphi 0, %s47
    %s62 = sphi 0, %s48
    %s66 = sphi 0, %s66
    %s68 = sphi 0, %s66
    %s69 = sphi 0, %s68
    %s83 = sphi 0, %s69
    %s89 = sphi 0, %s91
    %s92 = sphi 0, %s89
    %s93 = sphi 0, %s92
    %s109 = sphi 0, %s93
    %s115 = sphi 0, %s117
    %s118 = sphi 0, %s115
    %s119 = sphi 0, %s118
    %s135 = sphi 0, %s119
  $region4: #{net000_forward.3} parent=0 // loop_header_branch
    %14 = sbr.rel (%p12) target = $region8
  $region5: #{net000_forward.3} parent=0 // loop_body
    %s16 = ssub.s32 %s11, 1
    %s17 = ssub.s32 %s11, 2
    %s18 = sadd.s32 %s11, 1
    %s19 = ssub.s32 %s11, %s18
    %p20 = scmp.eq.s32.totalorder %s19, 0
    %s22 = sadd.s32 %s21, 1
    %s23 = scalar_select %p20, %s21, %s22
    %p26 = pneg %p20
    %p27 = scmp.eq.s32.totalorder %s11, 1
    %p28 = por %p26, %p27
    %p29 = scmp.ne.s32.totalorder %s21, %s24
    %p30 = scmp.eq.s32.totalorder %s11, 0
    %p31 = por %p29, %p30
    %p32 = scmp.ne.s32.totalorder %s21, %s24
    %p33 = scmp.eq.s32.totalorder %s16, 1
    %p34 = por %p32, %p33
    %p35 = scmp.ne.s32.totalorder %s24, %s25
    %p36 = scmp.eq.s32.totalorder %s16, 0
    %p37 = por %p35, %p36
    %p38 = scmp.ne.s32.totalorder %s24, %s25
    %p39 = scmp.eq.s32.totalorder %s17, 1
    %p40 = por %p38, %p39
    %p42 = scmp.ne.s32.totalorder %s25, %s41
    %p43 = scmp.eq.s32.totalorder %s17, 0
    %p44 = por %p42, %p43
    %s46 = sadd.s32 %s45, 1
    %p49 = scmp.eq.s32.totalorder %s11, 1
    %p50 = scmp.ne.s32.totalorder %s45, %s47
    %p51 = scmp.eq.s32.totalorder %s11, 0
    %p52 = por %p50, %p51
    %p53 = scmp.ne.s32.totalorder %s45, %s47
    %p54 = scmp.eq.s32.totalorder %s16, 1
    %p55 = por %p53, %p54
    %p56 = scmp.ne.s32.totalorder %s47, %s48
    %p57 = scmp.eq.s32.totalorder %s16, 0
    %p58 = por %p56, %p57
    %p59 = scmp.ne.s32.totalorder %s47, %s48
    %p60 = scmp.eq.s32.totalorder %s17, 1
    %p61 = por %p59, %p60
    %p63 = scmp.ne.s32.totalorder %s48, %s62
    %p64 = scmp.eq.s32.totalorder %s17, 0
    %p65 = por %p63, %p64
    %s67 = sadd.s32 %s66, 1
    %p70 = scmp.eq.s32.totalorder %s11, 1
    %p71 = scmp.ne.s32.totalorder %s66, %s68
    %p72 = scmp.eq.s32.totalorder %s11, 0
    %p73 = por %p71, %p72
    %p74 = scmp.ne.s32.totalorder %s66, %s68
    %p75 = scmp.eq.s32.totalorder %s16, 1
    %p76 = por %p74, %p75
    %p77 = scmp.ne.s32.totalorder %s68, %s69
    %p78 = scmp.eq.s32.totalorder %s16, 0
    %p79 = por %p77, %p78
    %p80 = scmp.ne.s32.totalorder %s68, %s69
    %p81 = scmp.eq.s32.totalorder %s17, 1
    %p82 = por %p80, %p81
    %p84 = scmp.ne.s32.totalorder %s69, %s83
    %p85 = scmp.eq.s32.totalorder %s17, 0
    %p86 = por %p84, %p85
    %s87 = ssub.s32 %s11, %s18
    %p88 = scmp.eq.s32.totalorder %s87, 0
    %s90 = sadd.s32 %s89, 1
    %s91 = scalar_select %p88, %s89, %s90
    %p94 = pneg %p88
    %p95 = scmp.eq.s32.totalorder %s11, 1
    %p96 = por %p94, %p95
    %p97 = scmp.ne.s32.totalorder %s89, %s92
    %p98 = scmp.eq.s32.totalorder %s11, 0
    %p99 = por %p97, %p98
    %p100 = scmp.ne.s32.totalorder %s89, %s92
    %p101 = scmp.eq.s32.totalorder %s16, 1
    %p102 = por %p100, %p101
    %p103 = scmp.ne.s32.totalorder %s92, %s93
    %p104 = scmp.eq.s32.totalorder %s16, 0
    %p105 = por %p103, %p104
    %p106 = scmp.ne.s32.totalorder %s92, %s93
    %p107 = scmp.eq.s32.totalorder %s17, 1
    %p108 = por %p106, %p107
    %p110 = scmp.ne.s32.totalorder %s93, %s109
    %p111 = scmp.eq.s32.totalorder %s17, 0
    %p112 = por %p110, %p111
    %s113 = ssub.s32 %s11, %s18
    %p114 = scmp.eq.s32.totalorder %s113, 0
    %s116 = sadd.s32 %s115, 1
    %s117 = scalar_select %p114, %s115, %s116
    %p120 = pneg %p114
    %p121 = scmp.eq.s32.totalorder %s11, 1
    %p122 = por %p120, %p121
    %p123 = scmp.ne.s32.totalorder %s115, %s118
    %p124 = scmp.eq.s32.totalorder %s11, 0
    %p125 = por %p123, %p124
    %p126 = scmp.ne.s32.totalorder %s115, %s118
    %p127 = scmp.eq.s32.totalorder %s16, 1
    %p128 = por %p126, %p127
    %p129 = scmp.ne.s32.totalorder %s118, %s119
    %p130 = scmp.eq.s32.totalorder %s16, 0
    %p131 = por %p129, %p130
    %p132 = scmp.ne.s32.totalorder %s118, %s119
    %p133 = scmp.eq.s32.totalorder %s17, 1
    %p134 = por %p132, %p133
    %p136 = scmp.ne.s32.totalorder %s119, %s135
    %p137 = scmp.eq.s32.totalorder %s17, 0
    %p138 = por %p136, %p137
    %p139 = scmp.le.s32.totalorder 1, %s11
    %p140 = scmp.lt.s32.totalorder %s11, 3
    %p141 = pnand %p139, %p140
    %p142 = pneg %p141
    // Predicated region
    $region9: #{net000_forward.3} parent=5 // pred_check
      _
    $region10: #{net000_forward.3} parent=5 // pred_check_branch
      %144 = sbr.rel (%p141) target = $region12
    $region11: #{net000_forward.3} parent=5 // pred_region
      %s145 = ssub.s32 %s11, 1
      // Predicated region
      $region13: #{net000_forward.3} parent=11 // pred_check
        %p146 = pneg %p58
      $region14: #{net000_forward.3} parent=11 // pred_check_branch
        %148 = sbr.rel (%p146) target = $region16
      $region15: #{net000_forward.3} parent=11 // pred_region
        _
      $region16: #{net000_forward.3} parent=11 // pred_fallthru
        _
      // Predicated region
      $region17: #{net000_forward.3} parent=11 // pred_check
        %p149 = pneg %p79
      $region18: #{net000_forward.3} parent=11 // pred_check_branch
        %151 = sbr.rel (%p149) target = $region20
      $region19: #{net000_forward.3} parent=11 // pred_region
        _
      $region20: #{net000_forward.3} parent=11 // pred_fallthru
        _
    $region12: #{net000_forward.3} parent=5 // pred_fallthru
      _
    %p152 = scmp.lt.s32.totalorder %s11, 2
    // Predicated region
    $region21: #{net000_forward.3} parent=5 // pred_check
      %p153 = pneg %p152
    $region22: #{net000_forward.3} parent=5 // pred_check_branch
      %155 = sbr.rel (%p153) target = $region24
    $region23: #{net000_forward.3} parent=5 // pred_region
      // Predicated region
      $region25: #{net000_forward.3} parent=23 // pred_check
        %p156 = pneg %p31
      $region26: #{net000_forward.3} parent=23 // pred_check_branch
        %158 = sbr.rel (%p156) target = $region28
      $region27: #{net000_forward.3} parent=23 // pred_region
        %s159 = smul.u32 32, %s11
        %p160 = scmp.lt.s32.totalorder %s159, 63
        %s161 = scalar_select %p160, %s159, 63
        %s162 = smul.addr %s161, 5
        %s163 = smul.addr %s162, 4
        %s164 = scalar_lea.vmem %s0, %s163
        %s165 = smul.u32 32, %s11
      $region28: #{net000_forward.3} parent=23 // pred_fallthru
        _
    $region24: #{net000_forward.3} parent=5 // pred_fallthru
      _
    %p166 = scmp.le.s32.totalorder 1, %s11
    %p167 = scmp.lt.s32.totalorder %s11, 3
    %p168 = pnand %p166, %p167
    %p169 = pneg %p168
    // Predicated region
    $region29: #{net000_forward.3} parent=5 // pred_check
      _
    $region30: #{net000_forward.3} parent=5 // pred_check_branch
      %171 = sbr.rel (%p168) target = $region32
    $region31: #{net000_forward.3} parent=5 // pred_region
      %s172 = ssub.s32 %s11, 1
      %s173 = smul.u32 32, %s16
      %p174 = scmp.lt.s32.totalorder %s173, 63
      %s175 = scalar_select %p174, %s173, 63
      %s176 = smul.addr %s175, 5
      %s177 = smul.addr %s176, 4
      %s178 = scalar_lea.vmem %s0, %s177
      %p179 = pneg %p37
      %p180 = pneg %p34
      %p181 = pneg %p58
      %p182 = pneg %p55
      %p183 = pneg %p79
      %p184 = pneg %p76
      %p185 = pneg %p105
      %p186 = pneg %p102
      %s187 = smul.u32 32, %s16
      %p188 = scmp.lt.s32.totalorder %s187, 63
      %s189 = scalar_select %p188, %s187, 63
      %s190 = smul.addr %s189, 4
      %s191 = scalar_lea.vmem %s3, %s190
      %p192 = pneg %p131
      %p193 = pneg %p128
      %s194 = smul.u32 32, %s16
      %p195 = scmp.lt.s32.totalorder %s194, 63
      %s196 = scalar_select %p195, %s194, 63
      %s197 = smul.addr %s196, 8
      %s198 = scalar_lea.vmem %s4, %s197
      %s199 = smul.u32 32, %s16
      %p200 = scmp.lt.s32.totalorder %s199, 63
      %s201 = scalar_select %p200, %s199, 63
      %s202 = smul.addr %s201, 5
      %s203 = smul.addr %s202, 4
      %s204 = scalar_lea.vmem %s0, %s203
      %s205 = smul.u32 32, %s16
      %s206 = smul.u32 32, %s16
      %p207 = scmp.lt.s32.totalorder %s206, 63
      %s208 = scalar_select %p207, %s206, 63
      %s209 = smul.addr %s208, 4
      %s210 = scalar_lea.vmem %s3, %s209
      %s211 = smul.u32 32, %s16
      %s212 = smul.u32 32, %s16
      %p213 = scmp.lt.s32.totalorder %s212, 63
      %s214 = scalar_select %p213, %s212, 63
      %s215 = smul.addr %s214, 8
      %s216 = scalar_lea.vmem %s4, %s215
      %s217 = smul.u32 32, %s16
      %v219 = vld [vmem:[%s204] sm:$0xff]
      %v220 = vld [vmem:[%s204 + $0x8] sm:$0xff]
      %v221 = vld [vmem:[%s204 + $0x10] sm:$0xf]
      %v222 = vld [vmem:[%s204 + $0x14] sm:$0xff]
      %v223 = vld [vmem:[%s204 + $0x1c] sm:$0xff]
      %v224 = vld [vmem:[%s204 + $0x24] sm:$0xf]
      %v225 = vld [vmem:[%s204 + $0x28] sm:$0xff]
      %v226 = vld [vmem:[%s204 + $0x30] sm:$0xff]
      %v227 = vld [vmem:[%s204 + $0x38] sm:$0xf]
      %v228 = vld [vmem:[%s204 + $0x3c] sm:$0xff]
      %v229 = vld [vmem:[%s204 + $0x44] sm:$0xff]
      %v230 = vld [vmem:[%s204 + $0x4c] sm:$0xf]
      %v231 = vld [vmem:[%s204 + $0x50] sm:$0xff]
      %v232 = vld [vmem:[%s204 + $0x58] sm:$0xff]
      %v233 = vld [vmem:[%s204 + $0x60] sm:$0xf]
      %v234 = vld [vmem:[%s204 + $0x64] sm:$0xff]
      %v235 = vld [vmem:[%s204 + $0x6c] sm:$0xff]
      %v236 = vld [vmem:[%s204 + $0x74] sm:$0xf]
      %v237 = vld [vmem:[%s204 + $0x78] sm:$0xff]
      %v238 = vld [vmem:[%s204 + $0x80] sm:$0xff]
      %v239 = vld [vmem:[%s204 + $0x88] sm:$0xf]
      %v240 = vld [vmem:[%s204 + $0x8c] sm:$0xff]
      %v241 = vld [vmem:[%s204 + $0x94] sm:$0xff]
      %v242 = vld [vmem:[%s204 + $0x9c] sm:$0xf]
      %v243 = vld [vmem:[%s204 + $0xa0] sm:$0xff]
      %v244 = vld [vmem:[%s204 + $0xa8] sm:$0xff]
      %v245 = vld [vmem:[%s204 + $0xb0] sm:$0xf]
      %v246 = vld [vmem:[%s204 + $0xb4] sm:$0xff]
      %v247 = vld [vmem:[%s204 + $0xbc] sm:$0xff]
      %v248 = vld [vmem:[%s204 + $0xc4] sm:$0xf]
      %v249 = vld [vmem:[%s204 + $0xc8] sm:$0xff]
      %v250 = vld [vmem:[%s204 + $0xd0] sm:$0xff]
      %v251 = vld [vmem:[%s204 + $0xd8] sm:$0xf]
      %v252 = vld [vmem:[%s204 + $0xdc] sm:$0xff]
      %v253 = vld [vmem:[%s204 + $0xe4] sm:$0xff]
      %v254 = vld [vmem:[%s204 + $0xec] sm:$0xf]
      %v255 = vld [vmem:[%s204 + $0xf0] sm:$0xff]
      %v256 = vld [vmem:[%s204 + $0xf8] sm:$0xff]
      %v257 = vld [vmem:[%s204 + $0x100] sm:$0xf]
      %v258 = vld [vmem:[%s204 + $0x104] sm:$0xff]
      %v259 = vld [vmem:[%s204 + $0x10c] sm:$0xff]
      %v260 = vld [vmem:[%s204 + $0x114] sm:$0xf]
      %v261 = vld [vmem:[%s204 + $0x118] sm:$0xff]
      %v262 = vld [vmem:[%s204 + $0x120] sm:$0xff]
      %v263 = vld [vmem:[%s204 + $0x128] sm:$0xf]
      %v264 = vld [vmem:[%s204 + $0x12c] sm:$0xff]
      %v265 = vld [vmem:[%s204 + $0x134] sm:$0xff]
      %v266 = vld [vmem:[%s204 + $0x13c] sm:$0xf]
      %v267 = vld [vmem:[%s204 + $0x140] sm:$0xff]
      %v268 = vld [vmem:[%s204 + $0x148] sm:$0xff]
      %v269 = vld [vmem:[%s204 + $0x150] sm:$0xf]
      %v270 = vld [vmem:[%s204 + $0x154] sm:$0xff]
      %v271 = vld [vmem:[%s204 + $0x15c] sm:$0xff]
      %v272 = vld [vmem:[%s204 + $0x164] sm:$0xf]
      %v273 = vld [vmem:[%s204 + $0x168] sm:$0xff]
      %v274 = vld [vmem:[%s204 + $0x170] sm:$0xff]
      %v275 = vld [vmem:[%s204 + $0x178] sm:$0xf]
      %v276 = vld [vmem:[%s204 + $0x17c] sm:$0xff]
      %v277 = vld [vmem:[%s204 + $0x184] sm:$0xff]
      %v278 = vld [vmem:[%s204 + $0x18c] sm:$0xf]
      %v279 = vld [vmem:[%s204 + $0x190] sm:$0xff]
      %v280 = vld [vmem:[%s204 + $0x198] sm:$0xff]
      %v281 = vld [vmem:[%s204 + $0x1a0] sm:$0xf]
      %v282 = vld [vmem:[%s204 + $0x1a4] sm:$0xff]
      %v283 = vld [vmem:[%s204 + $0x1ac] sm:$0xff]
      %v284 = vld [vmem:[%s204 + $0x1b4] sm:$0xf]
      %v285 = vld [vmem:[%s204 + $0x1b8] sm:$0xff]
      %v286 = vld [vmem:[%s204 + $0x1c0] sm:$0xff]
      %v287 = vld [vmem:[%s204 + $0x1c8] sm:$0xf]
      %v288 = vld [vmem:[%s204 + $0x1cc] sm:$0xff]
      %v289 = vld [vmem:[%s204 + $0x1d4] sm:$0xff]
      %v290 = vld [vmem:[%s204 + $0x1dc] sm:$0xf]
      %v291 = vld [vmem:[%s204 + $0x1e0] sm:$0xff]
      %v292 = vld [vmem:[%s204 + $0x1e8] sm:$0xff]
      %v293 = vld [vmem:[%s204 + $0x1f0] sm:$0xf]
      %v294 = vld [vmem:[%s204 + $0x1f4] sm:$0xff]
      %v295 = vld [vmem:[%s204 + $0x1fc] sm:$0xff]
      %v296 = vld [vmem:[%s204 + $0x204] sm:$0xf]
      %v297 = vld [vmem:[%s204 + $0x208] sm:$0xff]
      %v298 = vld [vmem:[%s204 + $0x210] sm:$0xff]
      %v299 = vld [vmem:[%s204 + $0x218] sm:$0xf]
      %v300 = vld [vmem:[%s204 + $0x21c] sm:$0xff]
      %v301 = vld [vmem:[%s204 + $0x224] sm:$0xff]
      %v302 = vld [vmem:[%s204 + $0x22c] sm:$0xf]
      %v303 = vld [vmem:[%s204 + $0x230] sm:$0xff]
      %v304 = vld [vmem:[%s204 + $0x238] sm:$0xff]
      %v305 = vld [vmem:[%s204 + $0x240] sm:$0xf]
      %v306 = vld [vmem:[%s204 + $0x244] sm:$0xff]
      %v307 = vld [vmem:[%s204 + $0x24c] sm:$0xff]
      %v308 = vld [vmem:[%s204 + $0x254] sm:$0xf]
      %v309 = vld [vmem:[%s204 + $0x258] sm:$0xff]
      %v310 = vld [vmem:[%s204 + $0x260] sm:$0xff]
      %v311 = vld [vmem:[%s204 + $0x268] sm:$0xf]
      %v312 = vld [vmem:[%s204 + $0x26c] sm:$0xff]
      %v313 = vld [vmem:[%s204 + $0x274] sm:$0xff]
      %v314 = vld [vmem:[%s204 + $0x27c] sm:$0xf]
      %v315 = vld [vmem:[%s1] sm:$0xf]
      %v316 = vld [vmem:[%s1 + $0x4] sm:$0xf]
      %v317 = vld [vmem:[%s1 + $0x8] sm:$0xf]
      %v318 = vld [vmem:[%s1 + $0xc] sm:$0xf]
      %v319 = vld [vmem:[%s1 + $0x10] sm:$0xf]
      %v320 = vld [vmem:[%s1 + $0x14] sm:$0xf]
      %v321 = vld [vmem:[%s1 + $0x18] sm:$0xf]
      %v322 = vld [vmem:[%s1 + $0x1c] sm:$0xf]
      %v323 = vld [vmem:[%s1 + $0x20] sm:$0xf]
      %v324 = vld [vmem:[%s1 + $0x24] sm:$0xf]
      %v325 = vld [vmem:[%s1 + $0x28] sm:$0xf]
      %v326 = vld [vmem:[%s1 + $0x2c] sm:$0xf]
      %v327 = vld [vmem:[%s1 + $0x30] sm:$0xf]
      %v328 = vld [vmem:[%s1 + $0x34] sm:$0xf]
      %v329 = vld [vmem:[%s1 + $0x38] sm:$0xf]
      %v330 = vld [vmem:[%s1 + $0x3c] sm:$0xf]
      %v331 = vld [vmem:[%s1 + $0x40] sm:$0xf]
      %v332 = vld [vmem:[%s1 + $0x44] sm:$0xf]
      %v333 = vld [vmem:[%s1 + $0x48] sm:$0xf]
      %v334 = vld [vmem:[%s1 + $0x4c] sm:$0xf]
      %v335 = vld [vmem:[%s1 + $0x50] sm:$0xf]
      %v336 = vld [vmem:[%s1 + $0x54] sm:$0xf]
      %v337 = vld [vmem:[%s1 + $0x58] sm:$0xf]
      %v338 = vld [vmem:[%s1 + $0x5c] sm:$0xf]
      %v339 = vld [vmem:[%s1 + $0x60] sm:$0xf]
      %v340 = vld [vmem:[%s1 + $0x64] sm:$0xf]
      %v341 = vld [vmem:[%s1 + $0x68] sm:$0xf]
      %v342 = vld [vmem:[%s1 + $0x6c] sm:$0xf]
      %v343 = vld [vmem:[%s1 + $0x70] sm:$0xf]
      %v344 = vld [vmem:[%s1 + $0x74] sm:$0xf]
      %v345 = vld [vmem:[%s1 + $0x78] sm:$0xf]
      %v346 = vld [vmem:[%s1 + $0x7c] sm:$0xf]
      %v347 = vld [vmem:[%s1 + $0x80] sm:$0xf]
      %v348 = vld [vmem:[%s1 + $0x84] sm:$0xf]
      %v349 = vld [vmem:[%s1 + $0x88] sm:$0xf]
      %v350 = vld [vmem:[%s1 + $0x8c] sm:$0xf]
      %v351 = vld [vmem:[%s1 + $0x90] sm:$0xf]
      %v352 = vld [vmem:[%s1 + $0x94] sm:$0xf]
      %v353 = vld [vmem:[%s1 + $0x98] sm:$0xf]
      %v354 = vld [vmem:[%s1 + $0x9c] sm:$0xf]
      %v355 = vld [vmem:[%s1 + $0xa0] sm:$0xf]
      %v356 = vld [vmem:[%s1 + $0xa4] sm:$0xf]
      %v357 = vld [vmem:[%s1 + $0xa8] sm:$0xf]
      %v358 = vld [vmem:[%s1 + $0xac] sm:$0xf]
      %v359 = vld [vmem:[%s1 + $0xb0] sm:$0xf]
      %v360 = vld [vmem:[%s1 + $0xb4] sm:$0xf]
      %v361 = vld [vmem:[%s1 + $0xb8] sm:$0xf]
      %v362 = vld [vmem:[%s1 + $0xbc] sm:$0xf]
      %v363 = vld [vmem:[%s1 + $0xc0] sm:$0xf]
      %v364 = vld [vmem:[%s1 + $0xc4] sm:$0xf]
      %v365 = vld [vmem:[%s1 + $0xc8] sm:$0xf]
      %v366 = vld [vmem:[%s1 + $0xcc] sm:$0xf]
      %v367 = vld [vmem:[%s1 + $0xd0] sm:$0xf]
      %v368 = vld [vmem:[%s1 + $0xd4] sm:$0xf]
      %v369 = vld [vmem:[%s1 + $0xd8] sm:$0xf]
      %v370 = vld [vmem:[%s1 + $0xdc] sm:$0xf]
      %v371 = vld [vmem:[%s1 + $0xe0] sm:$0xf]
      %v372 = vld [vmem:[%s1 + $0xe4] sm:$0xf]
      %v373 = vld [vmem:[%s1 + $0xe8] sm:$0xf]
      %v374 = vld [vmem:[%s1 + $0xec] sm:$0xf]
      %v375 = vld [vmem:[%s1 + $0xf0] sm:$0xf]
      %v376 = vld [vmem:[%s1 + $0xf4] sm:$0xf]
      %v377 = vld [vmem:[%s1 + $0xf8] sm:$0xf]
      %v378 = vld [vmem:[%s1 + $0xfc] sm:$0xf]
      %v379 = vld [vmem:[%s1 + $0x100] sm:$0xf]
      %v380 = vld [vmem:[%s1 + $0x104] sm:$0xf]
      %v381 = vld [vmem:[%s1 + $0x108] sm:$0xf]
      %v382 = vld [vmem:[%s1 + $0x10c] sm:$0xf]
      %v383 = vld [vmem:[%s1 + $0x110] sm:$0xf]
      %v384 = vld [vmem:[%s1 + $0x114] sm:$0xf]
      %v385 = vld [vmem:[%s1 + $0x118] sm:$0xf]
      %v386 = vld [vmem:[%s1 + $0x11c] sm:$0xf]
      %v387 = vld [vmem:[%s1 + $0x120] sm:$0xf]
      %v388 = vld [vmem:[%s1 + $0x124] sm:$0xf]
      %v389 = vld [vmem:[%s1 + $0x128] sm:$0xf]
      %v390 = vld [vmem:[%s1 + $0x12c] sm:$0xf]
      %v487 = vunpack.c.l.b16 %v219
      %v488 = vunpack.c.h.b16 %v219
      %v489 = vunpack.c.l.b16 %v220
      %v490 = vunpack.c.h.b16 %v220
      %v491 = vunpack.c.l.b16 %v221
      %v492 = vunpack.c.l.b16 %v222
      %v493 = vunpack.c.h.b16 %v222
      %v494 = vunpack.c.l.b16 %v223
      %v495 = vunpack.c.h.b16 %v223
      %v496 = vunpack.c.l.b16 %v224
      %v497 = vunpack.c.l.b16 %v225
      %v498 = vunpack.c.h.b16 %v225
      %v499 = vunpack.c.l.b16 %v226
      %v500 = vunpack.c.h.b16 %v226
      %v501 = vunpack.c.l.b16 %v227
      %v502 = vunpack.c.l.b16 %v228
      %v503 = vunpack.c.h.b16 %v228
      %v504 = vunpack.c.l.b16 %v229
      %v505 = vunpack.c.h.b16 %v229
      %v506 = vunpack.c.l.b16 %v230
      %v507 = vunpack.c.l.b16 %v231
      %v508 = vunpack.c.h.b16 %v231
      %v509 = vunpack.c.l.b16 %v232
      %v510 = vunpack.c.h.b16 %v232
      %v511 = vunpack.c.l.b16 %v233
      %v512 = vunpack.c.l.b16 %v234
      %v513 = vunpack.c.h.b16 %v234
      %v514 = vunpack.c.l.b16 %v235
      %v515 = vunpack.c.h.b16 %v235
      %v516 = vunpack.c.l.b16 %v236
      %v517 = vunpack.c.l.b16 %v237
      %v518 = vunpack.c.h.b16 %v237
      %v519 = vunpack.c.l.b16 %v238
      %v520 = vunpack.c.h.b16 %v238
      %v521 = vunpack.c.l.b16 %v239
      %v522 = vunpack.c.l.b16 %v240
      %v523 = vunpack.c.h.b16 %v240
      %v524 = vunpack.c.l.b16 %v241
      %v525 = vunpack.c.h.b16 %v241
      %v526 = vunpack.c.l.b16 %v242
      %v527 = vunpack.c.l.b16 %v243
      %v528 = vunpack.c.h.b16 %v243
      %v529 = vunpack.c.l.b16 %v244
      %v530 = vunpack.c.h.b16 %v244
      %v531 = vunpack.c.l.b16 %v245
      %v532 = vunpack.c.l.b16 %v246
      %v533 = vunpack.c.h.b16 %v246
      %v534 = vunpack.c.l.b16 %v247
      %v535 = vunpack.c.h.b16 %v247
      %v536 = vunpack.c.l.b16 %v248
      %v537 = vunpack.c.l.b16 %v249
      %v538 = vunpack.c.h.b16 %v249
      %v539 = vunpack.c.l.b16 %v250
      %v540 = vunpack.c.h.b16 %v250
      %v541 = vunpack.c.l.b16 %v251
      %v542 = vunpack.c.l.b16 %v252
      %v543 = vunpack.c.h.b16 %v252
      %v544 = vunpack.c.l.b16 %v253
      %v545 = vunpack.c.h.b16 %v253
      %v546 = vunpack.c.l.b16 %v254
      %v547 = vunpack.c.l.b16 %v255
      %v548 = vunpack.c.h.b16 %v255
      %v549 = vunpack.c.l.b16 %v256
      %v550 = vunpack.c.h.b16 %v256
      %v551 = vunpack.c.l.b16 %v257
      %v552 = vunpack.c.l.b16 %v258
      %v553 = vunpack.c.h.b16 %v258
      %v554 = vunpack.c.l.b16 %v259
      %v555 = vunpack.c.h.b16 %v259
      %v556 = vunpack.c.l.b16 %v260
      %v557 = vunpack.c.l.b16 %v261
      %v558 = vunpack.c.h.b16 %v261
      %v559 = vunpack.c.l.b16 %v262
      %v560 = vunpack.c.h.b16 %v262
      %v561 = vunpack.c.l.b16 %v263
      %v562 = vunpack.c.l.b16 %v264
      %v563 = vunpack.c.h.b16 %v264
      %v564 = vunpack.c.l.b16 %v265
      %v565 = vunpack.c.h.b16 %v265
      %v566 = vunpack.c.l.b16 %v266
      %v567 = vunpack.c.l.b16 %v267
      %v568 = vunpack.c.h.b16 %v267
      %v569 = vunpack.c.l.b16 %v268
      %v570 = vunpack.c.h.b16 %v268
      %v571 = vunpack.c.l.b16 %v269
      %v572 = vunpack.c.l.b16 %v270
      %v573 = vunpack.c.h.b16 %v270
      %v574 = vunpack.c.l.b16 %v271
      %v575 = vunpack.c.h.b16 %v271
      %v576 = vunpack.c.l.b16 %v272
      %v577 = vunpack.c.l.b16 %v273
      %v578 = vunpack.c.h.b16 %v273
      %v579 = vunpack.c.l.b16 %v274
      %v580 = vunpack.c.h.b16 %v274
      %v581 = vunpack.c.l.b16 %v275
      %v582 = vunpack.c.l.b16 %v276
      %v583 = vunpack.c.h.b16 %v276
      %v584 = vunpack.c.l.b16 %v277
      %v585 = vunpack.c.h.b16 %v277
      %v586 = vunpack.c.l.b16 %v278
      %v587 = vunpack.c.l.b16 %v279
      %v588 = vunpack.c.h.b16 %v279
      %v589 = vunpack.c.l.b16 %v280
      %v590 = vunpack.c.h.b16 %v280
      %v591 = vunpack.c.l.b16 %v281
      %v592 = vunpack.c.l.b16 %v282
      %v593 = vunpack.c.h.b16 %v282
      %v594 = vunpack.c.l.b16 %v283
      %v595 = vunpack.c.h.b16 %v283
      %v596 = vunpack.c.l.b16 %v284
      %v597 = vunpack.c.l.b16 %v285
      %v598 = vunpack.c.h.b16 %v285
      %v599 = vunpack.c.l.b16 %v286
      %v600 = vunpack.c.h.b16 %v286
      %v601 = vunpack.c.l.b16 %v287
      %v602 = vunpack.c.l.b16 %v288
      %v603 = vunpack.c.h.b16 %v288
      %v604 = vunpack.c.l.b16 %v289
      %v605 = vunpack.c.h.b16 %v289
      %v606 = vunpack.c.l.b16 %v290
      %v607 = vunpack.c.l.b16 %v291
      %v608 = vunpack.c.h.b16 %v291
      %v609 = vunpack.c.l.b16 %v292
      %v610 = vunpack.c.h.b16 %v292
      %v611 = vunpack.c.l.b16 %v293
      %v612 = vunpack.c.l.b16 %v294
      %v613 = vunpack.c.h.b16 %v294
      %v614 = vunpack.c.l.b16 %v295
      %v615 = vunpack.c.h.b16 %v295
      %v616 = vunpack.c.l.b16 %v296
      %v617 = vunpack.c.l.b16 %v297
      %v618 = vunpack.c.h.b16 %v297
      %v619 = vunpack.c.l.b16 %v298
      %v620 = vunpack.c.h.b16 %v298
      %v621 = vunpack.c.l.b16 %v299
      %v622 = vunpack.c.l.b16 %v300
      %v623 = vunpack.c.h.b16 %v300
      %v624 = vunpack.c.l.b16 %v301
      %v625 = vunpack.c.h.b16 %v301
      %v626 = vunpack.c.l.b16 %v302
      %v627 = vunpack.c.l.b16 %v303
      %v628 = vunpack.c.h.b16 %v303
      %v629 = vunpack.c.l.b16 %v304
      %v630 = vunpack.c.h.b16 %v304
      %v631 = vunpack.c.l.b16 %v305
      %v632 = vunpack.c.l.b16 %v306
      %v633 = vunpack.c.h.b16 %v306
      %v634 = vunpack.c.l.b16 %v307
      %v635 = vunpack.c.h.b16 %v307
      %v636 = vunpack.c.l.b16 %v308
      %v637 = vunpack.c.l.b16 %v309
      %v638 = vunpack.c.h.b16 %v309
      %v639 = vunpack.c.l.b16 %v310
      %v640 = vunpack.c.h.b16 %v310
      %v641 = vunpack.c.l.b16 %v311
      %v642 = vunpack.c.l.b16 %v312
      %v643 = vunpack.c.h.b16 %v312
      %v644 = vunpack.c.l.b16 %v313
      %v645 = vunpack.c.h.b16 %v313
      %v646 = vunpack.c.l.b16 %v314
      %v647 = vpack.c.b16 %v492, %v487
      %v648 = vpack.c.b16 %v493, %v488
      %v649 = vpack.c.b16 %v494, %v489
      %v650 = vpack.c.b16 %v495, %v490
      %v651 = vpack.c.b16 %v496, %v491
      %v652 = vpack.c.b16 %v502, %v497
      %v653 = vpack.c.b16 %v503, %v498
      %v654 = vpack.c.b16 %v504, %v499
      %v655 = vpack.c.b16 %v505, %v500
      %v656 = vpack.c.b16 %v506, %v501
      %v657 = vpack.c.b16 %v512, %v507
      %v658 = vpack.c.b16 %v513, %v508
      %v659 = vpack.c.b16 %v514, %v509
      %v660 = vpack.c.b16 %v515, %v510
      %v661 = vpack.c.b16 %v516, %v511
      %v662 = vpack.c.b16 %v522, %v517
      %v663 = vpack.c.b16 %v523, %v518
      %v664 = vpack.c.b16 %v524, %v519
      %v665 = vpack.c.b16 %v525, %v520
      %v666 = vpack.c.b16 %v526, %v521
      %v667 = vpack.c.b16 %v532, %v527
      %v668 = vpack.c.b16 %v533, %v528
      %v669 = vpack.c.b16 %v534, %v529
      %v670 = vpack.c.b16 %v535, %v530
      %v671 = vpack.c.b16 %v536, %v531
      %v672 = vpack.c.b16 %v542, %v537
      %v673 = vpack.c.b16 %v543, %v538
      %v674 = vpack.c.b16 %v544, %v539
      %v675 = vpack.c.b16 %v545, %v540
      %v676 = vpack.c.b16 %v546, %v541
      %v677 = vpack.c.b16 %v552, %v547
      %v678 = vpack.c.b16 %v553, %v548
      %v679 = vpack.c.b16 %v554, %v549
      %v680 = vpack.c.b16 %v555, %v550
      %v681 = vpack.c.b16 %v556, %v551
      %v682 = vpack.c.b16 %v562, %v557
      %v683 = vpack.c.b16 %v563, %v558
      %v684 = vpack.c.b16 %v564, %v559
      %v685 = vpack.c.b16 %v565, %v560
      %v686 = vpack.c.b16 %v566, %v561
      %v687 = vpack.c.b16 %v572, %v567
      %v688 = vpack.c.b16 %v573, %v568
      %v689 = vpack.c.b16 %v574, %v569
      %v690 = vpack.c.b16 %v575, %v570
      %v691 = vpack.c.b16 %v576, %v571
      %v692 = vpack.c.b16 %v582, %v577
      %v693 = vpack.c.b16 %v583, %v578
      %v694 = vpack.c.b16 %v584, %v579
      %v695 = vpack.c.b16 %v585, %v580
      %v696 = vpack.c.b16 %v586, %v581
      %v697 = vpack.c.b16 %v592, %v587
      %v698 = vpack.c.b16 %v593, %v588
      %v699 = vpack.c.b16 %v594, %v589
      %v700 = vpack.c.b16 %v595, %v590
      %v701 = vpack.c.b16 %v596, %v591
      %v702 = vpack.c.b16 %v602, %v597
      %v703 = vpack.c.b16 %v603, %v598
      %v704 = vpack.c.b16 %v604, %v599
      %v705 = vpack.c.b16 %v605, %v600
      %v706 = vpack.c.b16 %v606, %v601
      %v707 = vpack.c.b16 %v612, %v607
      %v708 = vpack.c.b16 %v613, %v608
      %v709 = vpack.c.b16 %v614, %v609
      %v710 = vpack.c.b16 %v615, %v610
      %v711 = vpack.c.b16 %v616, %v611
      %v712 = vpack.c.b16 %v622, %v617
      %v713 = vpack.c.b16 %v623, %v618
      %v714 = vpack.c.b16 %v624, %v619
      %v715 = vpack.c.b16 %v625, %v620
      %v716 = vpack.c.b16 %v626, %v621
      %v717 = vpack.c.b16 %v632, %v627
      %v718 = vpack.c.b16 %v633, %v628
      %v719 = vpack.c.b16 %v634, %v629
      %v720 = vpack.c.b16 %v635, %v630
      %v721 = vpack.c.b16 %v636, %v631
      %v722 = vpack.c.b16 %v642, %v637
      %v723 = vpack.c.b16 %v643, %v638
      %v724 = vpack.c.b16 %v644, %v639
      %v725 = vpack.c.b16 %v645, %v640
      %v726 = vpack.c.b16 %v646, %v641
      %v867 = vunpack.c.l.b16 %v315
      %v868 = vunpack.c.l.b16 %v316
      %v869 = vunpack.c.l.b16 %v317
      %v870 = vunpack.c.l.b16 %v318
      %v871 = vunpack.c.l.b16 %v319
      %v872 = vunpack.c.l.b16 %v320
      %v873 = vunpack.c.l.b16 %v321
      %v874 = vunpack.c.l.b16 %v322
      %v875 = vunpack.c.l.b16 %v323
      %v876 = vunpack.c.l.b16 %v324
      %v877 = vunpack.c.l.b16 %v325
      %v878 = vunpack.c.l.b16 %v326
      %v879 = vunpack.c.l.b16 %v327
      %v880 = vunpack.c.l.b16 %v328
      %v881 = vunpack.c.l.b16 %v329
      %v882 = vunpack.c.l.b16 %v330
      %v883 = vunpack.c.l.b16 %v331
      %v884 = vunpack.c.l.b16 %v332
      %v885 = vunpack.c.l.b16 %v333
      %v886 = vunpack.c.l.b16 %v334
      %v887 = vunpack.c.l.b16 %v335
      %v888 = vunpack.c.l.b16 %v336
      %v889 = vunpack.c.l.b16 %v337
      %v890 = vunpack.c.l.b16 %v338
      %v891 = vunpack.c.l.b16 %v339
      %v892 = vunpack.c.l.b16 %v340
      %v893 = vunpack.c.l.b16 %v341
      %v894 = vunpack.c.l.b16 %v342
      %v895 = vunpack.c.l.b16 %v343
      %v896 = vunpack.c.l.b16 %v344
      %v897 = vunpack.c.l.b16 %v345
      %v898 = vunpack.c.l.b16 %v346
      %v899 = vunpack.c.l.b16 %v347
      %v900 = vunpack.c.l.b16 %v348
      %v901 = vunpack.c.l.b16 %v349
      %v902 = vunpack.c.l.b16 %v350
      %v903 = vunpack.c.l.b16 %v351
      %v904 = vunpack.c.l.b16 %v352
      %v905 = vunpack.c.l.b16 %v353
      %v906 = vunpack.c.l.b16 %v354
      %v907 = vunpack.c.l.b16 %v355
      %v908 = vunpack.c.l.b16 %v356
      %v909 = vunpack.c.l.b16 %v357
      %v910 = vunpack.c.l.b16 %v358
      %v911 = vunpack.c.l.b16 %v359
      %v912 = vunpack.c.l.b16 %v360
      %v913 = vunpack.c.l.b16 %v361
      %v914 = vunpack.c.l.b16 %v362
      %v915 = vunpack.c.l.b16 %v363
      %v916 = vunpack.c.l.b16 %v364
      %v917 = vunpack.c.l.b16 %v365
      %v918 = vunpack.c.l.b16 %v366
      %v919 = vunpack.c.l.b16 %v367
      %v920 = vunpack.c.l.b16 %v368
      %v921 = vunpack.c.l.b16 %v369
      %v922 = vunpack.c.l.b16 %v370
      %v923 = vunpack.c.l.b16 %v371
      %v924 = vunpack.c.l.b16 %v372
      %v925 = vunpack.c.l.b16 %v373
      %v926 = vunpack.c.l.b16 %v374
      %v927 = vunpack.c.l.b16 %v375
      %v928 = vunpack.c.l.b16 %v376
      %v929 = vunpack.c.l.b16 %v377
      %v930 = vunpack.c.l.b16 %v378
      %v931 = vunpack.c.l.b16 %v379
      %v932 = vunpack.c.l.b16 %v380
      %v933 = vunpack.c.l.b16 %v381
      %v934 = vunpack.c.l.b16 %v382
      %v935 = vunpack.c.l.b16 %v383
      %v936 = vunpack.c.l.b16 %v384
      %v937 = vunpack.c.l.b16 %v385
      %v938 = vunpack.c.l.b16 %v386
      %v939 = vunpack.c.l.b16 %v387
      %v940 = vunpack.c.l.b16 %v388
      %v941 = vunpack.c.l.b16 %v389
      %v942 = vunpack.c.l.b16 %v390
      %v943 = vpack.c.b16 %v868, %v867
      %v944 = vpack.c.b16 %v870, %v869
      %v945 = vpack.c.b16 %v872, %v871
      %v946 = vpack.c.b16 %v874, %v873
      %v947 = vpack.c.b16 %v876, %v875
      %v948 = vpack.c.b16 %v878, %v877
      %v949 = vpack.c.b16 %v880, %v879
      %v950 = vpack.c.b16 %v882, %v881
      %v951 = vpack.c.b16 %v884, %v883
      %v952 = vpack.c.b16 %v886, %v885
      %v953 = vpack.c.b16 %v888, %v887
      %v954 = vpack.c.b16 %v890, %v889
      %v955 = vpack.c.b16 %v892, %v891
      %v956 = vpack.c.b16 %v894, %v893
      %v957 = vpack.c.b16 %v896, %v895
      %v958 = vpack.c.b16 %v898, %v897
      %v959 = vpack.c.b16 %v900, %v899
      %v960 = vpack.c.b16 %v902, %v901
      %v961 = vpack.c.b16 %v904, %v903
      %v962 = vpack.c.b16 %v906, %v905
      %v963 = vpack.c.b16 %v908, %v907
      %v964 = vpack.c.b16 %v910, %v909
      %v965 = vpack.c.b16 %v912, %v911
      %v966 = vpack.c.b16 %v914, %v913
      %v967 = vpack.c.b16 %v916, %v915
      %v968 = vpack.c.b16 %v918, %v917
      %v969 = vpack.c.b16 %v920, %v919
      %v970 = vpack.c.b16 %v922, %v921
      %v971 = vpack.c.b16 %v924, %v923
      %v972 = vpack.c.b16 %v926, %v925
      %v973 = vpack.c.b16 %v928, %v927
      %v974 = vpack.c.b16 %v930, %v929
      %v975 = vpack.c.b16 %v932, %v931
      %v976 = vpack.c.b16 %v934, %v933
      %v977 = vpack.c.b16 %v936, %v935
      %v978 = vpack.c.b16 %v938, %v937
      %v979 = vpack.c.b16 %v940, %v939
      %v980 = vpack.c.b16 %v942, %v941
      %vm1019 = vcmask 785408
      %v1021 = vsel %vm1019, %v651, 0
      %v1024 = vsel %vm1019, %v656, 0
      %v1027 = vsel %vm1019, %v661, 0
      %v1030 = vsel %vm1019, %v666, 0
      %v1033 = vsel %vm1019, %v671, 0
      %v1036 = vsel %vm1019, %v676, 0
      %v1039 = vsel %vm1019, %v681, 0
      %v1042 = vsel %vm1019, %v686, 0
      %v1045 = vsel %vm1019, %v691, 0
      %v1048 = vsel %vm1019, %v696, 0
      %v1051 = vsel %vm1019, %v701, 0
      %v1054 = vsel %vm1019, %v706, 0
      %v1057 = vsel %vm1019, %v711, 0
      %v1060 = vsel %vm1019, %v716, 0
      %v1063 = vsel %vm1019, %v721, 0
      %v1066 = vsel %vm1019, %v726, 0
      %1068 = vmatpush.bf16.msra.mxu0 %v950
      %1069 = vmatpush.bf16.msra.mxu0 %v949
      %1070 = vmatpush.bf16.msra.mxu0 %v948
      %1071 = vmatpush.bf16.msra.mxu0 %v947
      %1072 = vmatpush.bf16.msra.mxu0 %v946
      %1073 = vmatpush.bf16.msra.mxu0 %v945
      %1074 = vmatpush.bf16.msra.mxu0 %v944
      %1075 = vmatpush.bf16.msra.mxu0 %v943
      %1076 = vmatmul.bf16.gmra.mxu0 %v647
      %v1077 = vpop.f32.mrf.mxu0
      %v1078 = vadd.f32 0.0, %v1077
      %v1079 = vpop.f32.mrf.mxu0
      %v1080 = vadd.f32 0.0, %v1079
      %1081 = vmatmul.bf16.gmra.mxu0 %v652
      %v1082 = vpop.f32.mrf.mxu0
      %v1083 = vadd.f32 0.0, %v1082
      %v1084 = vpop.f32.mrf.mxu0
      %v1085 = vadd.f32 0.0, %v1084
      %1086 = vmatmul.bf16.gmra.mxu0 %v657
      %v1087 = vpop.f32.mrf.mxu0
      %v1088 = vadd.f32 0.0, %v1087
      %v1089 = vpop.f32.mrf.mxu0
      %v1090 = vadd.f32 0.0, %v1089
      %1091 = vmatmul.bf16.gmra.mxu0 %v662
      %v1092 = vpop.f32.mrf.mxu0
      %v1093 = vadd.f32 0.0, %v1092
      %v1094 = vpop.f32.mrf.mxu0
      %v1095 = vadd.f32 0.0, %v1094
      %1096 = vmatmul.bf16.gmra.mxu0 %v667
      %v1097 = vpop.f32.mrf.mxu0
      %v1098 = vadd.f32 0.0, %v1097
      %v1099 = vpop.f32.mrf.mxu0
      %v1100 = vadd.f32 0.0, %v1099
      %1101 = vmatmul.bf16.gmra.mxu0 %v672
      %v1102 = vpop.f32.mrf.mxu0
      %v1103 = vadd.f32 0.0, %v1102
      %v1104 = vpop.f32.mrf.mxu0
      %v1105 = vadd.f32 0.0, %v1104
      %1106 = vmatmul.bf16.gmra.mxu0 %v677
      %v1107 = vpop.f32.mrf.mxu0
      %v1108 = vadd.f32 0.0, %v1107
      %v1109 = vpop.f32.mrf.mxu0
      %v1110 = vadd.f32 0.0, %v1109
      %1111 = vmatmul.bf16.gmra.mxu0 %v682
      %v1112 = vpop.f32.mrf.mxu0
      %v1113 = vadd.f32 0.0, %v1112
      %v1114 = vpop.f32.mrf.mxu0
      %v1115 = vadd.f32 0.0, %v1114
      %1116 = vmatmul.bf16.gmra.mxu0 %v687
      %v1117 = vpop.f32.mrf.mxu0
      %v1118 = vadd.f32 0.0, %v1117
      %v1119 = vpop.f32.mrf.mxu0
      %v1120 = vadd.f32 0.0, %v1119
      %1121 = vmatmul.bf16.gmra.mxu0 %v692
      %v1122 = vpop.f32.mrf.mxu0
      %v1123 = vadd.f32 0.0, %v1122
      %v1124 = vpop.f32.mrf.mxu0
      %v1125 = vadd.f32 0.0, %v1124
      %1126 = vmatmul.bf16.gmra.mxu0 %v697
      %v1127 = vpop.f32.mrf.mxu0
      %v1128 = vadd.f32 0.0, %v1127
      %v1129 = vpop.f32.mrf.mxu0
      %v1130 = vadd.f32 0.0, %v1129
      %1131 = vmatmul.bf16.gmra.mxu0 %v702
      %v1132 = vpop.f32.mrf.mxu0
      %v1133 = vadd.f32 0.0, %v1132
      %v1134 = vpop.f32.mrf.mxu0
      %v1135 = vadd.f32 0.0, %v1134
      %1136 = vmatmul.bf16.gmra.mxu0 %v707
      %v1137 = vpop.f32.mrf.mxu0
      %v1138 = vadd.f32 0.0, %v1137
      %v1139 = vpop.f32.mrf.mxu0
      %v1140 = vadd.f32 0.0, %v1139
      %1141 = vmatmul.bf16.gmra.mxu0 %v712
      %v1142 = vpop.f32.mrf.mxu0
      %v1143 = vadd.f32 0.0, %v1142
      %v1144 = vpop.f32.mrf.mxu0
      %v1145 = vadd.f32 0.0, %v1144
      %1146 = vmatmul.bf16.gmra.mxu0 %v717
      %v1147 = vpop.f32.mrf.mxu0
      %v1148 = vadd.f32 0.0, %v1147
      %v1149 = vpop.f32.mrf.mxu0
      %v1150 = vadd.f32 0.0, %v1149
      %1151 = vmatmul.bf16.gmra.mxu0 %v722
      %v1152 = vpop.f32.mrf.mxu0
      %v1153 = vadd.f32 0.0, %v1152
      %v1154 = vpop.f32.mrf.mxu0
      %v1155 = vadd.f32 0.0, %v1154
      %1156 = vdwg.mxu0
      %1157 = vmatpush.bf16.msra.mxu0 %v958
      %1158 = vmatpush.bf16.msra.mxu0 %v957
      %1159 = vmatpush.bf16.msra.mxu0 %v956
      %1160 = vmatpush.bf16.msra.mxu0 %v955
      %1161 = vmatpush.bf16.msra.mxu0 %v954
      %1162 = vmatpush.bf16.msra.mxu0 %v953
      %1163 = vmatpush.bf16.msra.mxu0 %v952
      %1164 = vmatpush.bf16.msra.mxu0 %v951
      %1165 = vmatmul.bf16.gmra.mxu0 %v648
      %v1166 = vpop.f32.mrf.mxu0
      %v1167 = vadd.f32 %v1078, %v1166
      %v1168 = vpop.f32.mrf.mxu0
      %v1169 = vadd.f32 %v1080, %v1168
      %1170 = vmatmul.bf16.gmra.mxu0 %v653
      %v1171 = vpop.f32.mrf.mxu0
      %v1172 = vadd.f32 %v1083, %v1171
      %v1173 = vpop.f32.mrf.mxu0
      %v1174 = vadd.f32 %v1085, %v1173
      %1175 = vmatmul.bf16.gmra.mxu0 %v658
      %v1176 = vpop.f32.mrf.mxu0
      %v1177 = vadd.f32 %v1088, %v1176
      %v1178 = vpop.f32.mrf.mxu0
      %v1179 = vadd.f32 %v1090, %v1178
      %1180 = vmatmul.bf16.gmra.mxu0 %v663
      %v1181 = vpop.f32.mrf.mxu0
      %v1182 = vadd.f32 %v1093, %v1181
      %v1183 = vpop.f32.mrf.mxu0
      %v1184 = vadd.f32 %v1095, %v1183
      %1185 = vmatmul.bf16.gmra.mxu0 %v668
      %v1186 = vpop.f32.mrf.mxu0
      %v1187 = vadd.f32 %v1098, %v1186
      %v1188 = vpop.f32.mrf.mxu0
      %v1189 = vadd.f32 %v1100, %v1188
      %1190 = vmatmul.bf16.gmra.mxu0 %v673
      %v1191 = vpop.f32.mrf.mxu0
      %v1192 = vadd.f32 %v1103, %v1191
      %v1193 = vpop.f32.mrf.mxu0
      %v1194 = vadd.f32 %v1105, %v1193
      %1195 = vmatmul.bf16.gmra.mxu0 %v678
      %v1196 = vpop.f32.mrf.mxu0
      %v1197 = vadd.f32 %v1108, %v1196
      %v1198 = vpop.f32.mrf.mxu0
      %v1199 = vadd.f32 %v1110, %v1198
      %1200 = vmatmul.bf16.gmra.mxu0 %v683
      %v1201 = vpop.f32.mrf.mxu0
      %v1202 = vadd.f32 %v1113, %v1201
      %v1203 = vpop.f32.mrf.mxu0
      %v1204 = vadd.f32 %v1115, %v1203
      %1205 = vmatmul.bf16.gmra.mxu0 %v688
      %v1206 = vpop.f32.mrf.mxu0
      %v1207 = vadd.f32 %v1118, %v1206
      %v1208 = vpop.f32.mrf.mxu0
      %v1209 = vadd.f32 %v1120, %v1208
      %1210 = vmatmul.bf16.gmra.mxu0 %v693
      %v1211 = vpop.f32.mrf.mxu0
      %v1212 = vadd.f32 %v1123, %v1211
      %v1213 = vpop.f32.mrf.mxu0
      %v1214 = vadd.f32 %v1125, %v1213
      %1215 = vmatmul.bf16.gmra.mxu0 %v698
      %v1216 = vpop.f32.mrf.mxu0
      %v1217 = vadd.f32 %v1128, %v1216
      %v1218 = vpop.f32.mrf.mxu0
      %v1219 = vadd.f32 %v1130, %v1218
      %1220 = vmatmul.bf16.gmra.mxu0 %v703
      %v1221 = vpop.f32.mrf.mxu0
      %v1222 = vadd.f32 %v1133, %v1221
      %v1223 = vpop.f32.mrf.mxu0
      %v1224 = vadd.f32 %v1135, %v1223
      %1225 = vmatmul.bf16.gmra.mxu0 %v708
      %v1226 = vpop.f32.mrf.mxu0
      %v1227 = vadd.f32 %v1138, %v1226
      %v1228 = vpop.f32.mrf.mxu0
      %v1229 = vadd.f32 %v1140, %v1228
      %1230 = vmatmul.bf16.gmra.mxu0 %v713
      %v1231 = vpop.f32.mrf.mxu0
      %v1232 = vadd.f32 %v1143, %v1231
      %v1233 = vpop.f32.mrf.mxu0
      %v1234 = vadd.f32 %v1145, %v1233
      %1235 = vmatmul.bf16.gmra.mxu0 %v718
      %v1236 = vpop.f32.mrf.mxu0
      %v1237 = vadd.f32 %v1148, %v1236
      %v1238 = vpop.f32.mrf.mxu0
      %v1239 = vadd.f32 %v1150, %v1238
      %1240 = vmatmul.bf16.gmra.mxu0 %v723
      %v1241 = vpop.f32.mrf.mxu0
      %v1242 = vadd.f32 %v1153, %v1241
      %v1243 = vpop.f32.mrf.mxu0
      %v1244 = vadd.f32 %v1155, %v1243
      %1245 = vdwg.mxu0
      %1246 = vmatpush.bf16.msra.mxu0 %v966
      %1247 = vmatpush.bf16.msra.mxu0 %v965
      %1248 = vmatpush.bf16.msra.mxu0 %v964
      %1249 = vmatpush.bf16.msra.mxu0 %v963
      %1250 = vmatpush.bf16.msra.mxu0 %v962
      %1251 = vmatpush.bf16.msra.mxu0 %v961
      %1252 = vmatpush.bf16.msra.mxu0 %v960
      %1253 = vmatpush.bf16.msra.mxu0 %v959
      %1254 = vmatmul.bf16.gmra.mxu0 %v649
      %v1255 = vpop.f32.mrf.mxu0
      %v1256 = vadd.f32 %v1167, %v1255
      %v1257 = vpop.f32.mrf.mxu0
      %v1258 = vadd.f32 %v1169, %v1257
      %1259 = vmatmul.bf16.gmra.mxu0 %v654
      %v1260 = vpop.f32.mrf.mxu0
      %v1261 = vadd.f32 %v1172, %v1260
      %v1262 = vpop.f32.mrf.mxu0
      %v1263 = vadd.f32 %v1174, %v1262
      %1264 = vmatmul.bf16.gmra.mxu0 %v659
      %v1265 = vpop.f32.mrf.mxu0
      %v1266 = vadd.f32 %v1177, %v1265
      %v1267 = vpop.f32.mrf.mxu0
      %v1268 = vadd.f32 %v1179, %v1267
      %1269 = vmatmul.bf16.gmra.mxu0 %v664
      %v1270 = vpop.f32.mrf.mxu0
      %v1271 = vadd.f32 %v1182, %v1270
      %v1272 = vpop.f32.mrf.mxu0
      %v1273 = vadd.f32 %v1184, %v1272
      %1274 = vmatmul.bf16.gmra.mxu0 %v669
      %v1275 = vpop.f32.mrf.mxu0
      %v1276 = vadd.f32 %v1187, %v1275
      %v1277 = vpop.f32.mrf.mxu0
      %v1278 = vadd.f32 %v1189, %v1277
      %1279 = vmatmul.bf16.gmra.mxu0 %v674
      %v1280 = vpop.f32.mrf.mxu0
      %v1281 = vadd.f32 %v1192, %v1280
      %v1282 = vpop.f32.mrf.mxu0
      %v1283 = vadd.f32 %v1194, %v1282
      %1284 = vmatmul.bf16.gmra.mxu0 %v679
      %v1285 = vpop.f32.mrf.mxu0
      %v1286 = vadd.f32 %v1197, %v1285
      %v1287 = vpop.f32.mrf.mxu0
      %v1288 = vadd.f32 %v1199, %v1287
      %1289 = vmatmul.bf16.gmra.mxu0 %v684
      %v1290 = vpop.f32.mrf.mxu0
      %v1291 = vadd.f32 %v1202, %v1290
      %v1292 = vpop.f32.mrf.mxu0
      %v1293 = vadd.f32 %v1204, %v1292
      %1294 = vmatmul.bf16.gmra.mxu0 %v689
      %v1295 = vpop.f32.mrf.mxu0
      %v1296 = vadd.f32 %v1207, %v1295
      %v1297 = vpop.f32.mrf.mxu0
      %v1298 = vadd.f32 %v1209, %v1297
      %1299 = vmatmul.bf16.gmra.mxu0 %v694
      %v1300 = vpop.f32.mrf.mxu0
      %v1301 = vadd.f32 %v1212, %v1300
      %v1302 = vpop.f32.mrf.mxu0
      %v1303 = vadd.f32 %v1214, %v1302
      %1304 = vmatmul.bf16.gmra.mxu0 %v699
      %v1305 = vpop.f32.mrf.mxu0
      %v1306 = vadd.f32 %v1217, %v1305
      %v1307 = vpop.f32.mrf.mxu0
      %v1308 = vadd.f32 %v1219, %v1307
      %1309 = vmatmul.bf16.gmra.mxu0 %v704
      %v1310 = vpop.f32.mrf.mxu0
      %v1311 = vadd.f32 %v1222, %v1310
      %v1312 = vpop.f32.mrf.mxu0
      %v1313 = vadd.f32 %v1224, %v1312
      %1314 = vmatmul.bf16.gmra.mxu0 %v709
      %v1315 = vpop.f32.mrf.mxu0
      %v1316 = vadd.f32 %v1227, %v1315
      %v1317 = vpop.f32.mrf.mxu0
      %v1318 = vadd.f32 %v1229, %v1317
      %1319 = vmatmul.bf16.gmra.mxu0 %v714
      %v1320 = vpop.f32.mrf.mxu0
      %v1321 = vadd.f32 %v1232, %v1320
      %v1322 = vpop.f32.mrf.mxu0
      %v1323 = vadd.f32 %v1234, %v1322
      %1324 = vmatmul.bf16.gmra.mxu0 %v719
      %v1325 = vpop.f32.mrf.mxu0
      %v1326 = vadd.f32 %v1237, %v1325
      %v1327 = vpop.f32.mrf.mxu0
      %v1328 = vadd.f32 %v1239, %v1327
      %1329 = vmatmul.bf16.gmra.mxu0 %v724
      %v1330 = vpop.f32.mrf.mxu0
      %v1331 = vadd.f32 %v1242, %v1330
      %v1332 = vpop.f32.mrf.mxu0
      %v1333 = vadd.f32 %v1244, %v1332
      %1334 = vdwg.mxu0
      %1335 = vmatpush.bf16.msra.mxu0 %v974
      %1336 = vmatpush.bf16.msra.mxu0 %v973
      %1337 = vmatpush.bf16.msra.mxu0 %v972
      %1338 = vmatpush.bf16.msra.mxu0 %v971
      %1339 = vmatpush.bf16.msra.mxu0 %v970
      %1340 = vmatpush.bf16.msra.mxu0 %v969
      %1341 = vmatpush.bf16.msra.mxu0 %v968
      %1342 = vmatpush.bf16.msra.mxu0 %v967
      %1343 = vmatmul.bf16.gmra.mxu0 %v650
      %v1344 = vpop.f32.mrf.mxu0
      %v1345 = vadd.f32 %v1256, %v1344
      %v1346 = vpop.f32.mrf.mxu0
      %v1347 = vadd.f32 %v1258, %v1346
      %1348 = vmatmul.bf16.gmra.mxu0 %v655
      %v1349 = vpop.f32.mrf.mxu0
      %v1350 = vadd.f32 %v1261, %v1349
      %v1351 = vpop.f32.mrf.mxu0
      %v1352 = vadd.f32 %v1263, %v1351
      %1353 = vmatmul.bf16.gmra.mxu0 %v660
      %v1354 = vpop.f32.mrf.mxu0
      %v1355 = vadd.f32 %v1266, %v1354
      %v1356 = vpop.f32.mrf.mxu0
      %v1357 = vadd.f32 %v1268, %v1356
      %1358 = vmatmul.bf16.gmra.mxu0 %v665
      %v1359 = vpop.f32.mrf.mxu0
      %v1360 = vadd.f32 %v1271, %v1359
      %v1361 = vpop.f32.mrf.mxu0
      %v1362 = vadd.f32 %v1273, %v1361
      %1363 = vmatmul.bf16.gmra.mxu0 %v670
      %v1364 = vpop.f32.mrf.mxu0
      %v1365 = vadd.f32 %v1276, %v1364
      %v1366 = vpop.f32.mrf.mxu0
      %v1367 = vadd.f32 %v1278, %v1366
      %1368 = vmatmul.bf16.gmra.mxu0 %v675
      %v1369 = vpop.f32.mrf.mxu0
      %v1370 = vadd.f32 %v1281, %v1369
      %v1371 = vpop.f32.mrf.mxu0
      %v1372 = vadd.f32 %v1283, %v1371
      %1373 = vmatmul.bf16.gmra.mxu0 %v680
      %v1374 = vpop.f32.mrf.mxu0
      %v1375 = vadd.f32 %v1286, %v1374
      %v1376 = vpop.f32.mrf.mxu0
      %v1377 = vadd.f32 %v1288, %v1376
      %1378 = vmatmul.bf16.gmra.mxu0 %v685
      %v1379 = vpop.f32.mrf.mxu0
      %v1380 = vadd.f32 %v1291, %v1379
      %v1381 = vpop.f32.mrf.mxu0
      %v1382 = vadd.f32 %v1293, %v1381
      %1383 = vmatmul.bf16.gmra.mxu0 %v690
      %v1384 = vpop.f32.mrf.mxu0
      %v1385 = vadd.f32 %v1296, %v1384
      %v1386 = vpop.f32.mrf.mxu0
      %v1387 = vadd.f32 %v1298, %v1386
      %1388 = vmatmul.bf16.gmra.mxu0 %v695
      %v1389 = vpop.f32.mrf.mxu0
      %v1390 = vadd.f32 %v1301, %v1389
      %v1391 = vpop.f32.mrf.mxu0
      %v1392 = vadd.f32 %v1303, %v1391
      %1393 = vmatmul.bf16.gmra.mxu0 %v700
      %v1394 = vpop.f32.mrf.mxu0
      %v1395 = vadd.f32 %v1306, %v1394
      %v1396 = vpop.f32.mrf.mxu0
      %v1397 = vadd.f32 %v1308, %v1396
      %1398 = vmatmul.bf16.gmra.mxu0 %v705
      %v1399 = vpop.f32.mrf.mxu0
      %v1400 = vadd.f32 %v1311, %v1399
      %v1401 = vpop.f32.mrf.mxu0
      %v1402 = vadd.f32 %v1313, %v1401
      %1403 = vmatmul.bf16.gmra.mxu0 %v710
      %v1404 = vpop.f32.mrf.mxu0
      %v1405 = vadd.f32 %v1316, %v1404
      %v1406 = vpop.f32.mrf.mxu0
      %v1407 = vadd.f32 %v1318, %v1406
      %1408 = vmatmul.bf16.gmra.mxu0 %v715
      %v1409 = vpop.f32.mrf.mxu0
      %v1410 = vadd.f32 %v1321, %v1409
      %v1411 = vpop.f32.mrf.mxu0
      %v1412 = vadd.f32 %v1323, %v1411
      %1413 = vmatmul.bf16.gmra.mxu0 %v720
      %v1414 = vpop.f32.mrf.mxu0
      %v1415 = vadd.f32 %v1326, %v1414
      %v1416 = vpop.f32.mrf.mxu0
      %v1417 = vadd.f32 %v1328, %v1416
      %1418 = vmatmul.bf16.gmra.mxu0 %v725
      %v1419 = vpop.f32.mrf.mxu0
      %v1420 = vadd.f32 %v1331, %v1419
      %v1421 = vpop.f32.mrf.mxu0
      %v1422 = vadd.f32 %v1333, %v1421
      %1423 = vdwg.mxu0
      %1424 = vmatpush.bf16.msra.mxu0 0
      %1425 = vmatpush.bf16.msra.mxu0 0
      %1426 = vmatpush.bf16.msra.mxu0 %v980
      %1427 = vmatpush.bf16.msra.mxu0 %v979
      %1428 = vmatpush.bf16.msra.mxu0 %v978
      %1429 = vmatpush.bf16.msra.mxu0 %v977
      %1430 = vmatpush.bf16.msra.mxu0 %v976
      %1431 = vmatpush.bf16.msra.mxu0 %v975
      %1432 = vmatmul.bf16.gmra.mxu0 %v1021
      %v1433 = vpop.f32.mrf.mxu0
      %v1434 = vadd.f32 %v1345, %v1433
      %v1435 = vpop.f32.mrf.mxu0
      %v1436 = vadd.f32 %v1347, %v1435
      %1437 = vmatmul.bf16.gmra.mxu0 %v1024
      %v1438 = vpop.f32.mrf.mxu0
      %v1439 = vadd.f32 %v1350, %v1438
      %v1440 = vpop.f32.mrf.mxu0
      %v1441 = vadd.f32 %v1352, %v1440
      %1442 = vmatmul.bf16.gmra.mxu0 %v1027
      %v1443 = vpop.f32.mrf.mxu0
      %v1444 = vadd.f32 %v1355, %v1443
      %v1445 = vpop.f32.mrf.mxu0
      %v1446 = vadd.f32 %v1357, %v1445
      %1447 = vmatmul.bf16.gmra.mxu0 %v1030
      %v1448 = vpop.f32.mrf.mxu0
      %v1449 = vadd.f32 %v1360, %v1448
      %v1450 = vpop.f32.mrf.mxu0
      %v1451 = vadd.f32 %v1362, %v1450
      %1452 = vmatmul.bf16.gmra.mxu0 %v1033
      %v1453 = vpop.f32.mrf.mxu0
      %v1454 = vadd.f32 %v1365, %v1453
      %v1455 = vpop.f32.mrf.mxu0
      %v1456 = vadd.f32 %v1367, %v1455
      %1457 = vmatmul.bf16.gmra.mxu0 %v1036
      %v1458 = vpop.f32.mrf.mxu0
      %v1459 = vadd.f32 %v1370, %v1458
      %v1460 = vpop.f32.mrf.mxu0
      %v1461 = vadd.f32 %v1372, %v1460
      %1462 = vmatmul.bf16.gmra.mxu0 %v1039
      %v1463 = vpop.f32.mrf.mxu0
      %v1464 = vadd.f32 %v1375, %v1463
      %v1465 = vpop.f32.mrf.mxu0
      %v1466 = vadd.f32 %v1377, %v1465
      %1467 = vmatmul.bf16.gmra.mxu0 %v1042
      %v1468 = vpop.f32.mrf.mxu0
      %v1469 = vadd.f32 %v1380, %v1468
      %v1470 = vpop.f32.mrf.mxu0
      %v1471 = vadd.f32 %v1382, %v1470
      %1472 = vmatmul.bf16.gmra.mxu0 %v1045
      %v1473 = vpop.f32.mrf.mxu0
      %v1474 = vadd.f32 %v1385, %v1473
      %v1475 = vpop.f32.mrf.mxu0
      %v1476 = vadd.f32 %v1387, %v1475
      %1477 = vmatmul.bf16.gmra.mxu0 %v1048
      %v1478 = vpop.f32.mrf.mxu0
      %v1479 = vadd.f32 %v1390, %v1478
      %v1480 = vpop.f32.mrf.mxu0
      %v1481 = vadd.f32 %v1392, %v1480
      %1482 = vmatmul.bf16.gmra.mxu0 %v1051
      %v1483 = vpop.f32.mrf.mxu0
      %v1484 = vadd.f32 %v1395, %v1483
      %v1485 = vpop.f32.mrf.mxu0
      %v1486 = vadd.f32 %v1397, %v1485
      %1487 = vmatmul.bf16.gmra.mxu0 %v1054
      %v1488 = vpop.f32.mrf.mxu0
      %v1489 = vadd.f32 %v1400, %v1488
      %v1490 = vpop.f32.mrf.mxu0
      %v1491 = vadd.f32 %v1402, %v1490
      %1492 = vmatmul.bf16.gmra.mxu0 %v1057
      %v1493 = vpop.f32.mrf.mxu0
      %v1494 = vadd.f32 %v1405, %v1493
      %v1495 = vpop.f32.mrf.mxu0
      %v1496 = vadd.f32 %v1407, %v1495
      %1497 = vmatmul.bf16.gmra.mxu0 %v1060
      %v1498 = vpop.f32.mrf.mxu0
      %v1499 = vadd.f32 %v1410, %v1498
      %v1500 = vpop.f32.mrf.mxu0
      %v1501 = vadd.f32 %v1412, %v1500
      %1502 = vmatmul.bf16.gmra.mxu0 %v1063
      %v1503 = vpop.f32.mrf.mxu0
      %v1504 = vadd.f32 %v1415, %v1503
      %v1505 = vpop.f32.mrf.mxu0
      %v1506 = vadd.f32 %v1417, %v1505
      %1507 = vmatmul.bf16.gmra.mxu0 %v1066
      %v1508 = vpop.f32.mrf.mxu0
      %v1509 = vadd.f32 %v1420, %v1508
      %v1510 = vpop.f32.mrf.mxu0
      %v1511 = vadd.f32 %v1422, %v1510
      %1512 = vdwg.mxu0
      %v1513 = vpack.c.bf16 %v1434, %v1434
      %v1514 = vpack.c.bf16 %v1436, %v1436
      %v1515 = vpack.c.bf16 %v1439, %v1439
      %v1516 = vpack.c.bf16 %v1441, %v1441
      %v1517 = vpack.c.bf16 %v1444, %v1444
      %v1518 = vpack.c.bf16 %v1446, %v1446
      %v1519 = vpack.c.bf16 %v1449, %v1449
      %v1520 = vpack.c.bf16 %v1451, %v1451
      %v1521 = vpack.c.bf16 %v1454, %v1454
      %v1522 = vpack.c.bf16 %v1456, %v1456
      %v1523 = vpack.c.bf16 %v1459, %v1459
      %v1524 = vpack.c.bf16 %v1461, %v1461
      %v1525 = vpack.c.bf16 %v1464, %v1464
      %v1526 = vpack.c.bf16 %v1466, %v1466
      %v1527 = vpack.c.bf16 %v1469, %v1469
      %v1528 = vpack.c.bf16 %v1471, %v1471
      %v1529 = vpack.c.bf16 %v1474, %v1474
      %v1530 = vpack.c.bf16 %v1476, %v1476
      %v1531 = vpack.c.bf16 %v1479, %v1479
      %v1532 = vpack.c.bf16 %v1481, %v1481
      %v1533 = vpack.c.bf16 %v1484, %v1484
      %v1534 = vpack.c.bf16 %v1486, %v1486
      %v1535 = vpack.c.bf16 %v1489, %v1489
      %v1536 = vpack.c.bf16 %v1491, %v1491
      %v1537 = vpack.c.bf16 %v1494, %v1494
      %v1538 = vpack.c.bf16 %v1496, %v1496
      %v1539 = vpack.c.bf16 %v1499, %v1499
      %v1540 = vpack.c.bf16 %v1501, %v1501
      %v1541 = vpack.c.bf16 %v1504, %v1504
      %v1542 = vpack.c.bf16 %v1506, %v1506
      %v1543 = vpack.c.bf16 %v1509, %v1509
      %v1544 = vpack.c.bf16 %v1511, %v1511
      %vm1545 = vcmask 519168
      %1546 = vst.msk [vmem:[%s210] sm:$0xf] %vm1545, %v1513
      %1547 = vst.msk [vmem:[%s210 + $0x4] sm:$0xf] %vm1545, %v1514
      %1548 = vst.msk [vmem:[%s210 + $0x8] sm:$0xf] %vm1545, %v1515
      %1549 = vst.msk [vmem:[%s210 + $0xc] sm:$0xf] %vm1545, %v1516
      %1550 = vst.msk [vmem:[%s210 + $0x10] sm:$0xf] %vm1545, %v1517
      %1551 = vst.msk [vmem:[%s210 + $0x14] sm:$0xf] %vm1545, %v1518
      %1552 = vst.msk [vmem:[%s210 + $0x18] sm:$0xf] %vm1545, %v1519
      %1553 = vst.msk [vmem:[%s210 + $0x1c] sm:$0xf] %vm1545, %v1520
      %1554 = vst.msk [vmem:[%s210 + $0x20] sm:$0xf] %vm1545, %v1521
      %1555 = vst.msk [vmem:[%s210 + $0x24] sm:$0xf] %vm1545, %v1522
      %1556 = vst.msk [vmem:[%s210 + $0x28] sm:$0xf] %vm1545, %v1523
      %1557 = vst.msk [vmem:[%s210 + $0x2c] sm:$0xf] %vm1545, %v1524
      %1558 = vst.msk [vmem:[%s210 + $0x30] sm:$0xf] %vm1545, %v1525
      %1559 = vst.msk [vmem:[%s210 + $0x34] sm:$0xf] %vm1545, %v1526
      %1560 = vst.msk [vmem:[%s210 + $0x38] sm:$0xf] %vm1545, %v1527
      %1561 = vst.msk [vmem:[%s210 + $0x3c] sm:$0xf] %vm1545, %v1528
      %1562 = vst.msk [vmem:[%s210 + $0x40] sm:$0xf] %vm1545, %v1529
      %1563 = vst.msk [vmem:[%s210 + $0x44] sm:$0xf] %vm1545, %v1530
      %1564 = vst.msk [vmem:[%s210 + $0x48] sm:$0xf] %vm1545, %v1531
      %1565 = vst.msk [vmem:[%s210 + $0x4c] sm:$0xf] %vm1545, %v1532
      %1566 = vst.msk [vmem:[%s210 + $0x50] sm:$0xf] %vm1545, %v1533
      %1567 = vst.msk [vmem:[%s210 + $0x54] sm:$0xf] %vm1545, %v1534
      %1568 = vst.msk [vmem:[%s210 + $0x58] sm:$0xf] %vm1545, %v1535
      %1569 = vst.msk [vmem:[%s210 + $0x5c] sm:$0xf] %vm1545, %v1536
      %1570 = vst.msk [vmem:[%s210 + $0x60] sm:$0xf] %vm1545, %v1537
      %1571 = vst.msk [vmem:[%s210 + $0x64] sm:$0xf] %vm1545, %v1538
      %1572 = vst.msk [vmem:[%s210 + $0x68] sm:$0xf] %vm1545, %v1539
      %1573 = vst.msk [vmem:[%s210 + $0x6c] sm:$0xf] %vm1545, %v1540
      %1574 = vst.msk [vmem:[%s210 + $0x70] sm:$0xf] %vm1545, %v1541
      %1575 = vst.msk [vmem:[%s210 + $0x74] sm:$0xf] %vm1545, %v1542
      %1576 = vst.msk [vmem:[%s210 + $0x78] sm:$0xf] %vm1545, %v1543
      %1577 = vst.msk [vmem:[%s210 + $0x7c] sm:$0xf] %vm1545, %v1544
      %v1578 = vld [vmem:[%s2] sm:$0xf]
      %v1579 = vld [vmem:[%s2 + $0x4] sm:$0xf]
      %v1580 = vld [vmem:[%s2 + $0x8] sm:$0xf]
      %v1581 = vld [vmem:[%s2 + $0xc] sm:$0xf]
      %v1582 = vld [vmem:[%s2 + $0x10] sm:$0xf]
      %v1583 = vld [vmem:[%s2 + $0x14] sm:$0xf]
      %v1584 = vld [vmem:[%s2 + $0x18] sm:$0xf]
      %v1585 = vld [vmem:[%s2 + $0x1c] sm:$0xf]
      %v1586 = vld [vmem:[%s2 + $0x20] sm:$0xf]
      %v1587 = vld [vmem:[%s2 + $0x24] sm:$0xf]
      %v1588 = vld [vmem:[%s2 + $0x28] sm:$0xf]
      %v1589 = vld [vmem:[%s2 + $0x2c] sm:$0xf]
      %v1590 = vld [vmem:[%s2 + $0x30] sm:$0xf]
      %v1591 = vld [vmem:[%s2 + $0x34] sm:$0xf]
      %v1592 = vld [vmem:[%s2 + $0x38] sm:$0xf]
      %v1593 = vld [vmem:[%s2 + $0x3c] sm:$0xf]
      %v1594 = vld [vmem:[%s2 + $0x40] sm:$0xf]
      %v1595 = vld [vmem:[%s2 + $0x44] sm:$0xf]
      %v1596 = vld [vmem:[%s2 + $0x48] sm:$0xf]
      %v1597 = vld [vmem:[%s2 + $0x4c] sm:$0xf]
      %v1598 = vld [vmem:[%s2 + $0x50] sm:$0xf]
      %v1599 = vld [vmem:[%s2 + $0x54] sm:$0xf]
      %v1600 = vld [vmem:[%s2 + $0x58] sm:$0xf]
      %v1601 = vld [vmem:[%s2 + $0x5c] sm:$0xf]
      %v1602 = vld [vmem:[%s2 + $0x60] sm:$0xf]
      %v1603 = vld [vmem:[%s2 + $0x64] sm:$0xf]
      %v1604 = vld [vmem:[%s2 + $0x68] sm:$0xf]
      %v1605 = vld [vmem:[%s2 + $0x6c] sm:$0xf]
      %v1606 = vld [vmem:[%s2 + $0x70] sm:$0xf]
      %v1607 = vld [vmem:[%s2 + $0x74] sm:$0xf]
      %v1608 = vld [vmem:[%s2 + $0x78] sm:$0xf]
      %v1609 = vld [vmem:[%s2 + $0x7c] sm:$0xf]
      %v1610 = vld [vmem:[%s2 + $0x80] sm:$0xf]
      %v1611 = vld [vmem:[%s2 + $0x84] sm:$0xf]
      %v1612 = vld [vmem:[%s2 + $0x88] sm:$0xf]
      %v1613 = vld [vmem:[%s2 + $0x8c] sm:$0xf]
      %v1614 = vld [vmem:[%s2 + $0x90] sm:$0xf]
      %v1615 = vld [vmem:[%s2 + $0x94] sm:$0xf]
      %v1616 = vld [vmem:[%s2 + $0x98] sm:$0xf]
      %v1617 = vld [vmem:[%s2 + $0x9c] sm:$0xf]
      %v1618 = vld [vmem:[%s2 + $0xa0] sm:$0xf]
      %v1619 = vld [vmem:[%s2 + $0xa4] sm:$0xf]
      %v1620 = vld [vmem:[%s2 + $0xa8] sm:$0xf]
      %v1621 = vld [vmem:[%s2 + $0xac] sm:$0xf]
      %v1622 = vld [vmem:[%s2 + $0xb0] sm:$0xf]
      %v1623 = vld [vmem:[%s2 + $0xb4] sm:$0xf]
      %v1624 = vld [vmem:[%s2 + $0xb8] sm:$0xf]
      %v1625 = vld [vmem:[%s2 + $0xbc] sm:$0xf]
      %v1626 = vld [vmem:[%s2 + $0xc0] sm:$0xf]
      %v1627 = vld [vmem:[%s2 + $0xc4] sm:$0xf]
      %v1628 = vld [vmem:[%s2 + $0xc8] sm:$0xf]
      %v1629 = vld [vmem:[%s2 + $0xcc] sm:$0xf]
      %v1630 = vld [vmem:[%s2 + $0xd0] sm:$0xf]
      %v1631 = vld [vmem:[%s2 + $0xd4] sm:$0xf]
      %v1632 = vld [vmem:[%s2 + $0xd8] sm:$0xf]
      %v1633 = vld [vmem:[%s2 + $0xdc] sm:$0xf]
      %v1634 = vld [vmem:[%s2 + $0xe0] sm:$0xf]
      %v1635 = vld [vmem:[%s2 + $0xe4] sm:$0xf]
      %v1636 = vld [vmem:[%s2 + $0xe8] sm:$0xf]
      %v1637 = vld [vmem:[%s2 + $0xec] sm:$0xf]
      %v1638 = vld [vmem:[%s2 + $0xf0] sm:$0xf]
      %v1639 = vld [vmem:[%s2 + $0xf4] sm:$0xf]
      %v1640 = vld [vmem:[%s2 + $0xf8] sm:$0xf]
      %v1641 = vld [vmem:[%s2 + $0xfc] sm:$0xf]
      %v1642 = vld [vmem:[%s2 + $0x100] sm:$0xf]
      %v1643 = vld [vmem:[%s2 + $0x104] sm:$0xf]
      %v1644 = vld [vmem:[%s2 + $0x108] sm:$0xf]
      %v1645 = vld [vmem:[%s2 + $0x10c] sm:$0xf]
      %v1646 = vld [vmem:[%s2 + $0x110] sm:$0xf]
      %v1647 = vld [vmem:[%s2 + $0x114] sm:$0xf]
      %v1648 = vld [vmem:[%s2 + $0x118] sm:$0xf]
      %v1649 = vld [vmem:[%s2 + $0x11c] sm:$0xf]
      %v1650 = vld [vmem:[%s2 + $0x120] sm:$0xf]
      %v1651 = vld [vmem:[%s2 + $0x124] sm:$0xf]
      %v1652 = vld [vmem:[%s2 + $0x128] sm:$0xf]
      %v1653 = vld [vmem:[%s2 + $0x12c] sm:$0xf]
      %v1730 = vunpack.c.l.b16 %v1578
      %v1731 = vunpack.c.l.b16 %v1579
      %v1732 = vunpack.c.l.b16 %v1580
      %v1733 = vunpack.c.l.b16 %v1581
      %v1734 = vunpack.c.l.b16 %v1582
      %v1735 = vunpack.c.l.b16 %v1583
      %v1736 = vunpack.c.l.b16 %v1584
      %v1737 = vunpack.c.l.b16 %v1585
      %v1738 = vunpack.c.l.b16 %v1586
      %v1739 = vunpack.c.l.b16 %v1587
      %v1740 = vunpack.c.l.b16 %v1588
      %v1741 = vunpack.c.l.b16 %v1589
      %v1742 = vunpack.c.l.b16 %v1590
      %v1743 = vunpack.c.l.b16 %v1591
      %v1744 = vunpack.c.l.b16 %v1592
      %v1745 = vunpack.c.l.b16 %v1593
      %v1746 = vunpack.c.l.b16 %v1594
      %v1747 = vunpack.c.l.b16 %v1595
      %v1748 = vunpack.c.l.b16 %v1596
      %v1749 = vunpack.c.l.b16 %v1597
      %v1750 = vunpack.c.l.b16 %v1598
      %v1751 = vunpack.c.l.b16 %v1599
      %v1752 = vunpack.c.l.b16 %v1600
      %v1753 = vunpack.c.l.b16 %v1601
      %v1754 = vunpack.c.l.b16 %v1602
      %v1755 = vunpack.c.l.b16 %v1603
      %v1756 = vunpack.c.l.b16 %v1604
      %v1757 = vunpack.c.l.b16 %v1605
      %v1758 = vunpack.c.l.b16 %v1606
      %v1759 = vunpack.c.l.b16 %v1607
      %v1760 = vunpack.c.l.b16 %v1608
      %v1761 = vunpack.c.l.b16 %v1609
      %v1762 = vunpack.c.l.b16 %v1610
      %v1763 = vunpack.c.l.b16 %v1611
      %v1764 = vunpack.c.l.b16 %v1612
      %v1765 = vunpack.c.l.b16 %v1613
      %v1766 = vunpack.c.l.b16 %v1614
      %v1767 = vunpack.c.l.b16 %v1615
      %v1768 = vunpack.c.l.b16 %v1616
      %v1769 = vunpack.c.l.b16 %v1617
      %v1770 = vunpack.c.l.b16 %v1618
      %v1771 = vunpack.c.l.b16 %v1619
      %v1772 = vunpack.c.l.b16 %v1620
      %v1773 = vunpack.c.l.b16 %v1621
      %v1774 = vunpack.c.l.b16 %v1622
      %v1775 = vunpack.c.l.b16 %v1623
      %v1776 = vunpack.c.l.b16 %v1624
      %v1777 = vunpack.c.l.b16 %v1625
      %v1778 = vunpack.c.l.b16 %v1626
      %v1779 = vunpack.c.l.b16 %v1627
      %v1780 = vunpack.c.l.b16 %v1628
      %v1781 = vunpack.c.l.b16 %v1629
      %v1782 = vunpack.c.l.b16 %v1630
      %v1783 = vunpack.c.l.b16 %v1631
      %v1784 = vunpack.c.l.b16 %v1632
      %v1785 = vunpack.c.l.b16 %v1633
      %v1786 = vunpack.c.l.b16 %v1634
      %v1787 = vunpack.c.l.b16 %v1635
      %v1788 = vunpack.c.l.b16 %v1636
      %v1789 = vunpack.c.l.b16 %v1637
      %v1790 = vunpack.c.l.b16 %v1638
      %v1791 = vunpack.c.l.b16 %v1639
      %v1792 = vunpack.c.l.b16 %v1640
      %v1793 = vunpack.c.l.b16 %v1641
      %v1794 = vunpack.c.l.b16 %v1642
      %v1795 = vunpack.c.l.b16 %v1643
      %v1796 = vunpack.c.l.b16 %v1644
      %v1797 = vunpack.c.l.b16 %v1645
      %v1798 = vunpack.c.l.b16 %v1646
      %v1799 = vunpack.c.l.b16 %v1647
      %v1800 = vunpack.c.l.b16 %v1648
      %v1801 = vunpack.c.l.b16 %v1649
      %v1802 = vunpack.c.l.b16 %v1650
      %v1803 = vunpack.c.l.b16 %v1651
      %v1804 = vunpack.c.l.b16 %v1652
      %v1805 = vunpack.c.l.b16 %v1653
      %v1806 = vpack.c.b16 %v1731, %v1730
      %v1807 = vpack.c.b16 %v1733, %v1732
      %v1808 = vpack.c.b16 %v1735, %v1734
      %v1809 = vpack.c.b16 %v1737, %v1736
      %v1810 = vpack.c.b16 %v1739, %v1738
      %v1811 = vpack.c.b16 %v1741, %v1740
      %v1812 = vpack.c.b16 %v1743, %v1742
      %v1813 = vpack.c.b16 %v1745, %v1744
      %v1814 = vpack.c.b16 %v1747, %v1746
      %v1815 = vpack.c.b16 %v1749, %v1748
      %v1816 = vpack.c.b16 %v1751, %v1750
      %v1817 = vpack.c.b16 %v1753, %v1752
      %v1818 = vpack.c.b16 %v1755, %v1754
      %v1819 = vpack.c.b16 %v1757, %v1756
      %v1820 = vpack.c.b16 %v1759, %v1758
      %v1821 = vpack.c.b16 %v1761, %v1760
      %v1822 = vpack.c.b16 %v1763, %v1762
      %v1823 = vpack.c.b16 %v1765, %v1764
      %v1824 = vpack.c.b16 %v1767, %v1766
      %v1825 = vpack.c.b16 %v1769, %v1768
      %v1826 = vpack.c.b16 %v1771, %v1770
      %v1827 = vpack.c.b16 %v1773, %v1772
      %v1828 = vpack.c.b16 %v1775, %v1774
      %v1829 = vpack.c.b16 %v1777, %v1776
      %v1830 = vpack.c.b16 %v1779, %v1778
      %v1831 = vpack.c.b16 %v1781, %v1780
      %v1832 = vpack.c.b16 %v1783, %v1782
      %v1833 = vpack.c.b16 %v1785, %v1784
      %v1834 = vpack.c.b16 %v1787, %v1786
      %v1835 = vpack.c.b16 %v1789, %v1788
      %v1836 = vpack.c.b16 %v1791, %v1790
      %v1837 = vpack.c.b16 %v1793, %v1792
      %v1838 = vpack.c.b16 %v1795, %v1794
      %v1839 = vpack.c.b16 %v1797, %v1796
      %v1840 = vpack.c.b16 %v1799, %v1798
      %v1841 = vpack.c.b16 %v1801, %v1800
      %v1842 = vpack.c.b16 %v1803, %v1802
      %v1843 = vpack.c.b16 %v1805, %v1804
      %1882 = vmatpush.bf16.msra.mxu0 %v1813
      %1883 = vmatpush.bf16.msra.mxu0 %v1812
      %1884 = vmatpush.bf16.msra.mxu0 %v1811
      %1885 = vmatpush.bf16.msra.mxu0 %v1810
      %1886 = vmatpush.bf16.msra.mxu0 %v1809
      %1887 = vmatpush.bf16.msra.mxu0 %v1808
      %1888 = vmatpush.bf16.msra.mxu0 %v1807
      %1889 = vmatpush.bf16.msra.mxu0 %v1806
      %1890 = vmatmul.bf16.gmra.mxu0 %v647
      %v1891 = vpop.f32.mrf.mxu0
      %v1892 = vadd.f32 0.0, %v1891
      %v1893 = vpop.f32.mrf.mxu0
      %v1894 = vadd.f32 0.0, %v1893
      %1895 = vmatmul.bf16.gmra.mxu0 %v652
      %v1896 = vpop.f32.mrf.mxu0
      %v1897 = vadd.f32 0.0, %v1896
      %v1898 = vpop.f32.mrf.mxu0
      %v1899 = vadd.f32 0.0, %v1898
      %1900 = vmatmul.bf16.gmra.mxu0 %v657
      %v1901 = vpop.f32.mrf.mxu0
      %v1902 = vadd.f32 0.0, %v1901
      %v1903 = vpop.f32.mrf.mxu0
      %v1904 = vadd.f32 0.0, %v1903
      %1905 = vmatmul.bf16.gmra.mxu0 %v662
      %v1906 = vpop.f32.mrf.mxu0
      %v1907 = vadd.f32 0.0, %v1906
      %v1908 = vpop.f32.mrf.mxu0
      %v1909 = vadd.f32 0.0, %v1908
      %1910 = vmatmul.bf16.gmra.mxu0 %v667
      %v1911 = vpop.f32.mrf.mxu0
      %v1912 = vadd.f32 0.0, %v1911
      %v1913 = vpop.f32.mrf.mxu0
      %v1914 = vadd.f32 0.0, %v1913
      %1915 = vmatmul.bf16.gmra.mxu0 %v672
      %v1916 = vpop.f32.mrf.mxu0
      %v1917 = vadd.f32 0.0, %v1916
      %v1918 = vpop.f32.mrf.mxu0
      %v1919 = vadd.f32 0.0, %v1918
      %1920 = vmatmul.bf16.gmra.mxu0 %v677
      %v1921 = vpop.f32.mrf.mxu0
      %v1922 = vadd.f32 0.0, %v1921
      %v1923 = vpop.f32.mrf.mxu0
      %v1924 = vadd.f32 0.0, %v1923
      %1925 = vmatmul.bf16.gmra.mxu0 %v682
      %v1926 = vpop.f32.mrf.mxu0
      %v1927 = vadd.f32 0.0, %v1926
      %v1928 = vpop.f32.mrf.mxu0
      %v1929 = vadd.f32 0.0, %v1928
      %1930 = vmatmul.bf16.gmra.mxu0 %v687
      %v1931 = vpop.f32.mrf.mxu0
      %v1932 = vadd.f32 0.0, %v1931
      %v1933 = vpop.f32.mrf.mxu0
      %v1934 = vadd.f32 0.0, %v1933
      %1935 = vmatmul.bf16.gmra.mxu0 %v692
      %v1936 = vpop.f32.mrf.mxu0
      %v1937 = vadd.f32 0.0, %v1936
      %v1938 = vpop.f32.mrf.mxu0
      %v1939 = vadd.f32 0.0, %v1938
      %1940 = vmatmul.bf16.gmra.mxu0 %v697
      %v1941 = vpop.f32.mrf.mxu0
      %v1942 = vadd.f32 0.0, %v1941
      %v1943 = vpop.f32.mrf.mxu0
      %v1944 = vadd.f32 0.0, %v1943
      %1945 = vmatmul.bf16.gmra.mxu0 %v702
      %v1946 = vpop.f32.mrf.mxu0
      %v1947 = vadd.f32 0.0, %v1946
      %v1948 = vpop.f32.mrf.mxu0
      %v1949 = vadd.f32 0.0, %v1948
      %1950 = vmatmul.bf16.gmra.mxu0 %v707
      %v1951 = vpop.f32.mrf.mxu0
      %v1952 = vadd.f32 0.0, %v1951
      %v1953 = vpop.f32.mrf.mxu0
      %v1954 = vadd.f32 0.0, %v1953
      %1955 = vmatmul.bf16.gmra.mxu0 %v712
      %v1956 = vpop.f32.mrf.mxu0
      %v1957 = vadd.f32 0.0, %v1956
      %v1958 = vpop.f32.mrf.mxu0
      %v1959 = vadd.f32 0.0, %v1958
      %1960 = vmatmul.bf16.gmra.mxu0 %v717
      %v1961 = vpop.f32.mrf.mxu0
      %v1962 = vadd.f32 0.0, %v1961
      %v1963 = vpop.f32.mrf.mxu0
      %v1964 = vadd.f32 0.0, %v1963
      %1965 = vmatmul.bf16.gmra.mxu0 %v722
      %v1966 = vpop.f32.mrf.mxu0
      %v1967 = vadd.f32 0.0, %v1966
      %v1968 = vpop.f32.mrf.mxu0
      %v1969 = vadd.f32 0.0, %v1968
      %1970 = vdwg.mxu0
      %1971 = vmatpush.bf16.msra.mxu0 %v1821
      %1972 = vmatpush.bf16.msra.mxu0 %v1820
      %1973 = vmatpush.bf16.msra.mxu0 %v1819
      %1974 = vmatpush.bf16.msra.mxu0 %v1818
      %1975 = vmatpush.bf16.msra.mxu0 %v1817
      %1976 = vmatpush.bf16.msra.mxu0 %v1816
      %1977 = vmatpush.bf16.msra.mxu0 %v1815
      %1978 = vmatpush.bf16.msra.mxu0 %v1814
      %1979 = vmatmul.bf16.gmra.mxu0 %v648
      %v1980 = vpop.f32.mrf.mxu0
      %v1981 = vadd.f32 %v1892, %v1980
      %v1982 = vpop.f32.mrf.mxu0
      %v1983 = vadd.f32 %v1894, %v1982
      %1984 = vmatmul.bf16.gmra.mxu0 %v653
      %v1985 = vpop.f32.mrf.mxu0
      %v1986 = vadd.f32 %v1897, %v1985
      %v1987 = vpop.f32.mrf.mxu0
      %v1988 = vadd.f32 %v1899, %v1987
      %1989 = vmatmul.bf16.gmra.mxu0 %v658
      %v1990 = vpop.f32.mrf.mxu0
      %v1991 = vadd.f32 %v1902, %v1990
      %v1992 = vpop.f32.mrf.mxu0
      %v1993 = vadd.f32 %v1904, %v1992
      %1994 = vmatmul.bf16.gmra.mxu0 %v663
      %v1995 = vpop.f32.mrf.mxu0
      %v1996 = vadd.f32 %v1907, %v1995
      %v1997 = vpop.f32.mrf.mxu0
      %v1998 = vadd.f32 %v1909, %v1997
      %1999 = vmatmul.bf16.gmra.mxu0 %v668
      %v2000 = vpop.f32.mrf.mxu0
      %v2001 = vadd.f32 %v1912, %v2000
      %v2002 = vpop.f32.mrf.mxu0
      %v2003 = vadd.f32 %v1914, %v2002
      %2004 = vmatmul.bf16.gmra.mxu0 %v673
      %v2005 = vpop.f32.mrf.mxu0
      %v2006 = vadd.f32 %v1917, %v2005
      %v2007 = vpop.f32.mrf.mxu0
      %v2008 = vadd.f32 %v1919, %v2007
      %2009 = vmatmul.bf16.gmra.mxu0 %v678
      %v2010 = vpop.f32.mrf.mxu0
      %v2011 = vadd.f32 %v1922, %v2010
      %v2012 = vpop.f32.mrf.mxu0
      %v2013 = vadd.f32 %v1924, %v2012
      %2014 = vmatmul.bf16.gmra.mxu0 %v683
      %v2015 = vpop.f32.mrf.mxu0
      %v2016 = vadd.f32 %v1927, %v2015
      %v2017 = vpop.f32.mrf.mxu0
      %v2018 = vadd.f32 %v1929, %v2017
      %2019 = vmatmul.bf16.gmra.mxu0 %v688
      %v2020 = vpop.f32.mrf.mxu0
      %v2021 = vadd.f32 %v1932, %v2020
      %v2022 = vpop.f32.mrf.mxu0
      %v2023 = vadd.f32 %v1934, %v2022
      %2024 = vmatmul.bf16.gmra.mxu0 %v693
      %v2025 = vpop.f32.mrf.mxu0
      %v2026 = vadd.f32 %v1937, %v2025
      %v2027 = vpop.f32.mrf.mxu0
      %v2028 = vadd.f32 %v1939, %v2027
      %2029 = vmatmul.bf16.gmra.mxu0 %v698
      %v2030 = vpop.f32.mrf.mxu0
      %v2031 = vadd.f32 %v1942, %v2030
      %v2032 = vpop.f32.mrf.mxu0
      %v2033 = vadd.f32 %v1944, %v2032
      %2034 = vmatmul.bf16.gmra.mxu0 %v703
      %v2035 = vpop.f32.mrf.mxu0
      %v2036 = vadd.f32 %v1947, %v2035
      %v2037 = vpop.f32.mrf.mxu0
      %v2038 = vadd.f32 %v1949, %v2037
      %2039 = vmatmul.bf16.gmra.mxu0 %v708
      %v2040 = vpop.f32.mrf.mxu0
      %v2041 = vadd.f32 %v1952, %v2040
      %v2042 = vpop.f32.mrf.mxu0
      %v2043 = vadd.f32 %v1954, %v2042
      %2044 = vmatmul.bf16.gmra.mxu0 %v713
      %v2045 = vpop.f32.mrf.mxu0
      %v2046 = vadd.f32 %v1957, %v2045
      %v2047 = vpop.f32.mrf.mxu0
      %v2048 = vadd.f32 %v1959, %v2047
      %2049 = vmatmul.bf16.gmra.mxu0 %v718
      %v2050 = vpop.f32.mrf.mxu0
      %v2051 = vadd.f32 %v1962, %v2050
      %v2052 = vpop.f32.mrf.mxu0
      %v2053 = vadd.f32 %v1964, %v2052
      %2054 = vmatmul.bf16.gmra.mxu0 %v723
      %v2055 = vpop.f32.mrf.mxu0
      %v2056 = vadd.f32 %v1967, %v2055
      %v2057 = vpop.f32.mrf.mxu0
      %v2058 = vadd.f32 %v1969, %v2057
      %2059 = vdwg.mxu0
      %2060 = vmatpush.bf16.msra.mxu0 %v1829
      %2061 = vmatpush.bf16.msra.mxu0 %v1828
      %2062 = vmatpush.bf16.msra.mxu0 %v1827
      %2063 = vmatpush.bf16.msra.mxu0 %v1826
      %2064 = vmatpush.bf16.msra.mxu0 %v1825
      %2065 = vmatpush.bf16.msra.mxu0 %v1824
      %2066 = vmatpush.bf16.msra.mxu0 %v1823
      %2067 = vmatpush.bf16.msra.mxu0 %v1822
      %2068 = vmatmul.bf16.gmra.mxu0 %v649
      %v2069 = vpop.f32.mrf.mxu0
      %v2070 = vadd.f32 %v1981, %v2069
      %v2071 = vpop.f32.mrf.mxu0
      %v2072 = vadd.f32 %v1983, %v2071
      %2073 = vmatmul.bf16.gmra.mxu0 %v654
      %v2074 = vpop.f32.mrf.mxu0
      %v2075 = vadd.f32 %v1986, %v2074
      %v2076 = vpop.f32.mrf.mxu0
      %v2077 = vadd.f32 %v1988, %v2076
      %2078 = vmatmul.bf16.gmra.mxu0 %v659
      %v2079 = vpop.f32.mrf.mxu0
      %v2080 = vadd.f32 %v1991, %v2079
      %v2081 = vpop.f32.mrf.mxu0
      %v2082 = vadd.f32 %v1993, %v2081
      %2083 = vmatmul.bf16.gmra.mxu0 %v664
      %v2084 = vpop.f32.mrf.mxu0
      %v2085 = vadd.f32 %v1996, %v2084
      %v2086 = vpop.f32.mrf.mxu0
      %v2087 = vadd.f32 %v1998, %v2086
      %2088 = vmatmul.bf16.gmra.mxu0 %v669
      %v2089 = vpop.f32.mrf.mxu0
      %v2090 = vadd.f32 %v2001, %v2089
      %v2091 = vpop.f32.mrf.mxu0
      %v2092 = vadd.f32 %v2003, %v2091
      %2093 = vmatmul.bf16.gmra.mxu0 %v674
      %v2094 = vpop.f32.mrf.mxu0
      %v2095 = vadd.f32 %v2006, %v2094
      %v2096 = vpop.f32.mrf.mxu0
      %v2097 = vadd.f32 %v2008, %v2096
      %2098 = vmatmul.bf16.gmra.mxu0 %v679
      %v2099 = vpop.f32.mrf.mxu0
      %v2100 = vadd.f32 %v2011, %v2099
      %v2101 = vpop.f32.mrf.mxu0
      %v2102 = vadd.f32 %v2013, %v2101
      %2103 = vmatmul.bf16.gmra.mxu0 %v684
      %v2104 = vpop.f32.mrf.mxu0
      %v2105 = vadd.f32 %v2016, %v2104
      %v2106 = vpop.f32.mrf.mxu0
      %v2107 = vadd.f32 %v2018, %v2106
      %2108 = vmatmul.bf16.gmra.mxu0 %v689
      %v2109 = vpop.f32.mrf.mxu0
      %v2110 = vadd.f32 %v2021, %v2109
      %v2111 = vpop.f32.mrf.mxu0
      %v2112 = vadd.f32 %v2023, %v2111
      %2113 = vmatmul.bf16.gmra.mxu0 %v694
      %v2114 = vpop.f32.mrf.mxu0
      %v2115 = vadd.f32 %v2026, %v2114
      %v2116 = vpop.f32.mrf.mxu0
      %v2117 = vadd.f32 %v2028, %v2116
      %2118 = vmatmul.bf16.gmra.mxu0 %v699
      %v2119 = vpop.f32.mrf.mxu0
      %v2120 = vadd.f32 %v2031, %v2119
      %v2121 = vpop.f32.mrf.mxu0
      %v2122 = vadd.f32 %v2033, %v2121
      %2123 = vmatmul.bf16.gmra.mxu0 %v704
      %v2124 = vpop.f32.mrf.mxu0
      %v2125 = vadd.f32 %v2036, %v2124
      %v2126 = vpop.f32.mrf.mxu0
      %v2127 = vadd.f32 %v2038, %v2126
      %2128 = vmatmul.bf16.gmra.mxu0 %v709
      %v2129 = vpop.f32.mrf.mxu0
      %v2130 = vadd.f32 %v2041, %v2129
      %v2131 = vpop.f32.mrf.mxu0
      %v2132 = vadd.f32 %v2043, %v2131
      %2133 = vmatmul.bf16.gmra.mxu0 %v714
      %v2134 = vpop.f32.mrf.mxu0
      %v2135 = vadd.f32 %v2046, %v2134
      %v2136 = vpop.f32.mrf.mxu0
      %v2137 = vadd.f32 %v2048, %v2136
      %2138 = vmatmul.bf16.gmra.mxu0 %v719
      %v2139 = vpop.f32.mrf.mxu0
      %v2140 = vadd.f32 %v2051, %v2139
      %v2141 = vpop.f32.mrf.mxu0
      %v2142 = vadd.f32 %v2053, %v2141
      %2143 = vmatmul.bf16.gmra.mxu0 %v724
      %v2144 = vpop.f32.mrf.mxu0
      %v2145 = vadd.f32 %v2056, %v2144
      %v2146 = vpop.f32.mrf.mxu0
      %v2147 = vadd.f32 %v2058, %v2146
      %2148 = vdwg.mxu0
      %2149 = vmatpush.bf16.msra.mxu0 %v1837
      %2150 = vmatpush.bf16.msra.mxu0 %v1836
      %2151 = vmatpush.bf16.msra.mxu0 %v1835
      %2152 = vmatpush.bf16.msra.mxu0 %v1834
      %2153 = vmatpush.bf16.msra.mxu0 %v1833
      %2154 = vmatpush.bf16.msra.mxu0 %v1832
      %2155 = vmatpush.bf16.msra.mxu0 %v1831
      %2156 = vmatpush.bf16.msra.mxu0 %v1830
      %2157 = vmatmul.bf16.gmra.mxu0 %v650
      %v2158 = vpop.f32.mrf.mxu0
      %v2159 = vadd.f32 %v2070, %v2158
      %v2160 = vpop.f32.mrf.mxu0
      %v2161 = vadd.f32 %v2072, %v2160
      %2162 = vmatmul.bf16.gmra.mxu0 %v655
      %v2163 = vpop.f32.mrf.mxu0
      %v2164 = vadd.f32 %v2075, %v2163
      %v2165 = vpop.f32.mrf.mxu0
      %v2166 = vadd.f32 %v2077, %v2165
      %2167 = vmatmul.bf16.gmra.mxu0 %v660
      %v2168 = vpop.f32.mrf.mxu0
      %v2169 = vadd.f32 %v2080, %v2168
      %v2170 = vpop.f32.mrf.mxu0
      %v2171 = vadd.f32 %v2082, %v2170
      %2172 = vmatmul.bf16.gmra.mxu0 %v665
      %v2173 = vpop.f32.mrf.mxu0
      %v2174 = vadd.f32 %v2085, %v2173
      %v2175 = vpop.f32.mrf.mxu0
      %v2176 = vadd.f32 %v2087, %v2175
      %2177 = vmatmul.bf16.gmra.mxu0 %v670
      %v2178 = vpop.f32.mrf.mxu0
      %v2179 = vadd.f32 %v2090, %v2178
      %v2180 = vpop.f32.mrf.mxu0
      %v2181 = vadd.f32 %v2092, %v2180
      %2182 = vmatmul.bf16.gmra.mxu0 %v675
      %v2183 = vpop.f32.mrf.mxu0
      %v2184 = vadd.f32 %v2095, %v2183
      %v2185 = vpop.f32.mrf.mxu0
      %v2186 = vadd.f32 %v2097, %v2185
      %2187 = vmatmul.bf16.gmra.mxu0 %v680
      %v2188 = vpop.f32.mrf.mxu0
      %v2189 = vadd.f32 %v2100, %v2188
      %v2190 = vpop.f32.mrf.mxu0
      %v2191 = vadd.f32 %v2102, %v2190
      %2192 = vmatmul.bf16.gmra.mxu0 %v685
      %v2193 = vpop.f32.mrf.mxu0
      %v2194 = vadd.f32 %v2105, %v2193
      %v2195 = vpop.f32.mrf.mxu0
      %v2196 = vadd.f32 %v2107, %v2195
      %2197 = vmatmul.bf16.gmra.mxu0 %v690
      %v2198 = vpop.f32.mrf.mxu0
      %v2199 = vadd.f32 %v2110, %v2198
      %v2200 = vpop.f32.mrf.mxu0
      %v2201 = vadd.f32 %v2112, %v2200
      %2202 = vmatmul.bf16.gmra.mxu0 %v695
      %v2203 = vpop.f32.mrf.mxu0
      %v2204 = vadd.f32 %v2115, %v2203
      %v2205 = vpop.f32.mrf.mxu0
      %v2206 = vadd.f32 %v2117, %v2205
      %2207 = vmatmul.bf16.gmra.mxu0 %v700
      %v2208 = vpop.f32.mrf.mxu0
      %v2209 = vadd.f32 %v2120, %v2208
      %v2210 = vpop.f32.mrf.mxu0
      %v2211 = vadd.f32 %v2122, %v2210
      %2212 = vmatmul.bf16.gmra.mxu0 %v705
      %v2213 = vpop.f32.mrf.mxu0
      %v2214 = vadd.f32 %v2125, %v2213
      %v2215 = vpop.f32.mrf.mxu0
      %v2216 = vadd.f32 %v2127, %v2215
      %2217 = vmatmul.bf16.gmra.mxu0 %v710
      %v2218 = vpop.f32.mrf.mxu0
      %v2219 = vadd.f32 %v2130, %v2218
      %v2220 = vpop.f32.mrf.mxu0
      %v2221 = vadd.f32 %v2132, %v2220
      %2222 = vmatmul.bf16.gmra.mxu0 %v715
      %v2223 = vpop.f32.mrf.mxu0
      %v2224 = vadd.f32 %v2135, %v2223
      %v2225 = vpop.f32.mrf.mxu0
      %v2226 = vadd.f32 %v2137, %v2225
      %2227 = vmatmul.bf16.gmra.mxu0 %v720
      %v2228 = vpop.f32.mrf.mxu0
      %v2229 = vadd.f32 %v2140, %v2228
      %v2230 = vpop.f32.mrf.mxu0
      %v2231 = vadd.f32 %v2142, %v2230
      %2232 = vmatmul.bf16.gmra.mxu0 %v725
      %v2233 = vpop.f32.mrf.mxu0
      %v2234 = vadd.f32 %v2145, %v2233
      %v2235 = vpop.f32.mrf.mxu0
      %v2236 = vadd.f32 %v2147, %v2235
      %2237 = vdwg.mxu0
      %2238 = vmatpush.bf16.msra.mxu0 0
      %2239 = vmatpush.bf16.msra.mxu0 0
      %2240 = vmatpush.bf16.msra.mxu0 %v1843
      %2241 = vmatpush.bf16.msra.mxu0 %v1842
      %2242 = vmatpush.bf16.msra.mxu0 %v1841
      %2243 = vmatpush.bf16.msra.mxu0 %v1840
      %2244 = vmatpush.bf16.msra.mxu0 %v1839
      %2245 = vmatpush.bf16.msra.mxu0 %v1838
      %2246 = vmatmul.bf16.gmra.mxu0 %v1021
      %v2247 = vpop.f32.mrf.mxu0
      %v2248 = vadd.f32 %v2159, %v2247
      %v2249 = vpop.f32.mrf.mxu0
      %v2250 = vadd.f32 %v2161, %v2249
      %2251 = vmatmul.bf16.gmra.mxu0 %v1024
      %v2252 = vpop.f32.mrf.mxu0
      %v2253 = vadd.f32 %v2164, %v2252
      %v2254 = vpop.f32.mrf.mxu0
      %v2255 = vadd.f32 %v2166, %v2254
      %2256 = vmatmul.bf16.gmra.mxu0 %v1027
      %v2257 = vpop.f32.mrf.mxu0
      %v2258 = vadd.f32 %v2169, %v2257
      %v2259 = vpop.f32.mrf.mxu0
      %v2260 = vadd.f32 %v2171, %v2259
      %2261 = vmatmul.bf16.gmra.mxu0 %v1030
      %v2262 = vpop.f32.mrf.mxu0
      %v2263 = vadd.f32 %v2174, %v2262
      %v2264 = vpop.f32.mrf.mxu0
      %v2265 = vadd.f32 %v2176, %v2264
      %2266 = vmatmul.bf16.gmra.mxu0 %v1033
      %v2267 = vpop.f32.mrf.mxu0
      %v2268 = vadd.f32 %v2179, %v2267
      %v2269 = vpop.f32.mrf.mxu0
      %v2270 = vadd.f32 %v2181, %v2269
      %2271 = vmatmul.bf16.gmra.mxu0 %v1036
      %v2272 = vpop.f32.mrf.mxu0
      %v2273 = vadd.f32 %v2184, %v2272
      %v2274 = vpop.f32.mrf.mxu0
      %v2275 = vadd.f32 %v2186, %v2274
      %2276 = vmatmul.bf16.gmra.mxu0 %v1039
      %v2277 = vpop.f32.mrf.mxu0
      %v2278 = vadd.f32 %v2189, %v2277
      %v2279 = vpop.f32.mrf.mxu0
      %v2280 = vadd.f32 %v2191, %v2279
      %2281 = vmatmul.bf16.gmra.mxu0 %v1042
      %v2282 = vpop.f32.mrf.mxu0
      %v2283 = vadd.f32 %v2194, %v2282
      %v2284 = vpop.f32.mrf.mxu0
      %v2285 = vadd.f32 %v2196, %v2284
      %2286 = vmatmul.bf16.gmra.mxu0 %v1045
      %v2287 = vpop.f32.mrf.mxu0
      %v2288 = vadd.f32 %v2199, %v2287
      %v2289 = vpop.f32.mrf.mxu0
      %v2290 = vadd.f32 %v2201, %v2289
      %2291 = vmatmul.bf16.gmra.mxu0 %v1048
      %v2292 = vpop.f32.mrf.mxu0
      %v2293 = vadd.f32 %v2204, %v2292
      %v2294 = vpop.f32.mrf.mxu0
      %v2295 = vadd.f32 %v2206, %v2294
      %2296 = vmatmul.bf16.gmra.mxu0 %v1051
      %v2297 = vpop.f32.mrf.mxu0
      %v2298 = vadd.f32 %v2209, %v2297
      %v2299 = vpop.f32.mrf.mxu0
      %v2300 = vadd.f32 %v2211, %v2299
      %2301 = vmatmul.bf16.gmra.mxu0 %v1054
      %v2302 = vpop.f32.mrf.mxu0
      %v2303 = vadd.f32 %v2214, %v2302
      %v2304 = vpop.f32.mrf.mxu0
      %v2305 = vadd.f32 %v2216, %v2304
      %2306 = vmatmul.bf16.gmra.mxu0 %v1057
      %v2307 = vpop.f32.mrf.mxu0
      %v2308 = vadd.f32 %v2219, %v2307
      %v2309 = vpop.f32.mrf.mxu0
      %v2310 = vadd.f32 %v2221, %v2309
      %2311 = vmatmul.bf16.gmra.mxu0 %v1060
      %v2312 = vpop.f32.mrf.mxu0
      %v2313 = vadd.f32 %v2224, %v2312
      %v2314 = vpop.f32.mrf.mxu0
      %v2315 = vadd.f32 %v2226, %v2314
      %2316 = vmatmul.bf16.gmra.mxu0 %v1063
      %v2317 = vpop.f32.mrf.mxu0
      %v2318 = vadd.f32 %v2229, %v2317
      %v2319 = vpop.f32.mrf.mxu0
      %v2320 = vadd.f32 %v2231, %v2319
      %2321 = vmatmul.bf16.gmra.mxu0 %v1066
      %v2322 = vpop.f32.mrf.mxu0
      %v2323 = vadd.f32 %v2234, %v2322
      %v2324 = vpop.f32.mrf.mxu0
      %v2325 = vadd.f32 %v2236, %v2324
      %2326 = vdwg.mxu0
      %vm2327 = vcmask 523264
      %2328 = vst.msk [vmem:[%s216] sm:$0xff] %vm2327, %v2248
      %2329 = vst.msk [vmem:[%s216 + $0x8] sm:$0xff] %vm2327, %v2250
      %2330 = vst.msk [vmem:[%s216 + $0x10] sm:$0xff] %vm2327, %v2253
      %2331 = vst.msk [vmem:[%s216 + $0x18] sm:$0xff] %vm2327, %v2255
      %2332 = vst.msk [vmem:[%s216 + $0x20] sm:$0xff] %vm2327, %v2258
      %2333 = vst.msk [vmem:[%s216 + $0x28] sm:$0xff] %vm2327, %v2260
      %2334 = vst.msk [vmem:[%s216 + $0x30] sm:$0xff] %vm2327, %v2263
      %2335 = vst.msk [vmem:[%s216 + $0x38] sm:$0xff] %vm2327, %v2265
      %2336 = vst.msk [vmem:[%s216 + $0x40] sm:$0xff] %vm2327, %v2268
      %2337 = vst.msk [vmem:[%s216 + $0x48] sm:$0xff] %vm2327, %v2270
      %2338 = vst.msk [vmem:[%s216 + $0x50] sm:$0xff] %vm2327, %v2273
      %2339 = vst.msk [vmem:[%s216 + $0x58] sm:$0xff] %vm2327, %v2275
      %2340 = vst.msk [vmem:[%s216 + $0x60] sm:$0xff] %vm2327, %v2278
      %2341 = vst.msk [vmem:[%s216 + $0x68] sm:$0xff] %vm2327, %v2280
      %2342 = vst.msk [vmem:[%s216 + $0x70] sm:$0xff] %vm2327, %v2283
      %2343 = vst.msk [vmem:[%s216 + $0x78] sm:$0xff] %vm2327, %v2285
      %2344 = vst.msk [vmem:[%s216 + $0x80] sm:$0xff] %vm2327, %v2288
      %2345 = vst.msk [vmem:[%s216 + $0x88] sm:$0xff] %vm2327, %v2290
      %2346 = vst.msk [vmem:[%s216 + $0x90] sm:$0xff] %vm2327, %v2293
      %2347 = vst.msk [vmem:[%s216 + $0x98] sm:$0xff] %vm2327, %v2295
      %2348 = vst.msk [vmem:[%s216 + $0xa0] sm:$0xff] %vm2327, %v2298
      %2349 = vst.msk [vmem:[%s216 + $0xa8] sm:$0xff] %vm2327, %v2300
      %2350 = vst.msk [vmem:[%s216 + $0xb0] sm:$0xff] %vm2327, %v2303
      %2351 = vst.msk [vmem:[%s216 + $0xb8] sm:$0xff] %vm2327, %v2305
      %2352 = vst.msk [vmem:[%s216 + $0xc0] sm:$0xff] %vm2327, %v2308
      %2353 = vst.msk [vmem:[%s216 + $0xc8] sm:$0xff] %vm2327, %v2310
      %2354 = vst.msk [vmem:[%s216 + $0xd0] sm:$0xff] %vm2327, %v2313
      %2355 = vst.msk [vmem:[%s216 + $0xd8] sm:$0xff] %vm2327, %v2315
      %2356 = vst.msk [vmem:[%s216 + $0xe0] sm:$0xff] %vm2327, %v2318
      %2357 = vst.msk [vmem:[%s216 + $0xe8] sm:$0xff] %vm2327, %v2320
      %2358 = vst.msk [vmem:[%s216 + $0xf0] sm:$0xff] %vm2327, %v2323
      %2359 = vst.msk [vmem:[%s216 + $0xf8] sm:$0xff] %vm2327, %v2325
      %s2360 = smul.u32 32, %s16
      %p2361 = scmp.lt.s32.totalorder %s2360, 63
      %s2362 = scalar_select %p2361, %s2360, 63
      %s2363 = smul.addr %s2362, 4
      %s2364 = scalar_lea.vmem %s3, %s2363
      %s2365 = smul.u32 32, %s16
      %p2366 = scmp.lt.s32.totalorder %s2365, 63
      %s2367 = scalar_select %p2366, %s2365, 63
      %s2368 = smul.addr %s2367, 8
      %s2369 = scalar_lea.vmem %s4, %s2368
      // Predicated region
      $region33: #{net000_forward.3} parent=31 // pred_check
        %p2370 = pneg %p102
      $region34: #{net000_forward.3} parent=31 // pred_check_branch
        %2372 = sbr.rel (%p2370) target = $region36
      $region35: #{net000_forward.3} parent=31 // pred_region
        %s2373 = smul.u32 32, %s16
      $region36: #{net000_forward.3} parent=31 // pred_fallthru
        _
      // Predicated region
      $region37: #{net000_forward.3} parent=31 // pred_check
        %p2374 = pneg %p128
      $region38: #{net000_forward.3} parent=31 // pred_check_branch
        %2376 = sbr.rel (%p2374) target = $region40
      $region39: #{net000_forward.3} parent=31 // pred_region
        %s2377 = smul.u32 32, %s16
      $region40: #{net000_forward.3} parent=31 // pred_fallthru
        _
    $region32: #{net000_forward.3} parent=5 // pred_fallthru
      _
    %p2378 = scmp.le.s32.totalorder 2, %s11
    // Predicated region
    $region41: #{net000_forward.3} parent=5 // pred_check
      %p2379 = pneg %p2378
    $region42: #{net000_forward.3} parent=5 // pred_check_branch
      %2381 = sbr.rel (%p2379) target = $region44
    $region43: #{net000_forward.3} parent=5 // pred_region
      %s2382 = ssub.s32 %s11, 2
      // Predicated region
      $region45: #{net000_forward.3} parent=43 // pred_check
        %p2383 = pneg %p108
      $region46: #{net000_forward.3} parent=43 // pred_check_branch
        %2385 = sbr.rel (%p2383) target = $region48
      $region47: #{net000_forward.3} parent=43 // pred_region
        %s2386 = smul.u32 32, %s17
        %p2387 = scmp.lt.s32.totalorder %s2386, 63
        %s2388 = scalar_select %p2387, %s2386, 63
        %s2389 = smul.addr %s2388, 4
        %s2390 = scalar_lea.vmem %s3, %s2389
      $region48: #{net000_forward.3} parent=43 // pred_fallthru
        _
      // Predicated region
      $region49: #{net000_forward.3} parent=43 // pred_check
        %p2391 = pneg %p134
      $region50: #{net000_forward.3} parent=43 // pred_check_branch
        %2393 = sbr.rel (%p2391) target = $region52
      $region51: #{net000_forward.3} parent=43 // pred_region
        %s2394 = smul.u32 32, %s17
        %p2395 = scmp.lt.s32.totalorder %s2394, 63
        %s2396 = scalar_select %p2395, %s2394, 63
        %s2397 = smul.addr %s2396, 8
        %s2398 = scalar_lea.vmem %s4, %s2397
      $region52: #{net000_forward.3} parent=43 // pred_fallthru
        _
    $region44: #{net000_forward.3} parent=5 // pred_fallthru
      _
  $region6: #{net000_forward.3} parent=0 // loop_footer
    %s15 = sadd.s32 1, %s11
  $region7: #{net000_forward.3} parent=0 // loop_footer_branch
    %10 = sbr.rel target = $region3
  $region8: #{net000_forward.3} parent=0 // loop_exit
    _

</llo_original>
